<compile_context>
chip_gen: v6e
topology: v6e:2x2x1
jax: 0.10.0
libtpu: 0.0.40
codegen_flags: <defaults>
</compile_context>

<pallas_src>
import jax
import jax.numpy as jnp
from jax.experimental import pallas as pl
from jax.experimental.pallas import tpu as pltpu

# Architecture constants fixed by the PyTorch module.
PSIZE = 5                   # fine window 5x5
FEAT_DIM = 256              # channels after cat([feat1, feat2])
BRANCH_DIM = FEAT_DIM // 2  # 128 channels per input branch
CONV_DIM = 512
FC_DIM = 256
HEAD_PAD = 128              # lane-dense merged head width (cols 0:2 = reg, col 2 = cla)
BN_EPS = 1e-5
M_TILE_CAP = 128            # TODO(synk): raise cap to 256 on v6e (128 MiB VMEM) for huge M.


# ---------------------------------------------------------------------------
# Pallas kernel: one M-tile of the full conv->pool->fc->heads pipeline.
# ---------------------------------------------------------------------------
def _fine_adjust_kernel(x_ref,
                        a1_ref, a2_ref, c2_ref,
                        a3_ref, c3_ref,
                        a4_ref, c4_ref,
                        wh_ref, bh_ref,
                        out_ref):
    n_pos, mt, cin = x_ref.shape            # (25, m_tile, 256)
    d1 = a2_ref.shape[1]                    # 512

    # conv1 + conv2 (1x1 convs with BN scale folded into the weights), computed
    # over ALL 25 window positions at once: rows = 25 * m_tile per MXU matmul.
    x = x_ref[...].reshape(n_pos * mt, cin)                              # bf16
    h = jnp.dot(x, a1_ref[...], preferred_element_type=jnp.float32)      # (25*mt, 512)
    h = h.astype(jnp.bfloat16)
    raw = jnp.dot(h, a2_ref[...], preferred_element_type=jnp.float32)    # (25*mt, 512)

    # MaxPool2d(5) == max over the 25 positions.  The constant bias (BN shifts
    # folded through conv2) and the ReLU commute with the max, so they are
    # applied once on the pooled (m_tile, 512) result (exact transform).
    pooled = jnp.max(raw.reshape(n_pos, mt, d1), axis=0)
    pooled = jnp.maximum(pooled + c2_ref[...], 0.0)

    # fc: (Linear + folded BN1d + ReLU) x 2
    o = jnp.dot(pooled.astype(jnp.bfloat16), a3_ref[...],
                preferred_element_type=jnp.float32) + c3_ref[...]
    o = jnp.maximum(o, 0.0)
    o = jnp.dot(o.astype(jnp.bfloat16), a4_ref[...],
                preferred_element_type=jnp.float32) + c4_ref[...]
    o = jnp.maximum(o, 0.0)

    # Merged heads: one lane-dense (256, 128) matmul; sigmoid only on the cla lane.
    head = jnp.dot(o.astype(jnp.bfloat16), wh_ref[...],
                   preferred_element_type=jnp.float32) + bh_ref[...]
    lane = jax.lax.broadcasted_iota(jnp.int32, head.shape, 1)
    out = jnp.where(lane == 2, jax.nn.sigmoid(head), head)
    out_ref[...] = out.astype(out_ref.dtype)


# ---------------------------------------------------------------------------
# Parameter handling (eval-mode BN folded into the preceding conv/linear).
# ---------------------------------------------------------------------------
def _bn_scale_shift(gamma, beta, mean, var, eps=BN_EPS):
    scale = gamma / jnp.sqrt(var + eps)
    return scale, beta - mean * scale


def _fold_params(p, eps=BN_EPS):
    s1, t1 = _bn_scale_shift(p['bn1_gamma'], p['bn1_beta'], p['bn1_mean'], p['bn1_var'], eps)
    s2, t2 = _bn_scale_shift(p['bn2_gamma'], p['bn2_beta'], p['bn2_mean'], p['bn2_var'], eps)
    s3, t3 = _bn_scale_shift(p['bn3_gamma'], p['bn3_beta'], p['bn3_mean'], p['bn3_var'], eps)
    s4, t4 = _bn_scale_shift(p['bn4_gamma'], p['bn4_beta'], p['bn4_mean'], p['bn4_var'], eps)

    a1 = p['conv1_w'][:, :, 0, 0].T * s1[None, :]          # (256, 512)  conv1 + BN1 scale
    a2 = p['conv2_w'][:, :, 0, 0].T * s2[None, :]          # (512, 512)  conv2 + BN2 scale
    c2 = t1 @ a2 + t2                                      # BN1 shift folded through conv2 (f32)
    a3 = p['fc1_w'].T * s3[None, :]                        # (512, 256)
    c3 = p['fc1_b'] * s3 + t3
    a4 = p['fc2_w'].T * s4[None, :]                        # (256, 256)
    c4 = p['fc2_b'] * s4 + t4

    # reg (2 cols) and cla (1 col) merged + zero-padded to lane-dense 128 columns.
    wh = jnp.zeros((FC_DIM, HEAD_PAD), jnp.float32)
    wh = wh.at[:, 0:2].set(p['reg_w'].T).at[:, 2:3].set(p['cla_w'].T)
    bh = jnp.zeros((HEAD_PAD,), jnp.float32)
    bh = bh.at[0:2].set(p['reg_b']).at[2:3].set(p['cla_b'])

    bf = jnp.bfloat16
    return (a1.astype(bf), a2.astype(bf), c2[None, :],
            a3.astype(bf), c3[None, :],
            a4.astype(bf), c4[None, :],
            wh.astype(bf), bh[None, :])


def _round_up(x, n):
    return -(-x // n) * n


def _choose_tiling(m):
    # bf16 packs 16 rows per vreg sublane group -> keep the M tile a multiple of 16.
    # Cap at M_TILE_CAP, but keep >= 2 grid steps whenever M permits so both v7x
    # TensorCores get work under dimension_semantics=("parallel",).
    m_tile = min(M_TILE_CAP, max(16, _round_up(-(-m // 2), 16)))
    m_pad = _round_up(m, m_tile)
    return m_tile, m_pad


@jax.jit
def _fine_adjust_compute(params, feat1, feat2):
    m, c, h, w = feat1.shape
    s = h * w

    # Channels-last, position-major layout (25, M, 256); the cat([feat1, feat2])
    # is folded into the same transpose/copy.  Cast to bf16 for the MXU path.
    feat = jnp.concatenate([feat1, feat2], axis=1)                 # (M, 256, 5, 5)
    x = jnp.transpose(feat, (2, 3, 0, 1)).reshape(s, m, 2 * c)      # (25, M, 256)
    x = x.astype(jnp.bfloat16)

    m_tile, m_pad = _choose_tiling(m)
    if m_pad != m:
        x = jnp.pad(x, ((0, 0), (0, m_pad - m), (0, 0)))           # padded rows sliced off below

    weights = _fold_params(params)
    weight_specs = [pl.BlockSpec(wt.shape, lambda i: (0, 0)) for wt in weights]

    out = pl.pallas_call(
        _fine_adjust_kernel,
        out_shape=jax.ShapeDtypeStruct((m_pad, HEAD_PAD), jnp.float32),
        grid=(m_pad // m_tile,),
        in_specs=[pl.BlockSpec((s, m_tile, 2 * c), lambda i: (0, i, 0))] + weight_specs,
        out_specs=pl.BlockSpec((m_tile, HEAD_PAD), lambda i: (i, 0)),
        compiler_params=pltpu.CompilerParams(
            dimension_semantics=("parallel",),
            vmem_limit_bytes=48 * 1024 * 1024),   # headroom for v7x's 64 MiB VMEM
    )(x, *weights)

    reg = out[:m, 0:2]
    cla = out[:m, 2:3]
    return reg, cla


def fine_adjust_forward(params, feat1, feat2, data):
    """JAX/Pallas equivalent of FineAdjustNet.forward (BatchNorm in eval mode).

    Mirrors the PyTorch module: for M <= 1 it updates `data` in place and
    returns (0, 0); otherwise it returns (reg, cla).
    """
    m = feat1.shape[0]
    if m == 0 or m == 1:
        data.update({
            'expec_f': jnp.zeros((0, 3), dtype=feat1.dtype),
            'mkpts0_f': data['mkpts0_c'],
            'mkpts1_f': data['mkpts1_c'],
        })
        return (0, 0)
    return _fine_adjust_compute(params, feat1, feat2)


# ---------------------------------------------------------------------------
# Parameter init + plain-JAX reference for correctness checking.
# ---------------------------------------------------------------------------
def init_params(key):
    keys = iter(jax.random.split(key, 32))

    def nrm(shape, scale=0.05):
        return scale * jax.random.normal(next(keys), shape, dtype=jnp.float32)

    p = {
        'conv1_w': nrm((CONV_DIM, FEAT_DIM, 1, 1)),   # Conv2d(256->512, 1x1, bias=False)
        'conv2_w': nrm((CONV_DIM, CONV_DIM, 1, 1)),   # Conv2d(512->512, 1x1, bias=False)
        'fc1_w': nrm((FC_DIM, CONV_DIM)), 'fc1_b': nrm((FC_DIM,)),   # Linear(512->256)
        'fc2_w': nrm((FC_DIM, FC_DIM)),   'fc2_b': nrm((FC_DIM,)),   # Linear(256->256)
        'reg_w': nrm((2, FC_DIM)), 'reg_b': nrm((2,)),               # Linear(256->2)
        'cla_w': nrm((1, FC_DIM)), 'cla_b': nrm((1,)),               # Linear(256->1)
    }
    for name, d in (('bn1', CONV_DIM), ('bn2', CONV_DIM), ('bn3', FC_DIM), ('bn4', FC_DIM)):
        p[f'{name}_gamma'] = 1.0 + nrm((d,), 0.1)
        p[f'{name}_beta'] = nrm((d,), 0.1)
        p[f'{name}_mean'] = nrm((d,), 0.1)
        p[f'{name}_var'] = 1.0 + jnp.abs(nrm((d,), 0.1))
    return p


def reference_forward(params, feat1, feat2, eps=BN_EPS):
    hi = jax.lax.Precision.HIGHEST

    def bn(x, name):
        shape = [1] * x.ndim
        shape[1] = -1
        g = params[f'{name}_gamma'].reshape(shape)
        b = params[f'{name}_beta'].reshape(shape)
        mu = params[f'{name}_mean'].reshape(shape)
        v = params[f'{name}_var'].reshape(shape)
        return (x - mu) * (g / jnp.sqrt(v + eps)) + b

    feat = jnp.concatenate([feat1, feat2], axis=1)                       # (M, 256, 5, 5)
    y = jnp.einsum('oc,mchw->mohw', params['conv1_w'][:, :, 0, 0], feat, precision=hi)
    y = bn(y, 'bn1')
    y = jnp.einsum('oc,mchw->mohw', params['conv2_w'][:, :, 0, 0], y, precision=hi)
    y = jax.nn.relu(bn(y, 'bn2'))
    y = jnp.max(y, axis=(2, 3))                                          # MaxPool2d(5)
    o = jnp.dot(y, params['fc1_w'].T, precision=hi) + params['fc1_b']
    o = jax.nn.relu(bn(o, 'bn3'))
    o = jnp.dot(o, params['fc2_w'].T, precision=hi) + params['fc2_b']
    o = jax.nn.relu(bn(o, 'bn4'))
    reg = jnp.dot(o, params['reg_w'].T, precision=hi) + params['reg_b']
    cla = jax.nn.sigmoid(jnp.dot(o, params['cla_w'].T, precision=hi) + params['cla_b'])
    return reg, cla


if __name__ == "__main__":
    key = jax.random.PRNGKey(0)
    kp, k1, k2, k3, k4 = jax.random.split(key, 5)

    params = init_params(kp)

    # bf16 MXU path vs f32 HIGHEST reference -> loose-ish tolerance.
    TOL = 5e-2

    def check(m, kka, kkb):
        f1 = jax.random.normal(kka, (m, BRANCH_DIM, PSIZE, PSIZE), dtype=jnp.float32)
        f2 = jax.random.normal(kkb, (m, BRANCH_DIM, PSIZE, PSIZE), dtype=jnp.float32)
        data = {'mkpts0_c': jnp.zeros((m, 2)), 'mkpts1_c': jnp.zeros((m, 2))}
        reg, cla = fine_adjust_forward(params, f1, f2, data)
        jax.block_until_ready((reg, cla))
        assert reg.shape == (m, 2) and cla.shape == (m, 1)
        reg_ref, cla_ref = reference_forward(params, f1, f2)
        assert jnp.allclose(reg, reg_ref, atol=TOL, rtol=TOL), \
            float(jnp.max(jnp.abs(reg - reg_ref)))
        assert jnp.allclose(cla, cla_ref, atol=TOL, rtol=TOL), \
            float(jnp.max(jnp.abs(cla - cla_ref)))
        assert bool(jnp.all((cla >= 0.0) & (cla <= 1.0)))
        return f1, f2

    # Small M (single grid step, padded to the 16-row tile).
    feat1, feat2 = check(8, k1, k2)
    # M not a multiple of the tile -> exercises padding + 2 parallel grid steps.
    check(40, k3, k4)

    # Degenerate M == 1 branch: dict update + (0, 0) return, no kernel launch.
    data1 = {
        'mkpts0_c': jax.random.uniform(k3, (1, 2), dtype=jnp.float32) * 640.0,
        'mkpts1_c': jax.random.uniform(k4, (1, 2), dtype=jnp.float32) * 480.0,
    }
    ret = fine_adjust_forward(params, feat1[:1], feat2[:1], dict(data1))
    data1_out = dict(data1)
    ret = fine_adjust_forward(params, feat1[:1], feat2[:1], data1_out)
    assert ret == (0, 0)
    assert data1_out['expec_f'].shape == (0, 3)
    assert jnp.array_equal(data1_out['mkpts0_f'], data1['mkpts0_c'])
    assert jnp.array_equal(data1_out['mkpts1_f'], data1['mkpts1_c'])

    print("KERNEL_OK")
</pallas_src>

<mosaic_0001>
module attributes {stable_mosaic.version = 11 : i64} {
  func.func @_fine_adjust_kernel(%arg0: i32, %arg1: memref<25x16x256xbf16, #tpu.memory_space<vmem>>, %arg2: memref<256x512xbf16, #tpu.memory_space<vmem>>, %arg3: memref<512x512xbf16, #tpu.memory_space<vmem>>, %arg4: memref<1x512xf32, #tpu.memory_space<vmem>>, %arg5: memref<512x256xbf16, #tpu.memory_space<vmem>>, %arg6: memref<1x256xf32, #tpu.memory_space<vmem>>, %arg7: memref<256x256xbf16, #tpu.memory_space<vmem>>, %arg8: memref<1x256xf32, #tpu.memory_space<vmem>>, %arg9: memref<256x128xbf16, #tpu.memory_space<vmem>>, %arg10: memref<1x128xf32, #tpu.memory_space<vmem>>, %arg11: memref<16x128xf32, #tpu.memory_space<vmem>>) attributes {dimension_semantics = [#tpu.dimension_semantics<parallel>], iteration_bounds = array<i64: 1>, scalar_prefetch = 0 : i64, scratch_operands = 0 : i64, tpu.core_type = #tpu.core_type<tc>, window_params = [{transform_indices = @transform_0, window_bounds = array<i64: 25, 16, 256>}, {pipeline_mode = #tpu.pipeline_mode<synchronous>, transform_indices = @transform_1, window_bounds = array<i64: 256, 512>}, {pipeline_mode = #tpu.pipeline_mode<synchronous>, transform_indices = @transform_2, window_bounds = array<i64: 512, 512>}, {pipeline_mode = #tpu.pipeline_mode<synchronous>, transform_indices = @transform_3, window_bounds = array<i64: 1, 512>}, {pipeline_mode = #tpu.pipeline_mode<synchronous>, transform_indices = @transform_4, window_bounds = array<i64: 512, 256>}, {pipeline_mode = #tpu.pipeline_mode<synchronous>, transform_indices = @transform_5, window_bounds = array<i64: 1, 256>}, {pipeline_mode = #tpu.pipeline_mode<synchronous>, transform_indices = @transform_6, window_bounds = array<i64: 256, 256>}, {pipeline_mode = #tpu.pipeline_mode<synchronous>, transform_indices = @transform_7, window_bounds = array<i64: 1, 256>}, {pipeline_mode = #tpu.pipeline_mode<synchronous>, transform_indices = @transform_8, window_bounds = array<i64: 256, 128>}, {pipeline_mode = #tpu.pipeline_mode<synchronous>, transform_indices = @transform_9, window_bounds = array<i64: 1, 128>}, {transform_indices = @transform_10, window_bounds = array<i64: 16, 128>}]} {
    %c0 = arith.constant 0 : index
    %c0_0 = arith.constant 0 : index
    %c0_1 = arith.constant 0 : index
    %0 = vector.load %arg1[%c0, %c0_0, %c0_1] : memref<25x16x256xbf16, #tpu.memory_space<vmem>>, vector<25x16x256xbf16>
    %1 = vector.shape_cast %0 : vector<25x16x256xbf16> to vector<400x256xbf16>
    %c0_2 = arith.constant 0 : index
    %c0_3 = arith.constant 0 : index
    %2 = vector.load %arg2[%c0_2, %c0_3] : memref<256x512xbf16, #tpu.memory_space<vmem>>, vector<256x512xbf16>
    %cst = arith.constant dense<0.000000e+00> : vector<400x512xf32>
    %3 = tpu.matmul %1, %2, %cst {dimension_numbers = #tpu.dot_dimension_numbers<[1], [0], [0], [1], [0, 0, 1, 1], [], []>} : vector<400x256xbf16>, vector<256x512xbf16>, vector<400x512xf32> -> vector<400x512xf32>
    %4 = arith.truncf %3 : vector<400x512xf32> to vector<400x512xbf16>
    %c0_4 = arith.constant 0 : index
    %c0_5 = arith.constant 0 : index
    %5 = vector.load %arg3[%c0_4, %c0_5] : memref<512x512xbf16, #tpu.memory_space<vmem>>, vector<512x512xbf16>
    %cst_6 = arith.constant dense<0.000000e+00> : vector<400x512xf32>
    %6 = tpu.matmul %4, %5, %cst_6 {dimension_numbers = #tpu.dot_dimension_numbers<[1], [0], [0], [1], [0, 0, 1, 1], [], []>} : vector<400x512xbf16>, vector<512x512xbf16>, vector<400x512xf32> -> vector<400x512xf32>
    %7 = vector.shape_cast %6 : vector<400x512xf32> to vector<25x16x512xf32>
    %cst_7 = arith.constant dense<0xFF800000> : vector<16x512xf32>
    %8 = vector.multi_reduction <maximumf>, %7, %cst_7 [0] : vector<25x16x512xf32> to vector<16x512xf32>
    %c0_8 = arith.constant 0 : index
    %c0_9 = arith.constant 0 : index
    %9 = vector.load %arg4[%c0_8, %c0_9] : memref<1x512xf32, #tpu.memory_space<vmem>>, vector<1x512xf32>
    %10 = vector.broadcast %9 : vector<1x512xf32> to vector<16x512xf32>
    %11 = arith.addf %8, %10 : vector<16x512xf32>
    %cst_10 = arith.constant 0.000000e+00 : f32
    %12 = vector.broadcast %cst_10 : f32 to vector<16x512xf32>
    %13 = arith.maximumf %11, %12 : vector<16x512xf32>
    %14 = arith.truncf %13 : vector<16x512xf32> to vector<16x512xbf16>
    %c0_11 = arith.constant 0 : index
    %c0_12 = arith.constant 0 : index
    %15 = vector.load %arg5[%c0_11, %c0_12] : memref<512x256xbf16, #tpu.memory_space<vmem>>, vector<512x256xbf16>
    %cst_13 = arith.constant dense<0.000000e+00> : vector<16x256xf32>
    %16 = tpu.matmul %14, %15, %cst_13 {dimension_numbers = #tpu.dot_dimension_numbers<[1], [0], [0], [1], [0, 0, 1, 1], [], []>} : vector<16x512xbf16>, vector<512x256xbf16>, vector<16x256xf32> -> vector<16x256xf32>
    %c0_14 = arith.constant 0 : index
    %c0_15 = arith.constant 0 : index
    %17 = vector.load %arg6[%c0_14, %c0_15] : memref<1x256xf32, #tpu.memory_space<vmem>>, vector<1x256xf32>
    %18 = vector.broadcast %17 : vector<1x256xf32> to vector<16x256xf32>
    %19 = arith.addf %16, %18 : vector<16x256xf32>
    %cst_16 = arith.constant 0.000000e+00 : f32
    %20 = vector.broadcast %cst_16 : f32 to vector<16x256xf32>
    %21 = arith.maximumf %19, %20 : vector<16x256xf32>
    %22 = arith.truncf %21 : vector<16x256xf32> to vector<16x256xbf16>
    %c0_17 = arith.constant 0 : index
    %c0_18 = arith.constant 0 : index
    %23 = vector.load %arg7[%c0_17, %c0_18] : memref<256x256xbf16, #tpu.memory_space<vmem>>, vector<256x256xbf16>
    %cst_19 = arith.constant dense<0.000000e+00> : vector<16x256xf32>
    %24 = tpu.matmul %22, %23, %cst_19 {dimension_numbers = #tpu.dot_dimension_numbers<[1], [0], [0], [1], [0, 0, 1, 1], [], []>} : vector<16x256xbf16>, vector<256x256xbf16>, vector<16x256xf32> -> vector<16x256xf32>
    %c0_20 = arith.constant 0 : index
    %c0_21 = arith.constant 0 : index
    %25 = vector.load %arg8[%c0_20, %c0_21] : memref<1x256xf32, #tpu.memory_space<vmem>>, vector<1x256xf32>
    %26 = vector.broadcast %25 : vector<1x256xf32> to vector<16x256xf32>
    %27 = arith.addf %24, %26 : vector<16x256xf32>
    %cst_22 = arith.constant 0.000000e+00 : f32
    %28 = vector.broadcast %cst_22 : f32 to vector<16x256xf32>
    %29 = arith.maximumf %27, %28 : vector<16x256xf32>
    %30 = arith.truncf %29 : vector<16x256xf32> to vector<16x256xbf16>
    %c0_23 = arith.constant 0 : index
    %c0_24 = arith.constant 0 : index
    %31 = vector.load %arg9[%c0_23, %c0_24] : memref<256x128xbf16, #tpu.memory_space<vmem>>, vector<256x128xbf16>
    %cst_25 = arith.constant dense<0.000000e+00> : vector<16x128xf32>
    %32 = tpu.matmul %30, %31, %cst_25 {dimension_numbers = #tpu.dot_dimension_numbers<[1], [0], [0], [1], [0, 0, 1, 1], [], []>} : vector<16x256xbf16>, vector<256x128xbf16>, vector<16x128xf32> -> vector<16x128xf32>
    %c0_26 = arith.constant 0 : index
    %c0_27 = arith.constant 0 : index
    %33 = vector.load %arg10[%c0_26, %c0_27] : memref<1x128xf32, #tpu.memory_space<vmem>>, vector<1x128xf32>
    %34 = vector.broadcast %33 : vector<1x128xf32> to vector<16x128xf32>
    %35 = arith.addf %32, %34 : vector<16x128xf32>
    %36 = tpu.iota {dimensions = array<i32: 1>} : vector<16x128xi32>
    %c2_i32 = arith.constant 2 : i32
    %37 = vector.broadcast %c2_i32 : i32 to vector<16x128xi32>
    %38 = arith.cmpi eq, %36, %37 : vector<16x128xi32>
    %39 = arith.negf %35 : vector<16x128xf32>
    %40 = math.exp %39 : vector<16x128xf32>
    %cst_28 = arith.constant 1.000000e+00 : f32
    %41 = vector.broadcast %cst_28 : f32 to vector<16x128xf32>
    %42 = arith.addf %41, %40 : vector<16x128xf32>
    %43 = arith.divf %41, %42 : vector<16x128xf32>
    %44 = arith.select %38, %43, %35 : vector<16x128xi1>, vector<16x128xf32>
    %c0_29 = arith.constant 0 : index
    %c0_30 = arith.constant 0 : index
    %45 = vector.load %arg11[%c0_29, %c0_30] : memref<16x128xf32, #tpu.memory_space<vmem>>, vector<16x128xf32>
    tpu.vector_store %arg11[%c0_29, %c0_30], %44 {strides = array<i32>} : memref<16x128xf32, #tpu.memory_space<vmem>>, vector<16x128xf32>,
    return
  }
  func.func @transform_0(%arg0: i32) -> (i32, i32, i32) {
    %c0_i32 = arith.constant 0 : i32
    %c0_i32_0 = arith.constant 0 : i32
    %c0_i32_1 = arith.constant 0 : i32
    return %c0_i32, %arg0, %c0_i32_0 : i32, i32, i32
  }
  func.func @transform_1(%arg0: i32) -> (i32, i32) {
    %c0_i32 = arith.constant 0 : i32
    %c0_i32_0 = arith.constant 0 : i32
    %c0_i32_1 = arith.constant 0 : i32
    return %c0_i32, %c0_i32_0 : i32, i32
  }
  func.func @transform_2(%arg0: i32) -> (i32, i32) {
    %c0_i32 = arith.constant 0 : i32
    %c0_i32_0 = arith.constant 0 : i32
    %c0_i32_1 = arith.constant 0 : i32
    return %c0_i32, %c0_i32_0 : i32, i32
  }
  func.func @transform_3(%arg0: i32) -> (i32, i32) {
    %c0_i32 = arith.constant 0 : i32
    %c0_i32_0 = arith.constant 0 : i32
    %c0_i32_1 = arith.constant 0 : i32
    return %c0_i32, %c0_i32_0 : i32, i32
  }
  func.func @transform_4(%arg0: i32) -> (i32, i32) {
    %c0_i32 = arith.constant 0 : i32
    %c0_i32_0 = arith.constant 0 : i32
    %c0_i32_1 = arith.constant 0 : i32
    return %c0_i32, %c0_i32_0 : i32, i32
  }
  func.func @transform_5(%arg0: i32) -> (i32, i32) {
    %c0_i32 = arith.constant 0 : i32
    %c0_i32_0 = arith.constant 0 : i32
    %c0_i32_1 = arith.constant 0 : i32
    return %c0_i32, %c0_i32_0 : i32, i32
  }
  func.func @transform_6(%arg0: i32) -> (i32, i32) {
    %c0_i32 = arith.constant 0 : i32
    %c0_i32_0 = arith.constant 0 : i32
    %c0_i32_1 = arith.constant 0 : i32
    return %c0_i32, %c0_i32_0 : i32, i32
  }
  func.func @transform_7(%arg0: i32) -> (i32, i32) {
    %c0_i32 = arith.constant 0 : i32
    %c0_i32_0 = arith.constant 0 : i32
    %c0_i32_1 = arith.constant 0 : i32
    return %c0_i32, %c0_i32_0 : i32, i32
  }
  func.func @transform_8(%arg0: i32) -> (i32, i32) {
    %c0_i32 = arith.constant 0 : i32
    %c0_i32_0 = arith.constant 0 : i32
    %c0_i32_1 = arith.constant 0 : i32
    return %c0_i32, %c0_i32_0 : i32, i32
  }
  func.func @transform_9(%arg0: i32) -> (i32, i32) {
    %c0_i32 = arith.constant 0 : i32
    %c0_i32_0 = arith.constant 0 : i32
    %c0_i32_1 = arith.constant 0 : i32
    return %c0_i32, %c0_i32_0 : i32, i32
  }
  func.func @transform_10(%arg0: i32) -> (i32, i32) {
    %c0_i32 = arith.constant 0 : i32
    %c0_i32_0 = arith.constant 0 : i32
    return %arg0, %c0_i32 : i32, i32
  }
}

</mosaic_0001>

<llo_original>
// kernel: _fine_adjust_compute.1
$region0: #{_fine_adjust_compute.1}
  #allocation0 [shape = 'u32[]', space=smem, size = 0x4, offset = 0x4, fixed_abs, tag = 'smem constant byte address 0x4 - core index']
  #allocation1 [shape = 'u32[144,128]{1,0:T(1,128)}', space=vmem, size = 0x12000, scoped, tag = 'internal scratch']
  %s0 = inlined_call_operand.vmem [shape: bf16[25,16,256], index: 0, kind: input, shape index: {}]
  %s1 = inlined_call_operand.vmem [shape: bf16[256,512], index: 1, kind: input, shape index: {}]
  %s2 = inlined_call_operand.vmem [shape: bf16[512,512], index: 2, kind: input, shape index: {}]
  %s3 = inlined_call_operand.vmem [shape: f32[1,512], index: 3, kind: input, shape index: {}]
  %s4 = inlined_call_operand.vmem [shape: bf16[512,256], index: 4, kind: input, shape index: {}]
  %s5 = inlined_call_operand.vmem [shape: f32[1,256], index: 5, kind: input, shape index: {}]
  %s6 = inlined_call_operand.vmem [shape: bf16[256,256], index: 6, kind: input, shape index: {}]
  %s7 = inlined_call_operand.vmem [shape: f32[1,256], index: 7, kind: input, shape index: {}]
  %s8 = inlined_call_operand.vmem [shape: bf16[256,128], index: 8, kind: input, shape index: {}]
  %s9 = inlined_call_operand.vmem [shape: f32[1,128], index: 9, kind: input, shape index: {}]
  %s10 = inlined_call_operand.vmem [shape: f32[16,128], index: 10, kind: output, shape index: {}]
  %s11 = sld [smem:[#allocation0]]
  $region50: #{_fine_adjust_compute.1} parent=0
    _
  %s13 = ssub.s32 1, %s11
  %s14 = scalar_select 0, %s13, %s11
  // Predicated region
  $region2: #{_fine_adjust_compute.1} parent=0 // pred_check
    _
  $region3: #{_fine_adjust_compute.1} parent=0 // pred_check_branch
    %16 = sbr.rel (0) target = $region5
  $region4: #{_fine_adjust_compute.1} parent=0 // pred_region
    _
  $region5: #{_fine_adjust_compute.1} parent=0 // pred_fallthru
    _
  // Predicated region
  $region6: #{_fine_adjust_compute.1} parent=0 // pred_check
    _
  $region7: #{_fine_adjust_compute.1} parent=0 // pred_check_branch
    %18 = sbr.rel (0) target = $region9
  $region8: #{_fine_adjust_compute.1} parent=0 // pred_region
    _
  $region9: #{_fine_adjust_compute.1} parent=0 // pred_fallthru
    _
  // Predicated region
  $region10: #{_fine_adjust_compute.1} parent=0 // pred_check
    _
  $region11: #{_fine_adjust_compute.1} parent=0 // pred_check_branch
    %20 = sbr.rel (0) target = $region13
  $region12: #{_fine_adjust_compute.1} parent=0 // pred_region
    _
  $region13: #{_fine_adjust_compute.1} parent=0 // pred_fallthru
    _
  // Predicated region
  $region14: #{_fine_adjust_compute.1} parent=0 // pred_check
    _
  $region15: #{_fine_adjust_compute.1} parent=0 // pred_check_branch
    %22 = sbr.rel (0) target = $region17
  $region16: #{_fine_adjust_compute.1} parent=0 // pred_region
    _
  $region17: #{_fine_adjust_compute.1} parent=0 // pred_fallthru
    _
  // Predicated region
  $region18: #{_fine_adjust_compute.1} parent=0 // pred_check
    _
  $region19: #{_fine_adjust_compute.1} parent=0 // pred_check_branch
    %24 = sbr.rel (0) target = $region21
  $region20: #{_fine_adjust_compute.1} parent=0 // pred_region
    _
  $region21: #{_fine_adjust_compute.1} parent=0 // pred_fallthru
    _
  // Predicated region
  $region22: #{_fine_adjust_compute.1} parent=0 // pred_check
    _
  $region23: #{_fine_adjust_compute.1} parent=0 // pred_check_branch
    %26 = sbr.rel (0) target = $region25
  $region24: #{_fine_adjust_compute.1} parent=0 // pred_region
    _
  $region25: #{_fine_adjust_compute.1} parent=0 // pred_fallthru
    _
  // Predicated region
  $region26: #{_fine_adjust_compute.1} parent=0 // pred_check
    _
  $region27: #{_fine_adjust_compute.1} parent=0 // pred_check_branch
    %28 = sbr.rel (0) target = $region29
  $region28: #{_fine_adjust_compute.1} parent=0 // pred_region
    _
  $region29: #{_fine_adjust_compute.1} parent=0 // pred_fallthru
    _
  // Predicated region
  $region30: #{_fine_adjust_compute.1} parent=0 // pred_check
    _
  $region31: #{_fine_adjust_compute.1} parent=0 // pred_check_branch
    %30 = sbr.rel (0) target = $region33
  $region32: #{_fine_adjust_compute.1} parent=0 // pred_region
    _
  $region33: #{_fine_adjust_compute.1} parent=0 // pred_fallthru
    _
  // Predicated region
  $region34: #{_fine_adjust_compute.1} parent=0 // pred_check
    _
  $region35: #{_fine_adjust_compute.1} parent=0 // pred_check_branch
    %32 = sbr.rel (0) target = $region37
  $region36: #{_fine_adjust_compute.1} parent=0 // pred_region
    _
  $region37: #{_fine_adjust_compute.1} parent=0 // pred_fallthru
    _
  // Predicated region
  $region38: #{_fine_adjust_compute.1} parent=0 // pred_check
    _
  $region39: #{_fine_adjust_compute.1} parent=0 // pred_check_branch
    %34 = sbr.rel (0) target = $region41
  $region40: #{_fine_adjust_compute.1} parent=0 // pred_region
    _
  $region41: #{_fine_adjust_compute.1} parent=0 // pred_fallthru
    _
  %v36 = vld [vmem:[%s0] sm:$0xff]
  %v37 = vld [vmem:[%s0 + $0x8] sm:$0xff]
  %v38 = vld [vmem:[%s0 + $0x10] sm:$0xff]
  %v39 = vld [vmem:[%s0 + $0x18] sm:$0xff]
  %v40 = vld [vmem:[%s0 + $0x20] sm:$0xff]
  %v41 = vld [vmem:[%s0 + $0x28] sm:$0xff]
  %v42 = vld [vmem:[%s0 + $0x30] sm:$0xff]
  %v43 = vld [vmem:[%s0 + $0x38] sm:$0xff]
  %v44 = vld [vmem:[%s0 + $0x40] sm:$0xff]
  %v45 = vld [vmem:[%s0 + $0x48] sm:$0xff]
  %v46 = vld [vmem:[%s0 + $0x50] sm:$0xff]
  %v47 = vld [vmem:[%s0 + $0x58] sm:$0xff]
  %v48 = vld [vmem:[%s0 + $0x60] sm:$0xff]
  %v49 = vld [vmem:[%s0 + $0x68] sm:$0xff]
  %v50 = vld [vmem:[%s0 + $0x70] sm:$0xff]
  %v51 = vld [vmem:[%s0 + $0x78] sm:$0xff]
  %v52 = vld [vmem:[%s0 + $0x80] sm:$0xff]
  %v53 = vld [vmem:[%s0 + $0x88] sm:$0xff]
  %v54 = vld [vmem:[%s0 + $0x90] sm:$0xff]
  %v55 = vld [vmem:[%s0 + $0x98] sm:$0xff]
  %v56 = vld [vmem:[%s0 + $0xa0] sm:$0xff]
  %v57 = vld [vmem:[%s0 + $0xa8] sm:$0xff]
  %v58 = vld [vmem:[%s0 + $0xb0] sm:$0xff]
  %v59 = vld [vmem:[%s0 + $0xb8] sm:$0xff]
  %v60 = vld [vmem:[%s0 + $0xc0] sm:$0xff]
  %v61 = vld [vmem:[%s0 + $0xc8] sm:$0xff]
  %v62 = vld [vmem:[%s0 + $0xd0] sm:$0xff]
  %v63 = vld [vmem:[%s0 + $0xd8] sm:$0xff]
  %v64 = vld [vmem:[%s0 + $0xe0] sm:$0xff]
  %v65 = vld [vmem:[%s0 + $0xe8] sm:$0xff]
  %v66 = vld [vmem:[%s0 + $0xf0] sm:$0xff]
  %v67 = vld [vmem:[%s0 + $0xf8] sm:$0xff]
  %v68 = vld [vmem:[%s0 + $0x100] sm:$0xff]
  %v69 = vld [vmem:[%s0 + $0x108] sm:$0xff]
  %v70 = vld [vmem:[%s0 + $0x110] sm:$0xff]
  %v71 = vld [vmem:[%s0 + $0x118] sm:$0xff]
  %v72 = vld [vmem:[%s0 + $0x120] sm:$0xff]
  %v73 = vld [vmem:[%s0 + $0x128] sm:$0xff]
  %v74 = vld [vmem:[%s0 + $0x130] sm:$0xff]
  %v75 = vld [vmem:[%s0 + $0x138] sm:$0xff]
  %v76 = vld [vmem:[%s0 + $0x140] sm:$0xff]
  %v77 = vld [vmem:[%s0 + $0x148] sm:$0xff]
  %v78 = vld [vmem:[%s0 + $0x150] sm:$0xff]
  %v79 = vld [vmem:[%s0 + $0x158] sm:$0xff]
  %v80 = vld [vmem:[%s0 + $0x160] sm:$0xff]
  %v81 = vld [vmem:[%s0 + $0x168] sm:$0xff]
  %v82 = vld [vmem:[%s0 + $0x170] sm:$0xff]
  %v83 = vld [vmem:[%s0 + $0x178] sm:$0xff]
  %v84 = vld [vmem:[%s0 + $0x180] sm:$0xff]
  %v85 = vld [vmem:[%s0 + $0x188] sm:$0xff]
  %v86 = vld [vmem:[%s1] sm:$0xff]
  %v87 = vld [vmem:[%s1 + $0x8] sm:$0xff]
  %v88 = vld [vmem:[%s1 + $0x10] sm:$0xff]
  %v89 = vld [vmem:[%s1 + $0x18] sm:$0xff]
  %v90 = vld [vmem:[%s1 + $0x20] sm:$0xff]
  %v91 = vld [vmem:[%s1 + $0x28] sm:$0xff]
  %v92 = vld [vmem:[%s1 + $0x30] sm:$0xff]
  %v93 = vld [vmem:[%s1 + $0x38] sm:$0xff]
  %v94 = vld [vmem:[%s1 + $0x40] sm:$0xff]
  %v95 = vld [vmem:[%s1 + $0x48] sm:$0xff]
  %v96 = vld [vmem:[%s1 + $0x50] sm:$0xff]
  %v97 = vld [vmem:[%s1 + $0x58] sm:$0xff]
  %v98 = vld [vmem:[%s1 + $0x60] sm:$0xff]
  %v99 = vld [vmem:[%s1 + $0x68] sm:$0xff]
  %v100 = vld [vmem:[%s1 + $0x70] sm:$0xff]
  %v101 = vld [vmem:[%s1 + $0x78] sm:$0xff]
  %v102 = vld [vmem:[%s1 + $0x80] sm:$0xff]
  %v103 = vld [vmem:[%s1 + $0x88] sm:$0xff]
  %v104 = vld [vmem:[%s1 + $0x90] sm:$0xff]
  %v105 = vld [vmem:[%s1 + $0x98] sm:$0xff]
  %v106 = vld [vmem:[%s1 + $0xa0] sm:$0xff]
  %v107 = vld [vmem:[%s1 + $0xa8] sm:$0xff]
  %v108 = vld [vmem:[%s1 + $0xb0] sm:$0xff]
  %v109 = vld [vmem:[%s1 + $0xb8] sm:$0xff]
  %v110 = vld [vmem:[%s1 + $0xc0] sm:$0xff]
  %v111 = vld [vmem:[%s1 + $0xc8] sm:$0xff]
  %v112 = vld [vmem:[%s1 + $0xd0] sm:$0xff]
  %v113 = vld [vmem:[%s1 + $0xd8] sm:$0xff]
  %v114 = vld [vmem:[%s1 + $0xe0] sm:$0xff]
  %v115 = vld [vmem:[%s1 + $0xe8] sm:$0xff]
  %v116 = vld [vmem:[%s1 + $0xf0] sm:$0xff]
  %v117 = vld [vmem:[%s1 + $0xf8] sm:$0xff]
  %v118 = vld [vmem:[%s1 + $0x100] sm:$0xff]
  %v119 = vld [vmem:[%s1 + $0x108] sm:$0xff]
  %v120 = vld [vmem:[%s1 + $0x110] sm:$0xff]
  %v121 = vld [vmem:[%s1 + $0x118] sm:$0xff]
  %v122 = vld [vmem:[%s1 + $0x120] sm:$0xff]
  %v123 = vld [vmem:[%s1 + $0x128] sm:$0xff]
  %v124 = vld [vmem:[%s1 + $0x130] sm:$0xff]
  %v125 = vld [vmem:[%s1 + $0x138] sm:$0xff]
  %v126 = vld [vmem:[%s1 + $0x140] sm:$0xff]
  %v127 = vld [vmem:[%s1 + $0x148] sm:$0xff]
  %v128 = vld [vmem:[%s1 + $0x150] sm:$0xff]
  %v129 = vld [vmem:[%s1 + $0x158] sm:$0xff]
  %v130 = vld [vmem:[%s1 + $0x160] sm:$0xff]
  %v131 = vld [vmem:[%s1 + $0x168] sm:$0xff]
  %v132 = vld [vmem:[%s1 + $0x170] sm:$0xff]
  %v133 = vld [vmem:[%s1 + $0x178] sm:$0xff]
  %v134 = vld [vmem:[%s1 + $0x180] sm:$0xff]
  %v135 = vld [vmem:[%s1 + $0x188] sm:$0xff]
  %v136 = vld [vmem:[%s1 + $0x190] sm:$0xff]
  %v137 = vld [vmem:[%s1 + $0x198] sm:$0xff]
  %v138 = vld [vmem:[%s1 + $0x1a0] sm:$0xff]
  %v139 = vld [vmem:[%s1 + $0x1a8] sm:$0xff]
  %v140 = vld [vmem:[%s1 + $0x1b0] sm:$0xff]
  %v141 = vld [vmem:[%s1 + $0x1b8] sm:$0xff]
  %v142 = vld [vmem:[%s1 + $0x1c0] sm:$0xff]
  %v143 = vld [vmem:[%s1 + $0x1c8] sm:$0xff]
  %v144 = vld [vmem:[%s1 + $0x1d0] sm:$0xff]
  %v145 = vld [vmem:[%s1 + $0x1d8] sm:$0xff]
  %v146 = vld [vmem:[%s1 + $0x1e0] sm:$0xff]
  %v147 = vld [vmem:[%s1 + $0x1e8] sm:$0xff]
  %v148 = vld [vmem:[%s1 + $0x1f0] sm:$0xff]
  %v149 = vld [vmem:[%s1 + $0x1f8] sm:$0xff]
  %v200 = vunpack.c.l.b16 %v36
  %v201 = vunpack.c.h.b16 %v36
  %v202 = vunpack.c.l.b16 %v37
  %v203 = vunpack.c.h.b16 %v37
  %v204 = vunpack.c.l.b16 %v38
  %v205 = vunpack.c.h.b16 %v38
  %v206 = vunpack.c.l.b16 %v39
  %v207 = vunpack.c.h.b16 %v39
  %v208 = vunpack.c.l.b16 %v40
  %v209 = vunpack.c.h.b16 %v40
  %v210 = vunpack.c.l.b16 %v41
  %v211 = vunpack.c.h.b16 %v41
  %v212 = vunpack.c.l.b16 %v42
  %v213 = vunpack.c.h.b16 %v42
  %v214 = vunpack.c.l.b16 %v43
  %v215 = vunpack.c.h.b16 %v43
  %v216 = vunpack.c.l.b16 %v44
  %v217 = vunpack.c.h.b16 %v44
  %v218 = vunpack.c.l.b16 %v45
  %v219 = vunpack.c.h.b16 %v45
  %v220 = vunpack.c.l.b16 %v46
  %v221 = vunpack.c.h.b16 %v46
  %v222 = vunpack.c.l.b16 %v47
  %v223 = vunpack.c.h.b16 %v47
  %v224 = vunpack.c.l.b16 %v48
  %v225 = vunpack.c.h.b16 %v48
  %v226 = vunpack.c.l.b16 %v49
  %v227 = vunpack.c.h.b16 %v49
  %v228 = vunpack.c.l.b16 %v50
  %v229 = vunpack.c.h.b16 %v50
  %v230 = vunpack.c.l.b16 %v51
  %v231 = vunpack.c.h.b16 %v51
  %v232 = vunpack.c.l.b16 %v52
  %v233 = vunpack.c.h.b16 %v52
  %v234 = vunpack.c.l.b16 %v53
  %v235 = vunpack.c.h.b16 %v53
  %v236 = vunpack.c.l.b16 %v54
  %v237 = vunpack.c.h.b16 %v54
  %v238 = vunpack.c.l.b16 %v55
  %v239 = vunpack.c.h.b16 %v55
  %v240 = vunpack.c.l.b16 %v56
  %v241 = vunpack.c.h.b16 %v56
  %v242 = vunpack.c.l.b16 %v57
  %v243 = vunpack.c.h.b16 %v57
  %v244 = vunpack.c.l.b16 %v58
  %v245 = vunpack.c.h.b16 %v58
  %v246 = vunpack.c.l.b16 %v59
  %v247 = vunpack.c.h.b16 %v59
  %v248 = vunpack.c.l.b16 %v60
  %v249 = vunpack.c.h.b16 %v60
  %v250 = vunpack.c.l.b16 %v61
  %v251 = vunpack.c.h.b16 %v61
  %v252 = vunpack.c.l.b16 %v62
  %v253 = vunpack.c.h.b16 %v62
  %v254 = vunpack.c.l.b16 %v63
  %v255 = vunpack.c.h.b16 %v63
  %v256 = vunpack.c.l.b16 %v64
  %v257 = vunpack.c.h.b16 %v64
  %v258 = vunpack.c.l.b16 %v65
  %v259 = vunpack.c.h.b16 %v65
  %v260 = vunpack.c.l.b16 %v66
  %v261 = vunpack.c.h.b16 %v66
  %v262 = vunpack.c.l.b16 %v67
  %v263 = vunpack.c.h.b16 %v67
  %v264 = vunpack.c.l.b16 %v68
  %v265 = vunpack.c.h.b16 %v68
  %v266 = vunpack.c.l.b16 %v69
  %v267 = vunpack.c.h.b16 %v69
  %v268 = vunpack.c.l.b16 %v70
  %v269 = vunpack.c.h.b16 %v70
  %v270 = vunpack.c.l.b16 %v71
  %v271 = vunpack.c.h.b16 %v71
  %v272 = vunpack.c.l.b16 %v72
  %v273 = vunpack.c.h.b16 %v72
  %v274 = vunpack.c.l.b16 %v73
  %v275 = vunpack.c.h.b16 %v73
  %v276 = vunpack.c.l.b16 %v74
  %v277 = vunpack.c.h.b16 %v74
  %v278 = vunpack.c.l.b16 %v75
  %v279 = vunpack.c.h.b16 %v75
  %v280 = vunpack.c.l.b16 %v76
  %v281 = vunpack.c.h.b16 %v76
  %v282 = vunpack.c.l.b16 %v77
  %v283 = vunpack.c.h.b16 %v77
  %v284 = vunpack.c.l.b16 %v78
  %v285 = vunpack.c.h.b16 %v78
  %v286 = vunpack.c.l.b16 %v79
  %v287 = vunpack.c.h.b16 %v79
  %v288 = vunpack.c.l.b16 %v80
  %v289 = vunpack.c.h.b16 %v80
  %v290 = vunpack.c.l.b16 %v81
  %v291 = vunpack.c.h.b16 %v81
  %v292 = vunpack.c.l.b16 %v82
  %v293 = vunpack.c.h.b16 %v82
  %v294 = vunpack.c.l.b16 %v83
  %v295 = vunpack.c.h.b16 %v83
  %v296 = vunpack.c.l.b16 %v84
  %v297 = vunpack.c.h.b16 %v84
  %v298 = vunpack.c.l.b16 %v85
  %v299 = vunpack.c.h.b16 %v85
  %v300 = vpack.c.b16 %v202, %v200
  %v301 = vpack.c.b16 %v203, %v201
  %v302 = vpack.c.b16 %v206, %v204
  %v303 = vpack.c.b16 %v207, %v205
  %v304 = vpack.c.b16 %v210, %v208
  %v305 = vpack.c.b16 %v211, %v209
  %v306 = vpack.c.b16 %v214, %v212
  %v307 = vpack.c.b16 %v215, %v213
  %v308 = vpack.c.b16 %v218, %v216
  %v309 = vpack.c.b16 %v219, %v217
  %v310 = vpack.c.b16 %v222, %v220
  %v311 = vpack.c.b16 %v223, %v221
  %v312 = vpack.c.b16 %v226, %v224
  %v313 = vpack.c.b16 %v227, %v225
  %v314 = vpack.c.b16 %v230, %v228
  %v315 = vpack.c.b16 %v231, %v229
  %v316 = vpack.c.b16 %v234, %v232
  %v317 = vpack.c.b16 %v235, %v233
  %v318 = vpack.c.b16 %v238, %v236
  %v319 = vpack.c.b16 %v239, %v237
  %v320 = vpack.c.b16 %v242, %v240
  %v321 = vpack.c.b16 %v243, %v241
  %v322 = vpack.c.b16 %v246, %v244
  %v323 = vpack.c.b16 %v247, %v245
  %v324 = vpack.c.b16 %v250, %v248
  %v325 = vpack.c.b16 %v251, %v249
  %v326 = vpack.c.b16 %v254, %v252
  %v327 = vpack.c.b16 %v255, %v253
  %v328 = vpack.c.b16 %v258, %v256
  %v329 = vpack.c.b16 %v259, %v257
  %v330 = vpack.c.b16 %v262, %v260
  %v331 = vpack.c.b16 %v263, %v261
  %v332 = vpack.c.b16 %v266, %v264
  %v333 = vpack.c.b16 %v267, %v265
  %v334 = vpack.c.b16 %v270, %v268
  %v335 = vpack.c.b16 %v271, %v269
  %v336 = vpack.c.b16 %v274, %v272
  %v337 = vpack.c.b16 %v275, %v273
  %v338 = vpack.c.b16 %v278, %v276
  %v339 = vpack.c.b16 %v279, %v277
  %v340 = vpack.c.b16 %v282, %v280
  %v341 = vpack.c.b16 %v283, %v281
  %v342 = vpack.c.b16 %v286, %v284
  %v343 = vpack.c.b16 %v287, %v285
  %v344 = vpack.c.b16 %v290, %v288
  %v345 = vpack.c.b16 %v291, %v289
  %v346 = vpack.c.b16 %v294, %v292
  %v347 = vpack.c.b16 %v295, %v293
  %v348 = vpack.c.b16 %v298, %v296
  %v349 = vpack.c.b16 %v299, %v297
  %v464 = vunpack.c.l.b16 %v86
  %v465 = vunpack.c.h.b16 %v86
  %v466 = vunpack.c.l.b16 %v87
  %v467 = vunpack.c.h.b16 %v87
  %v468 = vunpack.c.l.b16 %v88
  %v469 = vunpack.c.h.b16 %v88
  %v470 = vunpack.c.l.b16 %v89
  %v471 = vunpack.c.h.b16 %v89
  %v472 = vunpack.c.l.b16 %v90
  %v473 = vunpack.c.h.b16 %v90
  %v474 = vunpack.c.l.b16 %v91
  %v475 = vunpack.c.h.b16 %v91
  %v476 = vunpack.c.l.b16 %v92
  %v477 = vunpack.c.h.b16 %v92
  %v478 = vunpack.c.l.b16 %v93
  %v479 = vunpack.c.h.b16 %v93
  %v480 = vunpack.c.l.b16 %v94
  %v481 = vunpack.c.h.b16 %v94
  %v482 = vunpack.c.l.b16 %v95
  %v483 = vunpack.c.h.b16 %v95
  %v484 = vunpack.c.l.b16 %v96
  %v485 = vunpack.c.h.b16 %v96
  %v486 = vunpack.c.l.b16 %v97
  %v487 = vunpack.c.h.b16 %v97
  %v488 = vunpack.c.l.b16 %v98
  %v489 = vunpack.c.h.b16 %v98
  %v490 = vunpack.c.l.b16 %v99
  %v491 = vunpack.c.h.b16 %v99
  %v492 = vunpack.c.l.b16 %v100
  %v493 = vunpack.c.h.b16 %v100
  %v494 = vunpack.c.l.b16 %v101
  %v495 = vunpack.c.h.b16 %v101
  %v496 = vunpack.c.l.b16 %v102
  %v497 = vunpack.c.h.b16 %v102
  %v498 = vunpack.c.l.b16 %v103
  %v499 = vunpack.c.h.b16 %v103
  %v500 = vunpack.c.l.b16 %v104
  %v501 = vunpack.c.h.b16 %v104
  %v502 = vunpack.c.l.b16 %v105
  %v503 = vunpack.c.h.b16 %v105
  %v504 = vunpack.c.l.b16 %v106
  %v505 = vunpack.c.h.b16 %v106
  %v506 = vunpack.c.l.b16 %v107
  %v507 = vunpack.c.h.b16 %v107
  %v508 = vunpack.c.l.b16 %v108
  %v509 = vunpack.c.h.b16 %v108
  %v510 = vunpack.c.l.b16 %v109
  %v511 = vunpack.c.h.b16 %v109
  %v512 = vunpack.c.l.b16 %v110
  %v513 = vunpack.c.h.b16 %v110
  %v514 = vunpack.c.l.b16 %v111
  %v515 = vunpack.c.h.b16 %v111
  %v516 = vunpack.c.l.b16 %v112
  %v517 = vunpack.c.h.b16 %v112
  %v518 = vunpack.c.l.b16 %v113
  %v519 = vunpack.c.h.b16 %v113
  %v520 = vunpack.c.l.b16 %v114
  %v521 = vunpack.c.h.b16 %v114
  %v522 = vunpack.c.l.b16 %v115
  %v523 = vunpack.c.h.b16 %v115
  %v524 = vunpack.c.l.b16 %v116
  %v525 = vunpack.c.h.b16 %v116
  %v526 = vunpack.c.l.b16 %v117
  %v527 = vunpack.c.h.b16 %v117
  %v528 = vunpack.c.l.b16 %v118
  %v529 = vunpack.c.h.b16 %v118
  %v530 = vunpack.c.l.b16 %v119
  %v531 = vunpack.c.h.b16 %v119
  %v532 = vunpack.c.l.b16 %v120
  %v533 = vunpack.c.h.b16 %v120
  %v534 = vunpack.c.l.b16 %v121
  %v535 = vunpack.c.h.b16 %v121
  %v536 = vunpack.c.l.b16 %v122
  %v537 = vunpack.c.h.b16 %v122
  %v538 = vunpack.c.l.b16 %v123
  %v539 = vunpack.c.h.b16 %v123
  %v540 = vunpack.c.l.b16 %v124
  %v541 = vunpack.c.h.b16 %v124
  %v542 = vunpack.c.l.b16 %v125
  %v543 = vunpack.c.h.b16 %v125
  %v544 = vunpack.c.l.b16 %v126
  %v545 = vunpack.c.h.b16 %v126
  %v546 = vunpack.c.l.b16 %v127
  %v547 = vunpack.c.h.b16 %v127
  %v548 = vunpack.c.l.b16 %v128
  %v549 = vunpack.c.h.b16 %v128
  %v550 = vunpack.c.l.b16 %v129
  %v551 = vunpack.c.h.b16 %v129
  %v552 = vunpack.c.l.b16 %v130
  %v553 = vunpack.c.h.b16 %v130
  %v554 = vunpack.c.l.b16 %v131
  %v555 = vunpack.c.h.b16 %v131
  %v556 = vunpack.c.l.b16 %v132
  %v557 = vunpack.c.h.b16 %v132
  %v558 = vunpack.c.l.b16 %v133
  %v559 = vunpack.c.h.b16 %v133
  %v560 = vunpack.c.l.b16 %v134
  %v561 = vunpack.c.h.b16 %v134
  %v562 = vunpack.c.l.b16 %v135
  %v563 = vunpack.c.h.b16 %v135
  %v564 = vunpack.c.l.b16 %v136
  %v565 = vunpack.c.h.b16 %v136
  %v566 = vunpack.c.l.b16 %v137
  %v567 = vunpack.c.h.b16 %v137
  %v568 = vunpack.c.l.b16 %v138
  %v569 = vunpack.c.h.b16 %v138
  %v570 = vunpack.c.l.b16 %v139
  %v571 = vunpack.c.h.b16 %v139
  %v572 = vunpack.c.l.b16 %v140
  %v573 = vunpack.c.h.b16 %v140
  %v574 = vunpack.c.l.b16 %v141
  %v575 = vunpack.c.h.b16 %v141
  %v576 = vunpack.c.l.b16 %v142
  %v577 = vunpack.c.h.b16 %v142
  %v578 = vunpack.c.l.b16 %v143
  %v579 = vunpack.c.h.b16 %v143
  %v580 = vunpack.c.l.b16 %v144
  %v581 = vunpack.c.h.b16 %v144
  %v582 = vunpack.c.l.b16 %v145
  %v583 = vunpack.c.h.b16 %v145
  %v584 = vunpack.c.l.b16 %v146
  %v585 = vunpack.c.h.b16 %v146
  %v586 = vunpack.c.l.b16 %v147
  %v587 = vunpack.c.h.b16 %v147
  %v588 = vunpack.c.l.b16 %v148
  %v589 = vunpack.c.h.b16 %v148
  %v590 = vunpack.c.l.b16 %v149
  %v591 = vunpack.c.h.b16 %v149
  %v592 = vpack.c.b16 %v468, %v464
  %v593 = vpack.c.b16 %v469, %v465
  %v594 = vpack.c.b16 %v470, %v466
  %v595 = vpack.c.b16 %v471, %v467
  %v596 = vpack.c.b16 %v476, %v472
  %v597 = vpack.c.b16 %v477, %v473
  %v598 = vpack.c.b16 %v478, %v474
  %v599 = vpack.c.b16 %v479, %v475
  %v600 = vpack.c.b16 %v484, %v480
  %v601 = vpack.c.b16 %v485, %v481
  %v602 = vpack.c.b16 %v486, %v482
  %v603 = vpack.c.b16 %v487, %v483
  %v604 = vpack.c.b16 %v492, %v488
  %v605 = vpack.c.b16 %v493, %v489
  %v606 = vpack.c.b16 %v494, %v490
  %v607 = vpack.c.b16 %v495, %v491
  %v608 = vpack.c.b16 %v500, %v496
  %v609 = vpack.c.b16 %v501, %v497
  %v610 = vpack.c.b16 %v502, %v498
  %v611 = vpack.c.b16 %v503, %v499
  %v612 = vpack.c.b16 %v508, %v504
  %v613 = vpack.c.b16 %v509, %v505
  %v614 = vpack.c.b16 %v510, %v506
  %v615 = vpack.c.b16 %v511, %v507
  %v616 = vpack.c.b16 %v516, %v512
  %v617 = vpack.c.b16 %v517, %v513
  %v618 = vpack.c.b16 %v518, %v514
  %v619 = vpack.c.b16 %v519, %v515
  %v620 = vpack.c.b16 %v524, %v520
  %v621 = vpack.c.b16 %v525, %v521
  %v622 = vpack.c.b16 %v526, %v522
  %v623 = vpack.c.b16 %v527, %v523
  %v624 = vpack.c.b16 %v532, %v528
  %v625 = vpack.c.b16 %v533, %v529
  %v626 = vpack.c.b16 %v534, %v530
  %v627 = vpack.c.b16 %v535, %v531
  %v628 = vpack.c.b16 %v540, %v536
  %v629 = vpack.c.b16 %v541, %v537
  %v630 = vpack.c.b16 %v542, %v538
  %v631 = vpack.c.b16 %v543, %v539
  %v632 = vpack.c.b16 %v548, %v544
  %v633 = vpack.c.b16 %v549, %v545
  %v634 = vpack.c.b16 %v550, %v546
  %v635 = vpack.c.b16 %v551, %v547
  %v636 = vpack.c.b16 %v556, %v552
  %v637 = vpack.c.b16 %v557, %v553
  %v638 = vpack.c.b16 %v558, %v554
  %v639 = vpack.c.b16 %v559, %v555
  %v640 = vpack.c.b16 %v564, %v560
  %v641 = vpack.c.b16 %v565, %v561
  %v642 = vpack.c.b16 %v566, %v562
  %v643 = vpack.c.b16 %v567, %v563
  %v644 = vpack.c.b16 %v572, %v568
  %v645 = vpack.c.b16 %v573, %v569
  %v646 = vpack.c.b16 %v574, %v570
  %v647 = vpack.c.b16 %v575, %v571
  %v648 = vpack.c.b16 %v580, %v576
  %v649 = vpack.c.b16 %v581, %v577
  %v650 = vpack.c.b16 %v582, %v578
  %v651 = vpack.c.b16 %v583, %v579
  %v652 = vpack.c.b16 %v588, %v584
  %v653 = vpack.c.b16 %v589, %v585
  %v654 = vpack.c.b16 %v590, %v586
  %v655 = vpack.c.b16 %v591, %v587
  %720 = vmatprep.subr.bf16.mxu0 %v621
  %721 = vmatpush1.bf16.msra.mxu0 %v620
  %722 = vmatprep.subr.bf16.mxu0 %v617
  %723 = vmatpush1.bf16.msra.mxu0 %v616
  %724 = vmatprep.subr.bf16.mxu0 %v613
  %725 = vmatpush1.bf16.msra.mxu0 %v612
  %726 = vmatprep.subr.bf16.mxu0 %v609
  %727 = vmatpush1.bf16.msra.mxu0 %v608
  %728 = vmatprep.subr.bf16.mxu0 %v605
  %729 = vmatpush1.bf16.msra.mxu0 %v604
  %730 = vmatprep.subr.bf16.mxu0 %v601
  %731 = vmatpush1.bf16.msra.mxu0 %v600
  %732 = vmatprep.subr.bf16.mxu0 %v597
  %733 = vmatpush1.bf16.msra.mxu0 %v596
  %734 = vmatprep.subr.bf16.mxu0 %v593
  %735 = vmatpush1.bf16.msra.mxu0 %v592
  %736 = vmatprep.subr.bf16.mxu0 %v653
  %737 = vmatpush2.bf16.msra.mxu0 %v652
  %738 = vmatprep.subr.bf16.mxu0 %v649
  %739 = vmatpush2.bf16.msra.mxu0 %v648
  %740 = vmatprep.subr.bf16.mxu0 %v645
  %741 = vmatpush2.bf16.msra.mxu0 %v644
  %742 = vmatprep.subr.bf16.mxu0 %v641
  %743 = vmatpush2.bf16.msra.mxu0 %v640
  %744 = vmatprep.subr.bf16.mxu0 %v637
  %745 = vmatpush2.bf16.msra.mxu0 %v636
  %746 = vmatprep.subr.bf16.mxu0 %v633
  %747 = vmatpush2.bf16.msra.mxu0 %v632
  %748 = vmatprep.subr.bf16.mxu0 %v629
  %749 = vmatpush2.bf16.msra.mxu0 %v628
  %750 = vmatprep.subr.bf16.mxu0 %v625
  %751 = vmatpush2.bf16.msra.mxu0 %v624
  %752 = vmatprep.mubr.bf16.mxu0 %v301
  %753 = vmatmul.mubr.bf16.gmra.mxu0 %v300
  %v754 = vpop.f32.mrf.mxu0
  %v755 = vadd.f32 0.0, %v754
  %v756 = vpop.f32.mrf.mxu0
  %v757 = vadd.f32 0.0, %v756
  %v758 = vpop.f32.mrf.mxu0
  %v759 = vadd.f32 0.0, %v758
  %v760 = vpop.f32.mrf.mxu0
  %v761 = vadd.f32 0.0, %v760
  %762 = vmatprep.mubr.bf16.mxu0 %v303
  %763 = vmatmul.mubr.bf16.gmra.mxu0 %v302
  %v764 = vpop.f32.mrf.mxu0
  %v765 = vadd.f32 0.0, %v764
  %v766 = vpop.f32.mrf.mxu0
  %v767 = vadd.f32 0.0, %v766
  %v768 = vpop.f32.mrf.mxu0
  %v769 = vadd.f32 0.0, %v768
  %v770 = vpop.f32.mrf.mxu0
  %v771 = vadd.f32 0.0, %v770
  %772 = vmatprep.mubr.bf16.mxu0 %v305
  %773 = vmatmul.mubr.bf16.gmra.mxu0 %v304
  %v774 = vpop.f32.mrf.mxu0
  %v775 = vadd.f32 0.0, %v774
  %v776 = vpop.f32.mrf.mxu0
  %v777 = vadd.f32 0.0, %v776
  %v778 = vpop.f32.mrf.mxu0
  %v779 = vadd.f32 0.0, %v778
  %v780 = vpop.f32.mrf.mxu0
  %v781 = vadd.f32 0.0, %v780
  %782 = vmatprep.mubr.bf16.mxu0 %v307
  %783 = vmatmul.mubr.bf16.gmra.mxu0 %v306
  %v784 = vpop.f32.mrf.mxu0
  %v785 = vadd.f32 0.0, %v784
  %v786 = vpop.f32.mrf.mxu0
  %v787 = vadd.f32 0.0, %v786
  %v788 = vpop.f32.mrf.mxu0
  %v789 = vadd.f32 0.0, %v788
  %v790 = vpop.f32.mrf.mxu0
  %v791 = vadd.f32 0.0, %v790
  %792 = vmatprep.mubr.bf16.mxu0 %v309
  %793 = vmatmul.mubr.bf16.gmra.mxu0 %v308
  %v794 = vpop.f32.mrf.mxu0
  %v795 = vadd.f32 0.0, %v794
  %v796 = vpop.f32.mrf.mxu0
  %v797 = vadd.f32 0.0, %v796
  %v798 = vpop.f32.mrf.mxu0
  %v799 = vadd.f32 0.0, %v798
  %v800 = vpop.f32.mrf.mxu0
  %v801 = vadd.f32 0.0, %v800
  %802 = vmatprep.mubr.bf16.mxu0 %v311
  %803 = vmatmul.mubr.bf16.gmra.mxu0 %v310
  %v804 = vpop.f32.mrf.mxu0
  %v805 = vadd.f32 0.0, %v804
  %v806 = vpop.f32.mrf.mxu0
  %v807 = vadd.f32 0.0, %v806
  %v808 = vpop.f32.mrf.mxu0
  %v809 = vadd.f32 0.0, %v808
  %v810 = vpop.f32.mrf.mxu0
  %v811 = vadd.f32 0.0, %v810
  %812 = vmatprep.mubr.bf16.mxu0 %v313
  %813 = vmatmul.mubr.bf16.gmra.mxu0 %v312
  %v814 = vpop.f32.mrf.mxu0
  %v815 = vadd.f32 0.0, %v814
  %v816 = vpop.f32.mrf.mxu0
  %v817 = vadd.f32 0.0, %v816
  %v818 = vpop.f32.mrf.mxu0
  %v819 = vadd.f32 0.0, %v818
  %v820 = vpop.f32.mrf.mxu0
  %v821 = vadd.f32 0.0, %v820
  %822 = vmatprep.mubr.bf16.mxu0 %v315
  %823 = vmatmul.mubr.bf16.gmra.mxu0 %v314
  %v824 = vpop.f32.mrf.mxu0
  %v825 = vadd.f32 0.0, %v824
  %v826 = vpop.f32.mrf.mxu0
  %v827 = vadd.f32 0.0, %v826
  %v828 = vpop.f32.mrf.mxu0
  %v829 = vadd.f32 0.0, %v828
  %v830 = vpop.f32.mrf.mxu0
  %v831 = vadd.f32 0.0, %v830
  %832 = vmatprep.mubr.bf16.mxu0 %v317
  %833 = vmatmul.mubr.bf16.gmra.mxu0 %v316
  %v834 = vpop.f32.mrf.mxu0
  %v835 = vadd.f32 0.0, %v834
  %v836 = vpop.f32.mrf.mxu0
  %v837 = vadd.f32 0.0, %v836
  %v838 = vpop.f32.mrf.mxu0
  %v839 = vadd.f32 0.0, %v838
  %v840 = vpop.f32.mrf.mxu0
  %v841 = vadd.f32 0.0, %v840
  %842 = vmatprep.mubr.bf16.mxu0 %v319
  %843 = vmatmul.mubr.bf16.gmra.mxu0 %v318
  %v844 = vpop.f32.mrf.mxu0
  %v845 = vadd.f32 0.0, %v844
  %v846 = vpop.f32.mrf.mxu0
  %v847 = vadd.f32 0.0, %v846
  %v848 = vpop.f32.mrf.mxu0
  %v849 = vadd.f32 0.0, %v848
  %v850 = vpop.f32.mrf.mxu0
  %v851 = vadd.f32 0.0, %v850
  %852 = vmatprep.mubr.bf16.mxu0 %v321
  %853 = vmatmul.mubr.bf16.gmra.mxu0 %v320
  %v854 = vpop.f32.mrf.mxu0
  %v855 = vadd.f32 0.0, %v854
  %v856 = vpop.f32.mrf.mxu0
  %v857 = vadd.f32 0.0, %v856
  %v858 = vpop.f32.mrf.mxu0
  %v859 = vadd.f32 0.0, %v858
  %v860 = vpop.f32.mrf.mxu0
  %v861 = vadd.f32 0.0, %v860
  %862 = vmatprep.mubr.bf16.mxu0 %v323
  %863 = vmatmul.mubr.bf16.gmra.mxu0 %v322
  %v864 = vpop.f32.mrf.mxu0
  %v865 = vadd.f32 0.0, %v864
  %v866 = vpop.f32.mrf.mxu0
  %v867 = vadd.f32 0.0, %v866
  %v868 = vpop.f32.mrf.mxu0
  %v869 = vadd.f32 0.0, %v868
  %v870 = vpop.f32.mrf.mxu0
  %v871 = vadd.f32 0.0, %v870
  %872 = vmatprep.mubr.bf16.mxu0 %v325
  %873 = vmatmul.mubr.bf16.gmra.mxu0 %v324
  %v874 = vpop.f32.mrf.mxu0
  %v875 = vadd.f32 0.0, %v874
  %v876 = vpop.f32.mrf.mxu0
  %v877 = vadd.f32 0.0, %v876
  %v878 = vpop.f32.mrf.mxu0
  %v879 = vadd.f32 0.0, %v878
  %v880 = vpop.f32.mrf.mxu0
  %v881 = vadd.f32 0.0, %v880
  %882 = vmatprep.mubr.bf16.mxu0 %v327
  %883 = vmatmul.mubr.bf16.gmra.mxu0 %v326
  %v884 = vpop.f32.mrf.mxu0
  %v885 = vadd.f32 0.0, %v884
  %v886 = vpop.f32.mrf.mxu0
  %v887 = vadd.f32 0.0, %v886
  %v888 = vpop.f32.mrf.mxu0
  %v889 = vadd.f32 0.0, %v888
  %v890 = vpop.f32.mrf.mxu0
  %v891 = vadd.f32 0.0, %v890
  %892 = vmatprep.mubr.bf16.mxu0 %v329
  %893 = vmatmul.mubr.bf16.gmra.mxu0 %v328
  %v894 = vpop.f32.mrf.mxu0
  %v895 = vadd.f32 0.0, %v894
  %v896 = vpop.f32.mrf.mxu0
  %v897 = vadd.f32 0.0, %v896
  %v898 = vpop.f32.mrf.mxu0
  %v899 = vadd.f32 0.0, %v898
  %v900 = vpop.f32.mrf.mxu0
  %v901 = vadd.f32 0.0, %v900
  %902 = vmatprep.mubr.bf16.mxu0 %v331
  %903 = vmatmul.mubr.bf16.gmra.mxu0 %v330
  %v904 = vpop.f32.mrf.mxu0
  %v905 = vadd.f32 0.0, %v904
  %v906 = vpop.f32.mrf.mxu0
  %v907 = vadd.f32 0.0, %v906
  %v908 = vpop.f32.mrf.mxu0
  %v909 = vadd.f32 0.0, %v908
  %v910 = vpop.f32.mrf.mxu0
  %v911 = vadd.f32 0.0, %v910
  %912 = vmatprep.mubr.bf16.mxu0 %v333
  %913 = vmatmul.mubr.bf16.gmra.mxu0 %v332
  %v914 = vpop.f32.mrf.mxu0
  %v915 = vadd.f32 0.0, %v914
  %v916 = vpop.f32.mrf.mxu0
  %v917 = vadd.f32 0.0, %v916
  %v918 = vpop.f32.mrf.mxu0
  %v919 = vadd.f32 0.0, %v918
  %v920 = vpop.f32.mrf.mxu0
  %v921 = vadd.f32 0.0, %v920
  %922 = vmatprep.mubr.bf16.mxu0 %v335
  %923 = vmatmul.mubr.bf16.gmra.mxu0 %v334
  %v924 = vpop.f32.mrf.mxu0
  %v925 = vadd.f32 0.0, %v924
  %v926 = vpop.f32.mrf.mxu0
  %v927 = vadd.f32 0.0, %v926
  %v928 = vpop.f32.mrf.mxu0
  %v929 = vadd.f32 0.0, %v928
  %v930 = vpop.f32.mrf.mxu0
  %v931 = vadd.f32 0.0, %v930
  %932 = vmatprep.mubr.bf16.mxu0 %v337
  %933 = vmatmul.mubr.bf16.gmra.mxu0 %v336
  %v934 = vpop.f32.mrf.mxu0
  %v935 = vadd.f32 0.0, %v934
  %v936 = vpop.f32.mrf.mxu0
  %v937 = vadd.f32 0.0, %v936
  %v938 = vpop.f32.mrf.mxu0
  %v939 = vadd.f32 0.0, %v938
  %v940 = vpop.f32.mrf.mxu0
  %v941 = vadd.f32 0.0, %v940
  %942 = vmatprep.mubr.bf16.mxu0 %v339
  %943 = vmatmul.mubr.bf16.gmra.mxu0 %v338
  %v944 = vpop.f32.mrf.mxu0
  %v945 = vadd.f32 0.0, %v944
  %v946 = vpop.f32.mrf.mxu0
  %v947 = vadd.f32 0.0, %v946
  %v948 = vpop.f32.mrf.mxu0
  %v949 = vadd.f32 0.0, %v948
  %v950 = vpop.f32.mrf.mxu0
  %v951 = vadd.f32 0.0, %v950
  %952 = vmatprep.mubr.bf16.mxu0 %v341
  %953 = vmatmul.mubr.bf16.gmra.mxu0 %v340
  %v954 = vpop.f32.mrf.mxu0
  %v955 = vadd.f32 0.0, %v954
  %v956 = vpop.f32.mrf.mxu0
  %v957 = vadd.f32 0.0, %v956
  %v958 = vpop.f32.mrf.mxu0
  %v959 = vadd.f32 0.0, %v958
  %v960 = vpop.f32.mrf.mxu0
  %v961 = vadd.f32 0.0, %v960
  %962 = vmatprep.mubr.bf16.mxu0 %v343
  %963 = vmatmul.mubr.bf16.gmra.mxu0 %v342
  %v964 = vpop.f32.mrf.mxu0
  %v965 = vadd.f32 0.0, %v964
  %v966 = vpop.f32.mrf.mxu0
  %v967 = vadd.f32 0.0, %v966
  %v968 = vpop.f32.mrf.mxu0
  %v969 = vadd.f32 0.0, %v968
  %v970 = vpop.f32.mrf.mxu0
  %v971 = vadd.f32 0.0, %v970
  %972 = vmatprep.mubr.bf16.mxu0 %v345
  %973 = vmatmul.mubr.bf16.gmra.mxu0 %v344
  %v974 = vpop.f32.mrf.mxu0
  %v975 = vadd.f32 0.0, %v974
  %v976 = vpop.f32.mrf.mxu0
  %v977 = vadd.f32 0.0, %v976
  %v978 = vpop.f32.mrf.mxu0
  %v979 = vadd.f32 0.0, %v978
  %v980 = vpop.f32.mrf.mxu0
  %v981 = vadd.f32 0.0, %v980
  %982 = vmatprep.mubr.bf16.mxu0 %v347
  %983 = vmatmul.mubr.bf16.gmra.mxu0 %v346
  %v984 = vpop.f32.mrf.mxu0
  %v985 = vadd.f32 0.0, %v984
  %v986 = vpop.f32.mrf.mxu0
  %v987 = vadd.f32 0.0, %v986
  %v988 = vpop.f32.mrf.mxu0
  %v989 = vadd.f32 0.0, %v988
  %v990 = vpop.f32.mrf.mxu0
  %v991 = vadd.f32 0.0, %v990
  %992 = vmatprep.mubr.bf16.mxu0 %v349
  %993 = vmatmul.mubr.bf16.gmra.mxu0 %v348
  %v994 = vpop.f32.mrf.mxu0
  %v995 = vadd.f32 0.0, %v994
  %v996 = vpop.f32.mrf.mxu0
  %v997 = vadd.f32 0.0, %v996
  %v998 = vpop.f32.mrf.mxu0
  %v999 = vadd.f32 0.0, %v998
  %v1000 = vpop.f32.mrf.mxu0
  %v1001 = vadd.f32 0.0, %v1000
  %1002 = vdwg.mxu0
  %1003 = vmatprep.subr.bf16.mxu0 %v623
  %1004 = vmatpush1.bf16.msra.mxu0 %v622
  %1005 = vmatprep.subr.bf16.mxu0 %v619
  %1006 = vmatpush1.bf16.msra.mxu0 %v618
  %1007 = vmatprep.subr.bf16.mxu0 %v615
  %1008 = vmatpush1.bf16.msra.mxu0 %v614
  %1009 = vmatprep.subr.bf16.mxu0 %v611
  %1010 = vmatpush1.bf16.msra.mxu0 %v610
  %1011 = vmatprep.subr.bf16.mxu0 %v607
  %1012 = vmatpush1.bf16.msra.mxu0 %v606
  %1013 = vmatprep.subr.bf16.mxu0 %v603
  %1014 = vmatpush1.bf16.msra.mxu0 %v602
  %1015 = vmatprep.subr.bf16.mxu0 %v599
  %1016 = vmatpush1.bf16.msra.mxu0 %v598
  %1017 = vmatprep.subr.bf16.mxu0 %v595
  %1018 = vmatpush1.bf16.msra.mxu0 %v594
  %1019 = vmatprep.subr.bf16.mxu0 %v655
  %1020 = vmatpush2.bf16.msra.mxu0 %v654
  %1021 = vmatprep.subr.bf16.mxu0 %v651
  %1022 = vmatpush2.bf16.msra.mxu0 %v650
  %1023 = vmatprep.subr.bf16.mxu0 %v647
  %1024 = vmatpush2.bf16.msra.mxu0 %v646
  %1025 = vmatprep.subr.bf16.mxu0 %v643
  %1026 = vmatpush2.bf16.msra.mxu0 %v642
  %1027 = vmatprep.subr.bf16.mxu0 %v639
  %1028 = vmatpush2.bf16.msra.mxu0 %v638
  %1029 = vmatprep.subr.bf16.mxu0 %v635
  %1030 = vmatpush2.bf16.msra.mxu0 %v634
  %1031 = vmatprep.subr.bf16.mxu0 %v631
  %1032 = vmatpush2.bf16.msra.mxu0 %v630
  %1033 = vmatprep.subr.bf16.mxu0 %v627
  %1034 = vmatpush2.bf16.msra.mxu0 %v626
  %1035 = vmatprep.mubr.bf16.mxu0 %v301
  %1036 = vmatmul.mubr.bf16.gmra.mxu0 %v300
  %v1037 = vpop.f32.mrf.mxu0
  %v1038 = vadd.f32 0.0, %v1037
  %v1039 = vpop.f32.mrf.mxu0
  %v1040 = vadd.f32 0.0, %v1039
  %v1041 = vpop.f32.mrf.mxu0
  %v1042 = vadd.f32 0.0, %v1041
  %v1043 = vpop.f32.mrf.mxu0
  %v1044 = vadd.f32 0.0, %v1043
  %1045 = vmatprep.mubr.bf16.mxu0 %v303
  %1046 = vmatmul.mubr.bf16.gmra.mxu0 %v302
  %v1047 = vpop.f32.mrf.mxu0
  %v1048 = vadd.f32 0.0, %v1047
  %v1049 = vpop.f32.mrf.mxu0
  %v1050 = vadd.f32 0.0, %v1049
  %v1051 = vpop.f32.mrf.mxu0
  %v1052 = vadd.f32 0.0, %v1051
  %v1053 = vpop.f32.mrf.mxu0
  %v1054 = vadd.f32 0.0, %v1053
  %1055 = vmatprep.mubr.bf16.mxu0 %v305
  %1056 = vmatmul.mubr.bf16.gmra.mxu0 %v304
  %v1057 = vpop.f32.mrf.mxu0
  %v1058 = vadd.f32 0.0, %v1057
  %v1059 = vpop.f32.mrf.mxu0
  %v1060 = vadd.f32 0.0, %v1059
  %v1061 = vpop.f32.mrf.mxu0
  %v1062 = vadd.f32 0.0, %v1061
  %v1063 = vpop.f32.mrf.mxu0
  %v1064 = vadd.f32 0.0, %v1063
  %1065 = vmatprep.mubr.bf16.mxu0 %v307
  %1066 = vmatmul.mubr.bf16.gmra.mxu0 %v306
  %v1067 = vpop.f32.mrf.mxu0
  %v1068 = vadd.f32 0.0, %v1067
  %v1069 = vpop.f32.mrf.mxu0
  %v1070 = vadd.f32 0.0, %v1069
  %v1071 = vpop.f32.mrf.mxu0
  %v1072 = vadd.f32 0.0, %v1071
  %v1073 = vpop.f32.mrf.mxu0
  %v1074 = vadd.f32 0.0, %v1073
  %1075 = vmatprep.mubr.bf16.mxu0 %v309
  %1076 = vmatmul.mubr.bf16.gmra.mxu0 %v308
  %v1077 = vpop.f32.mrf.mxu0
  %v1078 = vadd.f32 0.0, %v1077
  %v1079 = vpop.f32.mrf.mxu0
  %v1080 = vadd.f32 0.0, %v1079
  %v1081 = vpop.f32.mrf.mxu0
  %v1082 = vadd.f32 0.0, %v1081
  %v1083 = vpop.f32.mrf.mxu0
  %v1084 = vadd.f32 0.0, %v1083
  %1085 = vmatprep.mubr.bf16.mxu0 %v311
  %1086 = vmatmul.mubr.bf16.gmra.mxu0 %v310
  %v1087 = vpop.f32.mrf.mxu0
  %v1088 = vadd.f32 0.0, %v1087
  %v1089 = vpop.f32.mrf.mxu0
  %v1090 = vadd.f32 0.0, %v1089
  %v1091 = vpop.f32.mrf.mxu0
  %v1092 = vadd.f32 0.0, %v1091
  %v1093 = vpop.f32.mrf.mxu0
  %v1094 = vadd.f32 0.0, %v1093
  %1095 = vmatprep.mubr.bf16.mxu0 %v313
  %1096 = vmatmul.mubr.bf16.gmra.mxu0 %v312
  %v1097 = vpop.f32.mrf.mxu0
  %v1098 = vadd.f32 0.0, %v1097
  %v1099 = vpop.f32.mrf.mxu0
  %v1100 = vadd.f32 0.0, %v1099
  %v1101 = vpop.f32.mrf.mxu0
  %v1102 = vadd.f32 0.0, %v1101
  %v1103 = vpop.f32.mrf.mxu0
  %v1104 = vadd.f32 0.0, %v1103
  %1105 = vmatprep.mubr.bf16.mxu0 %v315
  %1106 = vmatmul.mubr.bf16.gmra.mxu0 %v314
  %v1107 = vpop.f32.mrf.mxu0
  %v1108 = vadd.f32 0.0, %v1107
  %v1109 = vpop.f32.mrf.mxu0
  %v1110 = vadd.f32 0.0, %v1109
  %v1111 = vpop.f32.mrf.mxu0
  %v1112 = vadd.f32 0.0, %v1111
  %v1113 = vpop.f32.mrf.mxu0
  %v1114 = vadd.f32 0.0, %v1113
  %1115 = vmatprep.mubr.bf16.mxu0 %v317
  %1116 = vmatmul.mubr.bf16.gmra.mxu0 %v316
  %v1117 = vpop.f32.mrf.mxu0
  %v1118 = vadd.f32 0.0, %v1117
  %v1119 = vpop.f32.mrf.mxu0
  %v1120 = vadd.f32 0.0, %v1119
  %v1121 = vpop.f32.mrf.mxu0
  %v1122 = vadd.f32 0.0, %v1121
  %v1123 = vpop.f32.mrf.mxu0
  %v1124 = vadd.f32 0.0, %v1123
  %1125 = vmatprep.mubr.bf16.mxu0 %v319
  %1126 = vmatmul.mubr.bf16.gmra.mxu0 %v318
  %v1127 = vpop.f32.mrf.mxu0
  %v1128 = vadd.f32 0.0, %v1127
  %v1129 = vpop.f32.mrf.mxu0
  %v1130 = vadd.f32 0.0, %v1129
  %v1131 = vpop.f32.mrf.mxu0
  %v1132 = vadd.f32 0.0, %v1131
  %v1133 = vpop.f32.mrf.mxu0
  %v1134 = vadd.f32 0.0, %v1133
  %1135 = vmatprep.mubr.bf16.mxu0 %v321
  %1136 = vmatmul.mubr.bf16.gmra.mxu0 %v320
  %v1137 = vpop.f32.mrf.mxu0
  %v1138 = vadd.f32 0.0, %v1137
  %v1139 = vpop.f32.mrf.mxu0
  %v1140 = vadd.f32 0.0, %v1139
  %v1141 = vpop.f32.mrf.mxu0
  %v1142 = vadd.f32 0.0, %v1141
  %v1143 = vpop.f32.mrf.mxu0
  %v1144 = vadd.f32 0.0, %v1143
  %1145 = vmatprep.mubr.bf16.mxu0 %v323
  %1146 = vmatmul.mubr.bf16.gmra.mxu0 %v322
  %v1147 = vpop.f32.mrf.mxu0
  %v1148 = vadd.f32 0.0, %v1147
  %v1149 = vpop.f32.mrf.mxu0
  %v1150 = vadd.f32 0.0, %v1149
  %v1151 = vpop.f32.mrf.mxu0
  %v1152 = vadd.f32 0.0, %v1151
  %v1153 = vpop.f32.mrf.mxu0
  %v1154 = vadd.f32 0.0, %v1153
  %1155 = vmatprep.mubr.bf16.mxu0 %v325
  %1156 = vmatmul.mubr.bf16.gmra.mxu0 %v324
  %v1157 = vpop.f32.mrf.mxu0
  %v1158 = vadd.f32 0.0, %v1157
  %v1159 = vpop.f32.mrf.mxu0
  %v1160 = vadd.f32 0.0, %v1159
  %v1161 = vpop.f32.mrf.mxu0
  %v1162 = vadd.f32 0.0, %v1161
  %v1163 = vpop.f32.mrf.mxu0
  %v1164 = vadd.f32 0.0, %v1163
  %1165 = vmatprep.mubr.bf16.mxu0 %v327
  %1166 = vmatmul.mubr.bf16.gmra.mxu0 %v326
  %v1167 = vpop.f32.mrf.mxu0
  %v1168 = vadd.f32 0.0, %v1167
  %v1169 = vpop.f32.mrf.mxu0
  %v1170 = vadd.f32 0.0, %v1169
  %v1171 = vpop.f32.mrf.mxu0
  %v1172 = vadd.f32 0.0, %v1171
  %v1173 = vpop.f32.mrf.mxu0
  %v1174 = vadd.f32 0.0, %v1173
  %1175 = vmatprep.mubr.bf16.mxu0 %v329
  %1176 = vmatmul.mubr.bf16.gmra.mxu0 %v328
  %v1177 = vpop.f32.mrf.mxu0
  %v1178 = vadd.f32 0.0, %v1177
  %v1179 = vpop.f32.mrf.mxu0
  %v1180 = vadd.f32 0.0, %v1179
  %v1181 = vpop.f32.mrf.mxu0
  %v1182 = vadd.f32 0.0, %v1181
  %v1183 = vpop.f32.mrf.mxu0
  %v1184 = vadd.f32 0.0, %v1183
  %1185 = vmatprep.mubr.bf16.mxu0 %v331
  %1186 = vmatmul.mubr.bf16.gmra.mxu0 %v330
  %v1187 = vpop.f32.mrf.mxu0
  %v1188 = vadd.f32 0.0, %v1187
  %v1189 = vpop.f32.mrf.mxu0
  %v1190 = vadd.f32 0.0, %v1189
  %v1191 = vpop.f32.mrf.mxu0
  %v1192 = vadd.f32 0.0, %v1191
  %v1193 = vpop.f32.mrf.mxu0
  %v1194 = vadd.f32 0.0, %v1193
  %1195 = vmatprep.mubr.bf16.mxu0 %v333
  %1196 = vmatmul.mubr.bf16.gmra.mxu0 %v332
  %v1197 = vpop.f32.mrf.mxu0
  %v1198 = vadd.f32 0.0, %v1197
  %v1199 = vpop.f32.mrf.mxu0
  %v1200 = vadd.f32 0.0, %v1199
  %v1201 = vpop.f32.mrf.mxu0
  %v1202 = vadd.f32 0.0, %v1201
  %v1203 = vpop.f32.mrf.mxu0
  %v1204 = vadd.f32 0.0, %v1203
  %1205 = vmatprep.mubr.bf16.mxu0 %v335
  %1206 = vmatmul.mubr.bf16.gmra.mxu0 %v334
  %v1207 = vpop.f32.mrf.mxu0
  %v1208 = vadd.f32 0.0, %v1207
  %v1209 = vpop.f32.mrf.mxu0
  %v1210 = vadd.f32 0.0, %v1209
  %v1211 = vpop.f32.mrf.mxu0
  %v1212 = vadd.f32 0.0, %v1211
  %v1213 = vpop.f32.mrf.mxu0
  %v1214 = vadd.f32 0.0, %v1213
  %1215 = vmatprep.mubr.bf16.mxu0 %v337
  %1216 = vmatmul.mubr.bf16.gmra.mxu0 %v336
  %v1217 = vpop.f32.mrf.mxu0
  %v1218 = vadd.f32 0.0, %v1217
  %v1219 = vpop.f32.mrf.mxu0
  %v1220 = vadd.f32 0.0, %v1219
  %v1221 = vpop.f32.mrf.mxu0
  %v1222 = vadd.f32 0.0, %v1221
  %v1223 = vpop.f32.mrf.mxu0
  %v1224 = vadd.f32 0.0, %v1223
  %1225 = vmatprep.mubr.bf16.mxu0 %v339
  %1226 = vmatmul.mubr.bf16.gmra.mxu0 %v338
  %v1227 = vpop.f32.mrf.mxu0
  %v1228 = vadd.f32 0.0, %v1227
  %v1229 = vpop.f32.mrf.mxu0
  %v1230 = vadd.f32 0.0, %v1229
  %v1231 = vpop.f32.mrf.mxu0
  %v1232 = vadd.f32 0.0, %v1231
  %v1233 = vpop.f32.mrf.mxu0
  %v1234 = vadd.f32 0.0, %v1233
  %1235 = vmatprep.mubr.bf16.mxu0 %v341
  %1236 = vmatmul.mubr.bf16.gmra.mxu0 %v340
  %v1237 = vpop.f32.mrf.mxu0
  %v1238 = vadd.f32 0.0, %v1237
  %v1239 = vpop.f32.mrf.mxu0
  %v1240 = vadd.f32 0.0, %v1239
  %v1241 = vpop.f32.mrf.mxu0
  %v1242 = vadd.f32 0.0, %v1241
  %v1243 = vpop.f32.mrf.mxu0
  %v1244 = vadd.f32 0.0, %v1243
  %1245 = vmatprep.mubr.bf16.mxu0 %v343
  %1246 = vmatmul.mubr.bf16.gmra.mxu0 %v342
  %v1247 = vpop.f32.mrf.mxu0
  %v1248 = vadd.f32 0.0, %v1247
  %v1249 = vpop.f32.mrf.mxu0
  %v1250 = vadd.f32 0.0, %v1249
  %v1251 = vpop.f32.mrf.mxu0
  %v1252 = vadd.f32 0.0, %v1251
  %v1253 = vpop.f32.mrf.mxu0
  %v1254 = vadd.f32 0.0, %v1253
  %1255 = vmatprep.mubr.bf16.mxu0 %v345
  %1256 = vmatmul.mubr.bf16.gmra.mxu0 %v344
  %v1257 = vpop.f32.mrf.mxu0
  %v1258 = vadd.f32 0.0, %v1257
  %v1259 = vpop.f32.mrf.mxu0
  %v1260 = vadd.f32 0.0, %v1259
  %v1261 = vpop.f32.mrf.mxu0
  %v1262 = vadd.f32 0.0, %v1261
  %v1263 = vpop.f32.mrf.mxu0
  %v1264 = vadd.f32 0.0, %v1263
  %1265 = vmatprep.mubr.bf16.mxu0 %v347
  %1266 = vmatmul.mubr.bf16.gmra.mxu0 %v346
  %v1267 = vpop.f32.mrf.mxu0
  %v1268 = vadd.f32 0.0, %v1267
  %v1269 = vpop.f32.mrf.mxu0
  %v1270 = vadd.f32 0.0, %v1269
  %v1271 = vpop.f32.mrf.mxu0
  %v1272 = vadd.f32 0.0, %v1271
  %v1273 = vpop.f32.mrf.mxu0
  %v1274 = vadd.f32 0.0, %v1273
  %1275 = vmatprep.mubr.bf16.mxu0 %v349
  %1276 = vmatmul.mubr.bf16.gmra.mxu0 %v348
  %v1277 = vpop.f32.mrf.mxu0
  %v1278 = vadd.f32 0.0, %v1277
  %v1279 = vpop.f32.mrf.mxu0
  %v1280 = vadd.f32 0.0, %v1279
  %v1281 = vpop.f32.mrf.mxu0
  %v1282 = vadd.f32 0.0, %v1281
  %v1283 = vpop.f32.mrf.mxu0
  %v1284 = vadd.f32 0.0, %v1283
  %1285 = vdwg.mxu0
  %v1286 = vpack.c.bf16 %v759, %v755
  %v1287 = vpack.c.bf16 %v761, %v757
  %v1288 = vpack.c.bf16 %v1042, %v1038
  %v1289 = vpack.c.bf16 %v1044, %v1040
  %v1290 = vpack.c.bf16 %v769, %v765
  %v1291 = vpack.c.bf16 %v771, %v767
  %v1292 = vpack.c.bf16 %v1052, %v1048
  %v1293 = vpack.c.bf16 %v1054, %v1050
  %v1294 = vpack.c.bf16 %v779, %v775
  %v1295 = vpack.c.bf16 %v781, %v777
  %v1296 = vpack.c.bf16 %v1062, %v1058
  %v1297 = vpack.c.bf16 %v1064, %v1060
  %v1298 = vpack.c.bf16 %v789, %v785
  %v1299 = vpack.c.bf16 %v791, %v787
  %v1300 = vpack.c.bf16 %v1072, %v1068
  %v1301 = vpack.c.bf16 %v1074, %v1070
  %v1302 = vpack.c.bf16 %v799, %v795
  %v1303 = vpack.c.bf16 %v801, %v797
  %v1304 = vpack.c.bf16 %v1082, %v1078
  %v1305 = vpack.c.bf16 %v1084, %v1080
  %v1306 = vpack.c.bf16 %v809, %v805
  %v1307 = vpack.c.bf16 %v811, %v807
  %v1308 = vpack.c.bf16 %v1092, %v1088
  %v1309 = vpack.c.bf16 %v1094, %v1090
  %v1310 = vpack.c.bf16 %v819, %v815
  %v1311 = vpack.c.bf16 %v821, %v817
  %v1312 = vpack.c.bf16 %v1102, %v1098
  %v1313 = vpack.c.bf16 %v1104, %v1100
  %v1314 = vpack.c.bf16 %v829, %v825
  %v1315 = vpack.c.bf16 %v831, %v827
  %v1316 = vpack.c.bf16 %v1112, %v1108
  %v1317 = vpack.c.bf16 %v1114, %v1110
  %v1318 = vpack.c.bf16 %v839, %v835
  %v1319 = vpack.c.bf16 %v841, %v837
  %v1320 = vpack.c.bf16 %v1122, %v1118
  %v1321 = vpack.c.bf16 %v1124, %v1120
  %v1322 = vpack.c.bf16 %v849, %v845
  %v1323 = vpack.c.bf16 %v851, %v847
  %v1324 = vpack.c.bf16 %v1132, %v1128
  %v1325 = vpack.c.bf16 %v1134, %v1130
  %v1326 = vpack.c.bf16 %v859, %v855
  %v1327 = vpack.c.bf16 %v861, %v857
  %v1328 = vpack.c.bf16 %v1142, %v1138
  %v1329 = vpack.c.bf16 %v1144, %v1140
  %v1330 = vpack.c.bf16 %v869, %v865
  %v1331 = vpack.c.bf16 %v871, %v867
  %v1332 = vpack.c.bf16 %v1152, %v1148
  %v1333 = vpack.c.bf16 %v1154, %v1150
  %v1334 = vpack.c.bf16 %v879, %v875
  %v1335 = vpack.c.bf16 %v881, %v877
  %v1336 = vpack.c.bf16 %v1162, %v1158
  %v1337 = vpack.c.bf16 %v1164, %v1160
  %v1338 = vpack.c.bf16 %v889, %v885
  %v1339 = vpack.c.bf16 %v891, %v887
  %v1340 = vpack.c.bf16 %v1172, %v1168
  %v1341 = vpack.c.bf16 %v1174, %v1170
  %v1342 = vpack.c.bf16 %v899, %v895
  %v1343 = vpack.c.bf16 %v901, %v897
  %v1344 = vpack.c.bf16 %v1182, %v1178
  %v1345 = vpack.c.bf16 %v1184, %v1180
  %v1346 = vpack.c.bf16 %v909, %v905
  %v1347 = vpack.c.bf16 %v911, %v907
  %v1348 = vpack.c.bf16 %v1192, %v1188
  %v1349 = vpack.c.bf16 %v1194, %v1190
  %v1350 = vpack.c.bf16 %v919, %v915
  %v1351 = vpack.c.bf16 %v921, %v917
  %v1352 = vpack.c.bf16 %v1202, %v1198
  %v1353 = vpack.c.bf16 %v1204, %v1200
  %v1354 = vpack.c.bf16 %v929, %v925
  %v1355 = vpack.c.bf16 %v931, %v927
  %v1356 = vpack.c.bf16 %v1212, %v1208
  %v1357 = vpack.c.bf16 %v1214, %v1210
  %v1358 = vpack.c.bf16 %v939, %v935
  %v1359 = vpack.c.bf16 %v941, %v937
  %v1360 = vpack.c.bf16 %v1222, %v1218
  %v1361 = vpack.c.bf16 %v1224, %v1220
  %v1362 = vpack.c.bf16 %v949, %v945
  %v1363 = vpack.c.bf16 %v951, %v947
  %v1364 = vpack.c.bf16 %v1232, %v1228
  %v1365 = vpack.c.bf16 %v1234, %v1230
  %v1366 = vpack.c.bf16 %v959, %v955
  %v1367 = vpack.c.bf16 %v961, %v957
  %v1368 = vpack.c.bf16 %v1242, %v1238
  %v1369 = vpack.c.bf16 %v1244, %v1240
  %v1370 = vpack.c.bf16 %v969, %v965
  %v1371 = vpack.c.bf16 %v971, %v967
  %v1372 = vpack.c.bf16 %v1252, %v1248
  %v1373 = vpack.c.bf16 %v1254, %v1250
  %v1374 = vpack.c.bf16 %v979, %v975
  %v1375 = vpack.c.bf16 %v981, %v977
  %v1376 = vpack.c.bf16 %v1262, %v1258
  %v1377 = vpack.c.bf16 %v1264, %v1260
  %v1378 = vpack.c.bf16 %v989, %v985
  %v1379 = vpack.c.bf16 %v991, %v987
  %v1380 = vpack.c.bf16 %v1272, %v1268
  %v1381 = vpack.c.bf16 %v1274, %v1270
  %v1382 = vpack.c.bf16 %v999, %v995
  %v1383 = vpack.c.bf16 %v1001, %v997
  %v1384 = vpack.c.bf16 %v1282, %v1278
  %v1385 = vpack.c.bf16 %v1284, %v1280
  %v1386 = vld [vmem:[%s2] sm:$0xff]
  %v1387 = vld [vmem:[%s2 + $0x8] sm:$0xff]
  %v1388 = vld [vmem:[%s2 + $0x10] sm:$0xff]
  %v1389 = vld [vmem:[%s2 + $0x18] sm:$0xff]
  %v1390 = vld [vmem:[%s2 + $0x20] sm:$0xff]
  %v1391 = vld [vmem:[%s2 + $0x28] sm:$0xff]
  %v1392 = vld [vmem:[%s2 + $0x30] sm:$0xff]
  %v1393 = vld [vmem:[%s2 + $0x38] sm:$0xff]
  %v1394 = vld [vmem:[%s2 + $0x40] sm:$0xff]
  %v1395 = vld [vmem:[%s2 + $0x48] sm:$0xff]
  %v1396 = vld [vmem:[%s2 + $0x50] sm:$0xff]
  %v1397 = vld [vmem:[%s2 + $0x58] sm:$0xff]
  %v1398 = vld [vmem:[%s2 + $0x60] sm:$0xff]
  %v1399 = vld [vmem:[%s2 + $0x68] sm:$0xff]
  %v1400 = vld [vmem:[%s2 + $0x70] sm:$0xff]
  %v1401 = vld [vmem:[%s2 + $0x78] sm:$0xff]
  %v1402 = vld [vmem:[%s2 + $0x80] sm:$0xff]
  %v1403 = vld [vmem:[%s2 + $0x88] sm:$0xff]
  %v1404 = vld [vmem:[%s2 + $0x90] sm:$0xff]
  %v1405 = vld [vmem:[%s2 + $0x98] sm:$0xff]
  %v1406 = vld [vmem:[%s2 + $0xa0] sm:$0xff]
  %v1407 = vld [vmem:[%s2 + $0xa8] sm:$0xff]
  %v1408 = vld [vmem:[%s2 + $0xb0] sm:$0xff]
  %v1409 = vld [vmem:[%s2 + $0xb8] sm:$0xff]
  %v1410 = vld [vmem:[%s2 + $0xc0] sm:$0xff]
  %v1411 = vld [vmem:[%s2 + $0xc8] sm:$0xff]
  %v1412 = vld [vmem:[%s2 + $0xd0] sm:$0xff]
  %v1413 = vld [vmem:[%s2 + $0xd8] sm:$0xff]
  %v1414 = vld [vmem:[%s2 + $0xe0] sm:$0xff]
  %v1415 = vld [vmem:[%s2 + $0xe8] sm:$0xff]
  %v1416 = vld [vmem:[%s2 + $0xf0] sm:$0xff]
  %v1417 = vld [vmem:[%s2 + $0xf8] sm:$0xff]
  %v1418 = vld [vmem:[%s2 + $0x100] sm:$0xff]
  %v1419 = vld [vmem:[%s2 + $0x108] sm:$0xff]
  %v1420 = vld [vmem:[%s2 + $0x110] sm:$0xff]
  %v1421 = vld [vmem:[%s2 + $0x118] sm:$0xff]
  %v1422 = vld [vmem:[%s2 + $0x120] sm:$0xff]
  %v1423 = vld [vmem:[%s2 + $0x128] sm:$0xff]
  %v1424 = vld [vmem:[%s2 + $0x130] sm:$0xff]
  %v1425 = vld [vmem:[%s2 + $0x138] sm:$0xff]
  %v1426 = vld [vmem:[%s2 + $0x140] sm:$0xff]
  %v1427 = vld [vmem:[%s2 + $0x148] sm:$0xff]
  %v1428 = vld [vmem:[%s2 + $0x150] sm:$0xff]
  %v1429 = vld [vmem:[%s2 + $0x158] sm:$0xff]
  %v1430 = vld [vmem:[%s2 + $0x160] sm:$0xff]
  %v1431 = vld [vmem:[%s2 + $0x168] sm:$0xff]
  %v1432 = vld [vmem:[%s2 + $0x170] sm:$0xff]
  %v1433 = vld [vmem:[%s2 + $0x178] sm:$0xff]
  %v1434 = vld [vmem:[%s2 + $0x180] sm:$0xff]
  %v1435 = vld [vmem:[%s2 + $0x188] sm:$0xff]
  %v1436 = vld [vmem:[%s2 + $0x190] sm:$0xff]
  %v1437 = vld [vmem:[%s2 + $0x198] sm:$0xff]
  %v1438 = vld [vmem:[%s2 + $0x1a0] sm:$0xff]
  %v1439 = vld [vmem:[%s2 + $0x1a8] sm:$0xff]
  %v1440 = vld [vmem:[%s2 + $0x1b0] sm:$0xff]
  %v1441 = vld [vmem:[%s2 + $0x1b8] sm:$0xff]
  %v1442 = vld [vmem:[%s2 + $0x1c0] sm:$0xff]
  %v1443 = vld [vmem:[%s2 + $0x1c8] sm:$0xff]
  %v1444 = vld [vmem:[%s2 + $0x1d0] sm:$0xff]
  %v1445 = vld [vmem:[%s2 + $0x1d8] sm:$0xff]
  %v1446 = vld [vmem:[%s2 + $0x1e0] sm:$0xff]
  %v1447 = vld [vmem:[%s2 + $0x1e8] sm:$0xff]
  %v1448 = vld [vmem:[%s2 + $0x1f0] sm:$0xff]
  %v1449 = vld [vmem:[%s2 + $0x1f8] sm:$0xff]
  %v1450 = vld [vmem:[%s2 + $0x200] sm:$0xff]
  %v1451 = vld [vmem:[%s2 + $0x208] sm:$0xff]
  %v1452 = vld [vmem:[%s2 + $0x210] sm:$0xff]
  %v1453 = vld [vmem:[%s2 + $0x218] sm:$0xff]
  %v1454 = vld [vmem:[%s2 + $0x220] sm:$0xff]
  %v1455 = vld [vmem:[%s2 + $0x228] sm:$0xff]
  %v1456 = vld [vmem:[%s2 + $0x230] sm:$0xff]
  %v1457 = vld [vmem:[%s2 + $0x238] sm:$0xff]
  %v1458 = vld [vmem:[%s2 + $0x240] sm:$0xff]
  %v1459 = vld [vmem:[%s2 + $0x248] sm:$0xff]
  %v1460 = vld [vmem:[%s2 + $0x250] sm:$0xff]
  %v1461 = vld [vmem:[%s2 + $0x258] sm:$0xff]
  %v1462 = vld [vmem:[%s2 + $0x260] sm:$0xff]
  %v1463 = vld [vmem:[%s2 + $0x268] sm:$0xff]
  %v1464 = vld [vmem:[%s2 + $0x270] sm:$0xff]
  %v1465 = vld [vmem:[%s2 + $0x278] sm:$0xff]
  %v1466 = vld [vmem:[%s2 + $0x280] sm:$0xff]
  %v1467 = vld [vmem:[%s2 + $0x288] sm:$0xff]
  %v1468 = vld [vmem:[%s2 + $0x290] sm:$0xff]
  %v1469 = vld [vmem:[%s2 + $0x298] sm:$0xff]
  %v1470 = vld [vmem:[%s2 + $0x2a0] sm:$0xff]
  %v1471 = vld [vmem:[%s2 + $0x2a8] sm:$0xff]
  %v1472 = vld [vmem:[%s2 + $0x2b0] sm:$0xff]
  %v1473 = vld [vmem:[%s2 + $0x2b8] sm:$0xff]
  %v1474 = vld [vmem:[%s2 + $0x2c0] sm:$0xff]
  %v1475 = vld [vmem:[%s2 + $0x2c8] sm:$0xff]
  %v1476 = vld [vmem:[%s2 + $0x2d0] sm:$0xff]
  %v1477 = vld [vmem:[%s2 + $0x2d8] sm:$0xff]
  %v1478 = vld [vmem:[%s2 + $0x2e0] sm:$0xff]
  %v1479 = vld [vmem:[%s2 + $0x2e8] sm:$0xff]
  %v1480 = vld [vmem:[%s2 + $0x2f0] sm:$0xff]
  %v1481 = vld [vmem:[%s2 + $0x2f8] sm:$0xff]
  %v1482 = vld [vmem:[%s2 + $0x300] sm:$0xff]
  %v1483 = vld [vmem:[%s2 + $0x308] sm:$0xff]
  %v1484 = vld [vmem:[%s2 + $0x310] sm:$0xff]
  %v1485 = vld [vmem:[%s2 + $0x318] sm:$0xff]
  %v1486 = vld [vmem:[%s2 + $0x320] sm:$0xff]
  %v1487 = vld [vmem:[%s2 + $0x328] sm:$0xff]
  %v1488 = vld [vmem:[%s2 + $0x330] sm:$0xff]
  %v1489 = vld [vmem:[%s2 + $0x338] sm:$0xff]
  %v1490 = vld [vmem:[%s2 + $0x340] sm:$0xff]
  %v1491 = vld [vmem:[%s2 + $0x348] sm:$0xff]
  %v1492 = vld [vmem:[%s2 + $0x350] sm:$0xff]
  %v1493 = vld [vmem:[%s2 + $0x358] sm:$0xff]
  %v1494 = vld [vmem:[%s2 + $0x360] sm:$0xff]
  %v1495 = vld [vmem:[%s2 + $0x368] sm:$0xff]
  %v1496 = vld [vmem:[%s2 + $0x370] sm:$0xff]
  %v1497 = vld [vmem:[%s2 + $0x378] sm:$0xff]
  %v1498 = vld [vmem:[%s2 + $0x380] sm:$0xff]
  %v1499 = vld [vmem:[%s2 + $0x388] sm:$0xff]
  %v1500 = vld [vmem:[%s2 + $0x390] sm:$0xff]
  %v1501 = vld [vmem:[%s2 + $0x398] sm:$0xff]
  %v1502 = vld [vmem:[%s2 + $0x3a0] sm:$0xff]
  %v1503 = vld [vmem:[%s2 + $0x3a8] sm:$0xff]
  %v1504 = vld [vmem:[%s2 + $0x3b0] sm:$0xff]
  %v1505 = vld [vmem:[%s2 + $0x3b8] sm:$0xff]
  %v1506 = vld [vmem:[%s2 + $0x3c0] sm:$0xff]
  %v1507 = vld [vmem:[%s2 + $0x3c8] sm:$0xff]
  %v1508 = vld [vmem:[%s2 + $0x3d0] sm:$0xff]
  %v1509 = vld [vmem:[%s2 + $0x3d8] sm:$0xff]
  %v1510 = vld [vmem:[%s2 + $0x3e0] sm:$0xff]
  %v1511 = vld [vmem:[%s2 + $0x3e8] sm:$0xff]
  %v1512 = vld [vmem:[%s2 + $0x3f0] sm:$0xff]
  %v1513 = vld [vmem:[%s2 + $0x3f8] sm:$0xff]
  %v1642 = vunpack.c.l.b16 %v1386
  %v1643 = vunpack.c.h.b16 %v1386
  %v1644 = vunpack.c.l.b16 %v1387
  %v1645 = vunpack.c.h.b16 %v1387
  %v1646 = vunpack.c.l.b16 %v1388
  %v1647 = vunpack.c.h.b16 %v1388
  %v1648 = vunpack.c.l.b16 %v1389
  %v1649 = vunpack.c.h.b16 %v1389
  %v1650 = vunpack.c.l.b16 %v1390
  %v1651 = vunpack.c.h.b16 %v1390
  %v1652 = vunpack.c.l.b16 %v1391
  %v1653 = vunpack.c.h.b16 %v1391
  %v1654 = vunpack.c.l.b16 %v1392
  %v1655 = vunpack.c.h.b16 %v1392
  %v1656 = vunpack.c.l.b16 %v1393
  %v1657 = vunpack.c.h.b16 %v1393
  %v1658 = vunpack.c.l.b16 %v1394
  %v1659 = vunpack.c.h.b16 %v1394
  %v1660 = vunpack.c.l.b16 %v1395
  %v1661 = vunpack.c.h.b16 %v1395
  %v1662 = vunpack.c.l.b16 %v1396
  %v1663 = vunpack.c.h.b16 %v1396
  %v1664 = vunpack.c.l.b16 %v1397
  %v1665 = vunpack.c.h.b16 %v1397
  %v1666 = vunpack.c.l.b16 %v1398
  %v1667 = vunpack.c.h.b16 %v1398
  %v1668 = vunpack.c.l.b16 %v1399
  %v1669 = vunpack.c.h.b16 %v1399
  %v1670 = vunpack.c.l.b16 %v1400
  %v1671 = vunpack.c.h.b16 %v1400
  %v1672 = vunpack.c.l.b16 %v1401
  %v1673 = vunpack.c.h.b16 %v1401
  %v1674 = vunpack.c.l.b16 %v1402
  %v1675 = vunpack.c.h.b16 %v1402
  %v1676 = vunpack.c.l.b16 %v1403
  %v1677 = vunpack.c.h.b16 %v1403
  %v1678 = vunpack.c.l.b16 %v1404
  %v1679 = vunpack.c.h.b16 %v1404
  %v1680 = vunpack.c.l.b16 %v1405
  %v1681 = vunpack.c.h.b16 %v1405
  %v1682 = vunpack.c.l.b16 %v1406
  %v1683 = vunpack.c.h.b16 %v1406
  %v1684 = vunpack.c.l.b16 %v1407
  %v1685 = vunpack.c.h.b16 %v1407
  %v1686 = vunpack.c.l.b16 %v1408
  %v1687 = vunpack.c.h.b16 %v1408
  %v1688 = vunpack.c.l.b16 %v1409
  %v1689 = vunpack.c.h.b16 %v1409
  %v1690 = vunpack.c.l.b16 %v1410
  %v1691 = vunpack.c.h.b16 %v1410
  %v1692 = vunpack.c.l.b16 %v1411
  %v1693 = vunpack.c.h.b16 %v1411
  %v1694 = vunpack.c.l.b16 %v1412
  %v1695 = vunpack.c.h.b16 %v1412
  %v1696 = vunpack.c.l.b16 %v1413
  %v1697 = vunpack.c.h.b16 %v1413
  %v1698 = vunpack.c.l.b16 %v1414
  %v1699 = vunpack.c.h.b16 %v1414
  %v1700 = vunpack.c.l.b16 %v1415
  %v1701 = vunpack.c.h.b16 %v1415
  %v1702 = vunpack.c.l.b16 %v1416
  %v1703 = vunpack.c.h.b16 %v1416
  %v1704 = vunpack.c.l.b16 %v1417
  %v1705 = vunpack.c.h.b16 %v1417
  %v1706 = vunpack.c.l.b16 %v1418
  %v1707 = vunpack.c.h.b16 %v1418
  %v1708 = vunpack.c.l.b16 %v1419
  %v1709 = vunpack.c.h.b16 %v1419
  %v1710 = vunpack.c.l.b16 %v1420
  %v1711 = vunpack.c.h.b16 %v1420
  %v1712 = vunpack.c.l.b16 %v1421
  %v1713 = vunpack.c.h.b16 %v1421
  %v1714 = vunpack.c.l.b16 %v1422
  %v1715 = vunpack.c.h.b16 %v1422
  %v1716 = vunpack.c.l.b16 %v1423
  %v1717 = vunpack.c.h.b16 %v1423
  %v1718 = vunpack.c.l.b16 %v1424
  %v1719 = vunpack.c.h.b16 %v1424
  %v1720 = vunpack.c.l.b16 %v1425
  %v1721 = vunpack.c.h.b16 %v1425
  %v1722 = vunpack.c.l.b16 %v1426
  %v1723 = vunpack.c.h.b16 %v1426
  %v1724 = vunpack.c.l.b16 %v1427
  %v1725 = vunpack.c.h.b16 %v1427
  %v1726 = vunpack.c.l.b16 %v1428
  %v1727 = vunpack.c.h.b16 %v1428
  %v1728 = vunpack.c.l.b16 %v1429
  %v1729 = vunpack.c.h.b16 %v1429
  %v1730 = vunpack.c.l.b16 %v1430
  %v1731 = vunpack.c.h.b16 %v1430
  %v1732 = vunpack.c.l.b16 %v1431
  %v1733 = vunpack.c.h.b16 %v1431
  %v1734 = vunpack.c.l.b16 %v1432
  %v1735 = vunpack.c.h.b16 %v1432
  %v1736 = vunpack.c.l.b16 %v1433
  %v1737 = vunpack.c.h.b16 %v1433
  %v1738 = vunpack.c.l.b16 %v1434
  %v1739 = vunpack.c.h.b16 %v1434
  %v1740 = vunpack.c.l.b16 %v1435
  %v1741 = vunpack.c.h.b16 %v1435
  %v1742 = vunpack.c.l.b16 %v1436
  %v1743 = vunpack.c.h.b16 %v1436
  %v1744 = vunpack.c.l.b16 %v1437
  %v1745 = vunpack.c.h.b16 %v1437
  %v1746 = vunpack.c.l.b16 %v1438
  %v1747 = vunpack.c.h.b16 %v1438
  %v1748 = vunpack.c.l.b16 %v1439
  %v1749 = vunpack.c.h.b16 %v1439
  %v1750 = vunpack.c.l.b16 %v1440
  %v1751 = vunpack.c.h.b16 %v1440
  %v1752 = vunpack.c.l.b16 %v1441
  %v1753 = vunpack.c.h.b16 %v1441
  %v1754 = vunpack.c.l.b16 %v1442
  %v1755 = vunpack.c.h.b16 %v1442
  %v1756 = vunpack.c.l.b16 %v1443
  %v1757 = vunpack.c.h.b16 %v1443
  %v1758 = vunpack.c.l.b16 %v1444
  %v1759 = vunpack.c.h.b16 %v1444
  %v1760 = vunpack.c.l.b16 %v1445
  %v1761 = vunpack.c.h.b16 %v1445
  %v1762 = vunpack.c.l.b16 %v1446
  %v1763 = vunpack.c.h.b16 %v1446
  %v1764 = vunpack.c.l.b16 %v1447
  %v1765 = vunpack.c.h.b16 %v1447
  %v1766 = vunpack.c.l.b16 %v1448
  %v1767 = vunpack.c.h.b16 %v1448
  %v1768 = vunpack.c.l.b16 %v1449
  %v1769 = vunpack.c.h.b16 %v1449
  %v1770 = vunpack.c.l.b16 %v1450
  %v1771 = vunpack.c.h.b16 %v1450
  %v1772 = vunpack.c.l.b16 %v1451
  %v1773 = vunpack.c.h.b16 %v1451
  %v1774 = vunpack.c.l.b16 %v1452
  %v1775 = vunpack.c.h.b16 %v1452
  %v1776 = vunpack.c.l.b16 %v1453
  %v1777 = vunpack.c.h.b16 %v1453
  %v1778 = vunpack.c.l.b16 %v1454
  %v1779 = vunpack.c.h.b16 %v1454
  %v1780 = vunpack.c.l.b16 %v1455
  %v1781 = vunpack.c.h.b16 %v1455
  %v1782 = vunpack.c.l.b16 %v1456
  %v1783 = vunpack.c.h.b16 %v1456
  %v1784 = vunpack.c.l.b16 %v1457
  %v1785 = vunpack.c.h.b16 %v1457
  %v1786 = vunpack.c.l.b16 %v1458
  %v1787 = vunpack.c.h.b16 %v1458
  %v1788 = vunpack.c.l.b16 %v1459
  %v1789 = vunpack.c.h.b16 %v1459
  %v1790 = vunpack.c.l.b16 %v1460
  %v1791 = vunpack.c.h.b16 %v1460
  %v1792 = vunpack.c.l.b16 %v1461
  %v1793 = vunpack.c.h.b16 %v1461
  %v1794 = vunpack.c.l.b16 %v1462
  %v1795 = vunpack.c.h.b16 %v1462
  %v1796 = vunpack.c.l.b16 %v1463
  %v1797 = vunpack.c.h.b16 %v1463
  %v1798 = vunpack.c.l.b16 %v1464
  %v1799 = vunpack.c.h.b16 %v1464
  %v1800 = vunpack.c.l.b16 %v1465
  %v1801 = vunpack.c.h.b16 %v1465
  %v1802 = vunpack.c.l.b16 %v1466
  %v1803 = vunpack.c.h.b16 %v1466
  %v1804 = vunpack.c.l.b16 %v1467
  %v1805 = vunpack.c.h.b16 %v1467
  %v1806 = vunpack.c.l.b16 %v1468
  %v1807 = vunpack.c.h.b16 %v1468
  %v1808 = vunpack.c.l.b16 %v1469
  %v1809 = vunpack.c.h.b16 %v1469
  %v1810 = vunpack.c.l.b16 %v1470
  %v1811 = vunpack.c.h.b16 %v1470
  %v1812 = vunpack.c.l.b16 %v1471
  %v1813 = vunpack.c.h.b16 %v1471
  %v1814 = vunpack.c.l.b16 %v1472
  %v1815 = vunpack.c.h.b16 %v1472
  %v1816 = vunpack.c.l.b16 %v1473
  %v1817 = vunpack.c.h.b16 %v1473
  %v1818 = vunpack.c.l.b16 %v1474
  %v1819 = vunpack.c.h.b16 %v1474
  %v1820 = vunpack.c.l.b16 %v1475
  %v1821 = vunpack.c.h.b16 %v1475
  %v1822 = vunpack.c.l.b16 %v1476
  %v1823 = vunpack.c.h.b16 %v1476
  %v1824 = vunpack.c.l.b16 %v1477
  %v1825 = vunpack.c.h.b16 %v1477
  %v1826 = vunpack.c.l.b16 %v1478
  %v1827 = vunpack.c.h.b16 %v1478
  %v1828 = vunpack.c.l.b16 %v1479
  %v1829 = vunpack.c.h.b16 %v1479
  %v1830 = vunpack.c.l.b16 %v1480
  %v1831 = vunpack.c.h.b16 %v1480
  %v1832 = vunpack.c.l.b16 %v1481
  %v1833 = vunpack.c.h.b16 %v1481
  %v1834 = vunpack.c.l.b16 %v1482
  %v1835 = vunpack.c.h.b16 %v1482
  %v1836 = vunpack.c.l.b16 %v1483
  %v1837 = vunpack.c.h.b16 %v1483
  %v1838 = vunpack.c.l.b16 %v1484
  %v1839 = vunpack.c.h.b16 %v1484
  %v1840 = vunpack.c.l.b16 %v1485
  %v1841 = vunpack.c.h.b16 %v1485
  %v1842 = vunpack.c.l.b16 %v1486
  %v1843 = vunpack.c.h.b16 %v1486
  %v1844 = vunpack.c.l.b16 %v1487
  %v1845 = vunpack.c.h.b16 %v1487
  %v1846 = vunpack.c.l.b16 %v1488
  %v1847 = vunpack.c.h.b16 %v1488
  %v1848 = vunpack.c.l.b16 %v1489
  %v1849 = vunpack.c.h.b16 %v1489
  %v1850 = vunpack.c.l.b16 %v1490
  %v1851 = vunpack.c.h.b16 %v1490
  %v1852 = vunpack.c.l.b16 %v1491
  %v1853 = vunpack.c.h.b16 %v1491
  %v1854 = vunpack.c.l.b16 %v1492
  %v1855 = vunpack.c.h.b16 %v1492
  %v1856 = vunpack.c.l.b16 %v1493
  %v1857 = vunpack.c.h.b16 %v1493
  %v1858 = vunpack.c.l.b16 %v1494
  %v1859 = vunpack.c.h.b16 %v1494
  %v1860 = vunpack.c.l.b16 %v1495
  %v1861 = vunpack.c.h.b16 %v1495
  %v1862 = vunpack.c.l.b16 %v1496
  %v1863 = vunpack.c.h.b16 %v1496
  %v1864 = vunpack.c.l.b16 %v1497
  %v1865 = vunpack.c.h.b16 %v1497
  %v1866 = vunpack.c.l.b16 %v1498
  %v1867 = vunpack.c.h.b16 %v1498
  %v1868 = vunpack.c.l.b16 %v1499
  %v1869 = vunpack.c.h.b16 %v1499
  %v1870 = vunpack.c.l.b16 %v1500
  %v1871 = vunpack.c.h.b16 %v1500
  %v1872 = vunpack.c.l.b16 %v1501
  %v1873 = vunpack.c.h.b16 %v1501
  %v1874 = vunpack.c.l.b16 %v1502
  %v1875 = vunpack.c.h.b16 %v1502
  %v1876 = vunpack.c.l.b16 %v1503
  %v1877 = vunpack.c.h.b16 %v1503
  %v1878 = vunpack.c.l.b16 %v1504
  %v1879 = vunpack.c.h.b16 %v1504
  %v1880 = vunpack.c.l.b16 %v1505
  %v1881 = vunpack.c.h.b16 %v1505
  %v1882 = vunpack.c.l.b16 %v1506
  %v1883 = vunpack.c.h.b16 %v1506
  %v1884 = vunpack.c.l.b16 %v1507
  %v1885 = vunpack.c.h.b16 %v1507
  %v1886 = vunpack.c.l.b16 %v1508
  %v1887 = vunpack.c.h.b16 %v1508
  %v1888 = vunpack.c.l.b16 %v1509
  %v1889 = vunpack.c.h.b16 %v1509
  %v1890 = vunpack.c.l.b16 %v1510
  %v1891 = vunpack.c.h.b16 %v1510
  %v1892 = vunpack.c.l.b16 %v1511
  %v1893 = vunpack.c.h.b16 %v1511
  %v1894 = vunpack.c.l.b16 %v1512
  %v1895 = vunpack.c.h.b16 %v1512
  %v1896 = vunpack.c.l.b16 %v1513
  %v1897 = vunpack.c.h.b16 %v1513
  %v1898 = vpack.c.b16 %v1646, %v1642
  %v1899 = vpack.c.b16 %v1647, %v1643
  %v1900 = vpack.c.b16 %v1648, %v1644
  %v1901 = vpack.c.b16 %v1649, %v1645
  %v1902 = vpack.c.b16 %v1654, %v1650
  %v1903 = vpack.c.b16 %v1655, %v1651
  %v1904 = vpack.c.b16 %v1656, %v1652
  %v1905 = vpack.c.b16 %v1657, %v1653
  %v1906 = vpack.c.b16 %v1662, %v1658
  %v1907 = vpack.c.b16 %v1663, %v1659
  %v1908 = vpack.c.b16 %v1664, %v1660
  %v1909 = vpack.c.b16 %v1665, %v1661
  %v1910 = vpack.c.b16 %v1670, %v1666
  %v1911 = vpack.c.b16 %v1671, %v1667
  %v1912 = vpack.c.b16 %v1672, %v1668
  %v1913 = vpack.c.b16 %v1673, %v1669
  %v1914 = vpack.c.b16 %v1678, %v1674
  %v1915 = vpack.c.b16 %v1679, %v1675
  %v1916 = vpack.c.b16 %v1680, %v1676
  %v1917 = vpack.c.b16 %v1681, %v1677
  %v1918 = vpack.c.b16 %v1686, %v1682
  %v1919 = vpack.c.b16 %v1687, %v1683
  %v1920 = vpack.c.b16 %v1688, %v1684
  %v1921 = vpack.c.b16 %v1689, %v1685
  %v1922 = vpack.c.b16 %v1694, %v1690
  %v1923 = vpack.c.b16 %v1695, %v1691
  %v1924 = vpack.c.b16 %v1696, %v1692
  %v1925 = vpack.c.b16 %v1697, %v1693
  %v1926 = vpack.c.b16 %v1702, %v1698
  %v1927 = vpack.c.b16 %v1703, %v1699
  %v1928 = vpack.c.b16 %v1704, %v1700
  %v1929 = vpack.c.b16 %v1705, %v1701
  %v1930 = vpack.c.b16 %v1710, %v1706
  %v1931 = vpack.c.b16 %v1711, %v1707
  %v1932 = vpack.c.b16 %v1712, %v1708
  %v1933 = vpack.c.b16 %v1713, %v1709
  %v1934 = vpack.c.b16 %v1718, %v1714
  %v1935 = vpack.c.b16 %v1719, %v1715
  %v1936 = vpack.c.b16 %v1720, %v1716
  %v1937 = vpack.c.b16 %v1721, %v1717
  %v1938 = vpack.c.b16 %v1726, %v1722
  %v1939 = vpack.c.b16 %v1727, %v1723
  %v1940 = vpack.c.b16 %v1728, %v1724
  %v1941 = vpack.c.b16 %v1729, %v1725
  %v1942 = vpack.c.b16 %v1734, %v1730
  %v1943 = vpack.c.b16 %v1735, %v1731
  %v1944 = vpack.c.b16 %v1736, %v1732
  %v1945 = vpack.c.b16 %v1737, %v1733
  %v1946 = vpack.c.b16 %v1742, %v1738
  %v1947 = vpack.c.b16 %v1743, %v1739
  %v1948 = vpack.c.b16 %v1744, %v1740
  %v1949 = vpack.c.b16 %v1745, %v1741
  %v1950 = vpack.c.b16 %v1750, %v1746
  %v1951 = vpack.c.b16 %v1751, %v1747
  %v1952 = vpack.c.b16 %v1752, %v1748
  %v1953 = vpack.c.b16 %v1753, %v1749
  %v1954 = vpack.c.b16 %v1758, %v1754
  %v1955 = vpack.c.b16 %v1759, %v1755
  %v1956 = vpack.c.b16 %v1760, %v1756
  %v1957 = vpack.c.b16 %v1761, %v1757
  %v1958 = vpack.c.b16 %v1766, %v1762
  %v1959 = vpack.c.b16 %v1767, %v1763
  %v1960 = vpack.c.b16 %v1768, %v1764
  %v1961 = vpack.c.b16 %v1769, %v1765
  %v1962 = vpack.c.b16 %v1774, %v1770
  %v1963 = vpack.c.b16 %v1775, %v1771
  %v1964 = vpack.c.b16 %v1776, %v1772
  %v1965 = vpack.c.b16 %v1777, %v1773
  %v1966 = vpack.c.b16 %v1782, %v1778
  %v1967 = vpack.c.b16 %v1783, %v1779
  %v1968 = vpack.c.b16 %v1784, %v1780
  %v1969 = vpack.c.b16 %v1785, %v1781
  %v1970 = vpack.c.b16 %v1790, %v1786
  %v1971 = vpack.c.b16 %v1791, %v1787
  %v1972 = vpack.c.b16 %v1792, %v1788
  %v1973 = vpack.c.b16 %v1793, %v1789
  %v1974 = vpack.c.b16 %v1798, %v1794
  %v1975 = vpack.c.b16 %v1799, %v1795
  %v1976 = vpack.c.b16 %v1800, %v1796
  %v1977 = vpack.c.b16 %v1801, %v1797
  %v1978 = vpack.c.b16 %v1806, %v1802
  %v1979 = vpack.c.b16 %v1807, %v1803
  %v1980 = vpack.c.b16 %v1808, %v1804
  %v1981 = vpack.c.b16 %v1809, %v1805
  %v1982 = vpack.c.b16 %v1814, %v1810
  %v1983 = vpack.c.b16 %v1815, %v1811
  %v1984 = vpack.c.b16 %v1816, %v1812
  %v1985 = vpack.c.b16 %v1817, %v1813
  %v1986 = vpack.c.b16 %v1822, %v1818
  %v1987 = vpack.c.b16 %v1823, %v1819
  %v1988 = vpack.c.b16 %v1824, %v1820
  %v1989 = vpack.c.b16 %v1825, %v1821
  %v1990 = vpack.c.b16 %v1830, %v1826
  %v1991 = vpack.c.b16 %v1831, %v1827
  %v1992 = vpack.c.b16 %v1832, %v1828
  %v1993 = vpack.c.b16 %v1833, %v1829
  %v1994 = vpack.c.b16 %v1838, %v1834
  %v1995 = vpack.c.b16 %v1839, %v1835
  %v1996 = vpack.c.b16 %v1840, %v1836
  %v1997 = vpack.c.b16 %v1841, %v1837
  %v1998 = vpack.c.b16 %v1846, %v1842
  %v1999 = vpack.c.b16 %v1847, %v1843
  %v2000 = vpack.c.b16 %v1848, %v1844
  %v2001 = vpack.c.b16 %v1849, %v1845
  %v2002 = vpack.c.b16 %v1854, %v1850
  %v2003 = vpack.c.b16 %v1855, %v1851
  %v2004 = vpack.c.b16 %v1856, %v1852
  %v2005 = vpack.c.b16 %v1857, %v1853
  %v2006 = vpack.c.b16 %v1862, %v1858
  %v2007 = vpack.c.b16 %v1863, %v1859
  %v2008 = vpack.c.b16 %v1864, %v1860
  %v2009 = vpack.c.b16 %v1865, %v1861
  %v2010 = vpack.c.b16 %v1870, %v1866
  %v2011 = vpack.c.b16 %v1871, %v1867
  %v2012 = vpack.c.b16 %v1872, %v1868
  %v2013 = vpack.c.b16 %v1873, %v1869
  %v2014 = vpack.c.b16 %v1878, %v1874
  %v2015 = vpack.c.b16 %v1879, %v1875
  %v2016 = vpack.c.b16 %v1880, %v1876
  %v2017 = vpack.c.b16 %v1881, %v1877
  %v2018 = vpack.c.b16 %v1886, %v1882
  %v2019 = vpack.c.b16 %v1887, %v1883
  %v2020 = vpack.c.b16 %v1888, %v1884
  %v2021 = vpack.c.b16 %v1889, %v1885
  %v2022 = vpack.c.b16 %v1894, %v1890
  %v2023 = vpack.c.b16 %v1895, %v1891
  %v2024 = vpack.c.b16 %v1896, %v1892
  %v2025 = vpack.c.b16 %v1897, %v1893
  %2154 = vmatprep.subr.bf16.mxu0 %v1927
  %2155 = vmatpush1.bf16.msra.mxu0 %v1926
  %2156 = vmatprep.subr.bf16.mxu0 %v1923
  %2157 = vmatpush1.bf16.msra.mxu0 %v1922
  %2158 = vmatprep.subr.bf16.mxu0 %v1919
  %2159 = vmatpush1.bf16.msra.mxu0 %v1918
  %2160 = vmatprep.subr.bf16.mxu0 %v1915
  %2161 = vmatpush1.bf16.msra.mxu0 %v1914
  %2162 = vmatprep.subr.bf16.mxu0 %v1911
  %2163 = vmatpush1.bf16.msra.mxu0 %v1910
  %2164 = vmatprep.subr.bf16.mxu0 %v1907
  %2165 = vmatpush1.bf16.msra.mxu0 %v1906
  %2166 = vmatprep.subr.bf16.mxu0 %v1903
  %2167 = vmatpush1.bf16.msra.mxu0 %v1902
  %2168 = vmatprep.subr.bf16.mxu0 %v1899
  %2169 = vmatpush1.bf16.msra.mxu0 %v1898
  %2170 = vmatprep.subr.bf16.mxu0 %v1959
  %2171 = vmatpush2.bf16.msra.mxu0 %v1958
  %2172 = vmatprep.subr.bf16.mxu0 %v1955
  %2173 = vmatpush2.bf16.msra.mxu0 %v1954
  %2174 = vmatprep.subr.bf16.mxu0 %v1951
  %2175 = vmatpush2.bf16.msra.mxu0 %v1950
  %2176 = vmatprep.subr.bf16.mxu0 %v1947
  %2177 = vmatpush2.bf16.msra.mxu0 %v1946
  %2178 = vmatprep.subr.bf16.mxu0 %v1943
  %2179 = vmatpush2.bf16.msra.mxu0 %v1942
  %2180 = vmatprep.subr.bf16.mxu0 %v1939
  %2181 = vmatpush2.bf16.msra.mxu0 %v1938
  %2182 = vmatprep.subr.bf16.mxu0 %v1935
  %2183 = vmatpush2.bf16.msra.mxu0 %v1934
  %2184 = vmatprep.subr.bf16.mxu0 %v1931
  %2185 = vmatpush2.bf16.msra.mxu0 %v1930
  %2186 = vmatprep.mubr.bf16.mxu0 %v1287
  %2187 = vmatmul.mubr.bf16.gmra.mxu0 %v1286
  %v2188 = vpop.f32.mrf.mxu0
  %v2189 = vadd.f32 0.0, %v2188
  %v2190 = vpop.f32.mrf.mxu0
  %v2191 = vadd.f32 0.0, %v2190
  %v2192 = vpop.f32.mrf.mxu0
  %v2193 = vadd.f32 0.0, %v2192
  %v2194 = vpop.f32.mrf.mxu0
  %v2195 = vadd.f32 0.0, %v2194
  %2196 = vmatprep.mubr.bf16.mxu0 %v1291
  %2197 = vmatmul.mubr.bf16.gmra.mxu0 %v1290
  %v2198 = vpop.f32.mrf.mxu0
  %v2199 = vadd.f32 0.0, %v2198
  %v2200 = vpop.f32.mrf.mxu0
  %v2201 = vadd.f32 0.0, %v2200
  %v2202 = vpop.f32.mrf.mxu0
  %v2203 = vadd.f32 0.0, %v2202
  %v2204 = vpop.f32.mrf.mxu0
  %v2205 = vadd.f32 0.0, %v2204
  %2206 = vmatprep.mubr.bf16.mxu0 %v1295
  %2207 = vmatmul.mubr.bf16.gmra.mxu0 %v1294
  %v2208 = vpop.f32.mrf.mxu0
  %v2209 = vadd.f32 0.0, %v2208
  %v2210 = vpop.f32.mrf.mxu0
  %v2211 = vadd.f32 0.0, %v2210
  %v2212 = vpop.f32.mrf.mxu0
  %v2213 = vadd.f32 0.0, %v2212
  %v2214 = vpop.f32.mrf.mxu0
  %v2215 = vadd.f32 0.0, %v2214
  %2216 = vmatprep.mubr.bf16.mxu0 %v1299
  %2217 = vmatmul.mubr.bf16.gmra.mxu0 %v1298
  %v2218 = vpop.f32.mrf.mxu0
  %v2219 = vadd.f32 0.0, %v2218
  %v2220 = vpop.f32.mrf.mxu0
  %v2221 = vadd.f32 0.0, %v2220
  %v2222 = vpop.f32.mrf.mxu0
  %v2223 = vadd.f32 0.0, %v2222
  %v2224 = vpop.f32.mrf.mxu0
  %v2225 = vadd.f32 0.0, %v2224
  %2226 = vmatprep.mubr.bf16.mxu0 %v1303
  %2227 = vmatmul.mubr.bf16.gmra.mxu0 %v1302
  %v2228 = vpop.f32.mrf.mxu0
  %v2229 = vadd.f32 0.0, %v2228
  %v2230 = vpop.f32.mrf.mxu0
  %v2231 = vadd.f32 0.0, %v2230
  %v2232 = vpop.f32.mrf.mxu0
  %v2233 = vadd.f32 0.0, %v2232
  %v2234 = vpop.f32.mrf.mxu0
  %v2235 = vadd.f32 0.0, %v2234
  %2236 = vmatprep.mubr.bf16.mxu0 %v1307
  %2237 = vmatmul.mubr.bf16.gmra.mxu0 %v1306
  %v2238 = vpop.f32.mrf.mxu0
  %v2239 = vadd.f32 0.0, %v2238
  %v2240 = vpop.f32.mrf.mxu0
  %v2241 = vadd.f32 0.0, %v2240
  %v2242 = vpop.f32.mrf.mxu0
  %v2243 = vadd.f32 0.0, %v2242
  %v2244 = vpop.f32.mrf.mxu0
  %v2245 = vadd.f32 0.0, %v2244
  %2246 = vmatprep.mubr.bf16.mxu0 %v1311
  %2247 = vmatmul.mubr.bf16.gmra.mxu0 %v1310
  %v2248 = vpop.f32.mrf.mxu0
  %v2249 = vadd.f32 0.0, %v2248
  %v2250 = vpop.f32.mrf.mxu0
  %v2251 = vadd.f32 0.0, %v2250
  %v2252 = vpop.f32.mrf.mxu0
  %v2253 = vadd.f32 0.0, %v2252
  %v2254 = vpop.f32.mrf.mxu0
  %v2255 = vadd.f32 0.0, %v2254
  %2256 = vmatprep.mubr.bf16.mxu0 %v1315
  %2257 = vmatmul.mubr.bf16.gmra.mxu0 %v1314
  %v2258 = vpop.f32.mrf.mxu0
  %v2259 = vadd.f32 0.0, %v2258
  %v2260 = vpop.f32.mrf.mxu0
  %v2261 = vadd.f32 0.0, %v2260
  %v2262 = vpop.f32.mrf.mxu0
  %v2263 = vadd.f32 0.0, %v2262
  %v2264 = vpop.f32.mrf.mxu0
  %v2265 = vadd.f32 0.0, %v2264
  %2266 = vmatprep.mubr.bf16.mxu0 %v1319
  %2267 = vmatmul.mubr.bf16.gmra.mxu0 %v1318
  %v2268 = vpop.f32.mrf.mxu0
  %v2269 = vadd.f32 0.0, %v2268
  %v2270 = vpop.f32.mrf.mxu0
  %v2271 = vadd.f32 0.0, %v2270
  %v2272 = vpop.f32.mrf.mxu0
  %v2273 = vadd.f32 0.0, %v2272
  %v2274 = vpop.f32.mrf.mxu0
  %v2275 = vadd.f32 0.0, %v2274
  %2276 = vmatprep.mubr.bf16.mxu0 %v1323
  %2277 = vmatmul.mubr.bf16.gmra.mxu0 %v1322
  %v2278 = vpop.f32.mrf.mxu0
  %v2279 = vadd.f32 0.0, %v2278
  %v2280 = vpop.f32.mrf.mxu0
  %v2281 = vadd.f32 0.0, %v2280
  %v2282 = vpop.f32.mrf.mxu0
  %v2283 = vadd.f32 0.0, %v2282
  %v2284 = vpop.f32.mrf.mxu0
  %v2285 = vadd.f32 0.0, %v2284
  %2286 = vmatprep.mubr.bf16.mxu0 %v1327
  %2287 = vmatmul.mubr.bf16.gmra.mxu0 %v1326
  %v2288 = vpop.f32.mrf.mxu0
  %v2289 = vadd.f32 0.0, %v2288
  %v2290 = vpop.f32.mrf.mxu0
  %v2291 = vadd.f32 0.0, %v2290
  %v2292 = vpop.f32.mrf.mxu0
  %v2293 = vadd.f32 0.0, %v2292
  %v2294 = vpop.f32.mrf.mxu0
  %v2295 = vadd.f32 0.0, %v2294
  %2296 = vmatprep.mubr.bf16.mxu0 %v1331
  %2297 = vmatmul.mubr.bf16.gmra.mxu0 %v1330
  %v2298 = vpop.f32.mrf.mxu0
  %v2299 = vadd.f32 0.0, %v2298
  %v2300 = vpop.f32.mrf.mxu0
  %v2301 = vadd.f32 0.0, %v2300
  %v2302 = vpop.f32.mrf.mxu0
  %v2303 = vadd.f32 0.0, %v2302
  %v2304 = vpop.f32.mrf.mxu0
  %v2305 = vadd.f32 0.0, %v2304
  %2306 = vmatprep.mubr.bf16.mxu0 %v1335
  %2307 = vmatmul.mubr.bf16.gmra.mxu0 %v1334
  %v2308 = vpop.f32.mrf.mxu0
  %v2309 = vadd.f32 0.0, %v2308
  %v2310 = vpop.f32.mrf.mxu0
  %v2311 = vadd.f32 0.0, %v2310
  %v2312 = vpop.f32.mrf.mxu0
  %v2313 = vadd.f32 0.0, %v2312
  %v2314 = vpop.f32.mrf.mxu0
  %v2315 = vadd.f32 0.0, %v2314
  %2316 = vmatprep.mubr.bf16.mxu0 %v1339
  %2317 = vmatmul.mubr.bf16.gmra.mxu0 %v1338
  %v2318 = vpop.f32.mrf.mxu0
  %v2319 = vadd.f32 0.0, %v2318
  %v2320 = vpop.f32.mrf.mxu0
  %v2321 = vadd.f32 0.0, %v2320
  %v2322 = vpop.f32.mrf.mxu0
  %v2323 = vadd.f32 0.0, %v2322
  %v2324 = vpop.f32.mrf.mxu0
  %v2325 = vadd.f32 0.0, %v2324
  %2326 = vmatprep.mubr.bf16.mxu0 %v1343
  %2327 = vmatmul.mubr.bf16.gmra.mxu0 %v1342
  %v2328 = vpop.f32.mrf.mxu0
  %v2329 = vadd.f32 0.0, %v2328
  %v2330 = vpop.f32.mrf.mxu0
  %v2331 = vadd.f32 0.0, %v2330
  %v2332 = vpop.f32.mrf.mxu0
  %v2333 = vadd.f32 0.0, %v2332
  %v2334 = vpop.f32.mrf.mxu0
  %v2335 = vadd.f32 0.0, %v2334
  %2336 = vmatprep.mubr.bf16.mxu0 %v1347
  %2337 = vmatmul.mubr.bf16.gmra.mxu0 %v1346
  %v2338 = vpop.f32.mrf.mxu0
  %v2339 = vadd.f32 0.0, %v2338
  %v2340 = vpop.f32.mrf.mxu0
  %v2341 = vadd.f32 0.0, %v2340
  %v2342 = vpop.f32.mrf.mxu0
  %v2343 = vadd.f32 0.0, %v2342
  %v2344 = vpop.f32.mrf.mxu0
  %v2345 = vadd.f32 0.0, %v2344
  %2346 = vmatprep.mubr.bf16.mxu0 %v1351
  %2347 = vmatmul.mubr.bf16.gmra.mxu0 %v1350
  %v2348 = vpop.f32.mrf.mxu0
  %v2349 = vadd.f32 0.0, %v2348
  %v2350 = vpop.f32.mrf.mxu0
  %v2351 = vadd.f32 0.0, %v2350
  %v2352 = vpop.f32.mrf.mxu0
  %v2353 = vadd.f32 0.0, %v2352
  %v2354 = vpop.f32.mrf.mxu0
  %v2355 = vadd.f32 0.0, %v2354
  %2356 = vmatprep.mubr.bf16.mxu0 %v1355
  %2357 = vmatmul.mubr.bf16.gmra.mxu0 %v1354
  %v2358 = vpop.f32.mrf.mxu0
  %v2359 = vadd.f32 0.0, %v2358
  %v2360 = vpop.f32.mrf.mxu0
  %v2361 = vadd.f32 0.0, %v2360
  %v2362 = vpop.f32.mrf.mxu0
  %v2363 = vadd.f32 0.0, %v2362
  %v2364 = vpop.f32.mrf.mxu0
  %v2365 = vadd.f32 0.0, %v2364
  %2366 = vmatprep.mubr.bf16.mxu0 %v1359
  %2367 = vmatmul.mubr.bf16.gmra.mxu0 %v1358
  %v2368 = vpop.f32.mrf.mxu0
  %v2369 = vadd.f32 0.0, %v2368
  %v2370 = vpop.f32.mrf.mxu0
  %v2371 = vadd.f32 0.0, %v2370
  %v2372 = vpop.f32.mrf.mxu0
  %v2373 = vadd.f32 0.0, %v2372
  %v2374 = vpop.f32.mrf.mxu0
  %v2375 = vadd.f32 0.0, %v2374
  %2376 = vmatprep.mubr.bf16.mxu0 %v1363
  %2377 = vmatmul.mubr.bf16.gmra.mxu0 %v1362
  %v2378 = vpop.f32.mrf.mxu0
  %v2379 = vadd.f32 0.0, %v2378
  %v2380 = vpop.f32.mrf.mxu0
  %v2381 = vadd.f32 0.0, %v2380
  %v2382 = vpop.f32.mrf.mxu0
  %v2383 = vadd.f32 0.0, %v2382
  %v2384 = vpop.f32.mrf.mxu0
  %v2385 = vadd.f32 0.0, %v2384
  %2386 = vmatprep.mubr.bf16.mxu0 %v1367
  %2387 = vmatmul.mubr.bf16.gmra.mxu0 %v1366
  %v2388 = vpop.f32.mrf.mxu0
  %v2389 = vadd.f32 0.0, %v2388
  %v2390 = vpop.f32.mrf.mxu0
  %v2391 = vadd.f32 0.0, %v2390
  %v2392 = vpop.f32.mrf.mxu0
  %v2393 = vadd.f32 0.0, %v2392
  %v2394 = vpop.f32.mrf.mxu0
  %v2395 = vadd.f32 0.0, %v2394
  %2396 = vmatprep.mubr.bf16.mxu0 %v1371
  %2397 = vmatmul.mubr.bf16.gmra.mxu0 %v1370
  %v2398 = vpop.f32.mrf.mxu0
  %v2399 = vadd.f32 0.0, %v2398
  %v2400 = vpop.f32.mrf.mxu0
  %v2401 = vadd.f32 0.0, %v2400
  %v2402 = vpop.f32.mrf.mxu0
  %v2403 = vadd.f32 0.0, %v2402
  %v2404 = vpop.f32.mrf.mxu0
  %v2405 = vadd.f32 0.0, %v2404
  %2406 = vmatprep.mubr.bf16.mxu0 %v1375
  %2407 = vmatmul.mubr.bf16.gmra.mxu0 %v1374
  %v2408 = vpop.f32.mrf.mxu0
  %v2409 = vadd.f32 0.0, %v2408
  %v2410 = vpop.f32.mrf.mxu0
  %v2411 = vadd.f32 0.0, %v2410
  %v2412 = vpop.f32.mrf.mxu0
  %v2413 = vadd.f32 0.0, %v2412
  %v2414 = vpop.f32.mrf.mxu0
  %v2415 = vadd.f32 0.0, %v2414
  %2416 = vmatprep.mubr.bf16.mxu0 %v1379
  %2417 = vmatmul.mubr.bf16.gmra.mxu0 %v1378
  %v2418 = vpop.f32.mrf.mxu0
  %v2419 = vadd.f32 0.0, %v2418
  %v2420 = vpop.f32.mrf.mxu0
  %v2421 = vadd.f32 0.0, %v2420
  %v2422 = vpop.f32.mrf.mxu0
  %v2423 = vadd.f32 0.0, %v2422
  %v2424 = vpop.f32.mrf.mxu0
  %v2425 = vadd.f32 0.0, %v2424
  %2426 = vmatprep.mubr.bf16.mxu0 %v1383
  %2427 = vmatmul.mubr.bf16.gmra.mxu0 %v1382
  %v2428 = vpop.f32.mrf.mxu0
  %v2429 = vadd.f32 0.0, %v2428
  %v2430 = vpop.f32.mrf.mxu0
  %v2431 = vadd.f32 0.0, %v2430
  %v2432 = vpop.f32.mrf.mxu0
  %v2433 = vadd.f32 0.0, %v2432
  %v2434 = vpop.f32.mrf.mxu0
  %v2435 = vadd.f32 0.0, %v2434
  %2436 = vdwg.mxu0
  %2437 = vmatprep.subr.bf16.mxu0 %v1991
  %2438 = vmatpush1.bf16.msra.mxu0 %v1990
  %2439 = vmatprep.subr.bf16.mxu0 %v1987
  %2440 = vmatpush1.bf16.msra.mxu0 %v1986
  %2441 = vmatprep.subr.bf16.mxu0 %v1983
  %2442 = vmatpush1.bf16.msra.mxu0 %v1982
  %2443 = vmatprep.subr.bf16.mxu0 %v1979
  %2444 = vmatpush1.bf16.msra.mxu0 %v1978
  %2445 = vmatprep.subr.bf16.mxu0 %v1975
  %2446 = vmatpush1.bf16.msra.mxu0 %v1974
  %2447 = vmatprep.subr.bf16.mxu0 %v1971
  %2448 = vmatpush1.bf16.msra.mxu0 %v1970
  %2449 = vmatprep.subr.bf16.mxu0 %v1967
  %2450 = vmatpush1.bf16.msra.mxu0 %v1966
  %2451 = vmatprep.subr.bf16.mxu0 %v1963
  %2452 = vmatpush1.bf16.msra.mxu0 %v1962
  %2453 = vmatprep.subr.bf16.mxu0 %v2023
  %2454 = vmatpush2.bf16.msra.mxu0 %v2022
  %2455 = vmatprep.subr.bf16.mxu0 %v2019
  %2456 = vmatpush2.bf16.msra.mxu0 %v2018
  %2457 = vmatprep.subr.bf16.mxu0 %v2015
  %2458 = vmatpush2.bf16.msra.mxu0 %v2014
  %2459 = vmatprep.subr.bf16.mxu0 %v2011
  %2460 = vmatpush2.bf16.msra.mxu0 %v2010
  %2461 = vmatprep.subr.bf16.mxu0 %v2007
  %2462 = vmatpush2.bf16.msra.mxu0 %v2006
  %2463 = vmatprep.subr.bf16.mxu0 %v2003
  %2464 = vmatpush2.bf16.msra.mxu0 %v2002
  %2465 = vmatprep.subr.bf16.mxu0 %v1999
  %2466 = vmatpush2.bf16.msra.mxu0 %v1998
  %2467 = vmatprep.subr.bf16.mxu0 %v1995
  %2468 = vmatpush2.bf16.msra.mxu0 %v1994
  %2469 = vmatprep.mubr.bf16.mxu0 %v1289
  %2470 = vmatmul.mubr.bf16.gmra.mxu0 %v1288
  %v2471 = vpop.f32.mrf.mxu0
  %v2472 = vadd.f32 %v2189, %v2471
  %v2473 = vpop.f32.mrf.mxu0
  %v2474 = vadd.f32 %v2191, %v2473
  %v2475 = vpop.f32.mrf.mxu0
  %v2476 = vadd.f32 %v2193, %v2475
  %v2477 = vpop.f32.mrf.mxu0
  %v2478 = vadd.f32 %v2195, %v2477
  %2479 = vmatprep.mubr.bf16.mxu0 %v1293
  %2480 = vmatmul.mubr.bf16.gmra.mxu0 %v1292
  %v2481 = vpop.f32.mrf.mxu0
  %v2482 = vadd.f32 %v2199, %v2481
  %v2483 = vpop.f32.mrf.mxu0
  %v2484 = vadd.f32 %v2201, %v2483
  %v2485 = vpop.f32.mrf.mxu0
  %v2486 = vadd.f32 %v2203, %v2485
  %v2487 = vpop.f32.mrf.mxu0
  %v2488 = vadd.f32 %v2205, %v2487
  %2489 = vmatprep.mubr.bf16.mxu0 %v1297
  %2490 = vmatmul.mubr.bf16.gmra.mxu0 %v1296
  %v2491 = vpop.f32.mrf.mxu0
  %v2492 = vadd.f32 %v2209, %v2491
  %v2493 = vpop.f32.mrf.mxu0
  %v2494 = vadd.f32 %v2211, %v2493
  %v2495 = vpop.f32.mrf.mxu0
  %v2496 = vadd.f32 %v2213, %v2495
  %v2497 = vpop.f32.mrf.mxu0
  %v2498 = vadd.f32 %v2215, %v2497
  %2499 = vmatprep.mubr.bf16.mxu0 %v1301
  %2500 = vmatmul.mubr.bf16.gmra.mxu0 %v1300
  %v2501 = vpop.f32.mrf.mxu0
  %v2502 = vadd.f32 %v2219, %v2501
  %v2503 = vpop.f32.mrf.mxu0
  %v2504 = vadd.f32 %v2221, %v2503
  %v2505 = vpop.f32.mrf.mxu0
  %v2506 = vadd.f32 %v2223, %v2505
  %v2507 = vpop.f32.mrf.mxu0
  %v2508 = vadd.f32 %v2225, %v2507
  %2509 = vmatprep.mubr.bf16.mxu0 %v1305
  %2510 = vmatmul.mubr.bf16.gmra.mxu0 %v1304
  %v2511 = vpop.f32.mrf.mxu0
  %v2512 = vadd.f32 %v2229, %v2511
  %v2513 = vpop.f32.mrf.mxu0
  %v2514 = vadd.f32 %v2231, %v2513
  %v2515 = vpop.f32.mrf.mxu0
  %v2516 = vadd.f32 %v2233, %v2515
  %v2517 = vpop.f32.mrf.mxu0
  %v2518 = vadd.f32 %v2235, %v2517
  %2519 = vmatprep.mubr.bf16.mxu0 %v1309
  %2520 = vmatmul.mubr.bf16.gmra.mxu0 %v1308
  %v2521 = vpop.f32.mrf.mxu0
  %v2522 = vadd.f32 %v2239, %v2521
  %v2523 = vpop.f32.mrf.mxu0
  %v2524 = vadd.f32 %v2241, %v2523
  %v2525 = vpop.f32.mrf.mxu0
  %v2526 = vadd.f32 %v2243, %v2525
  %v2527 = vpop.f32.mrf.mxu0
  %v2528 = vadd.f32 %v2245, %v2527
  %2529 = vmatprep.mubr.bf16.mxu0 %v1313
  %2530 = vmatmul.mubr.bf16.gmra.mxu0 %v1312
  %v2531 = vpop.f32.mrf.mxu0
  %v2532 = vadd.f32 %v2249, %v2531
  %v2533 = vpop.f32.mrf.mxu0
  %v2534 = vadd.f32 %v2251, %v2533
  %v2535 = vpop.f32.mrf.mxu0
  %v2536 = vadd.f32 %v2253, %v2535
  %v2537 = vpop.f32.mrf.mxu0
  %v2538 = vadd.f32 %v2255, %v2537
  %2539 = vmatprep.mubr.bf16.mxu0 %v1317
  %2540 = vmatmul.mubr.bf16.gmra.mxu0 %v1316
  %v2541 = vpop.f32.mrf.mxu0
  %v2542 = vadd.f32 %v2259, %v2541
  %v2543 = vpop.f32.mrf.mxu0
  %v2544 = vadd.f32 %v2261, %v2543
  %v2545 = vpop.f32.mrf.mxu0
  %v2546 = vadd.f32 %v2263, %v2545
  %v2547 = vpop.f32.mrf.mxu0
  %v2548 = vadd.f32 %v2265, %v2547
  %2549 = vmatprep.mubr.bf16.mxu0 %v1321
  %2550 = vmatmul.mubr.bf16.gmra.mxu0 %v1320
  %v2551 = vpop.f32.mrf.mxu0
  %v2552 = vadd.f32 %v2269, %v2551
  %v2553 = vpop.f32.mrf.mxu0
  %v2554 = vadd.f32 %v2271, %v2553
  %v2555 = vpop.f32.mrf.mxu0
  %v2556 = vadd.f32 %v2273, %v2555
  %v2557 = vpop.f32.mrf.mxu0
  %v2558 = vadd.f32 %v2275, %v2557
  %2559 = vmatprep.mubr.bf16.mxu0 %v1325
  %2560 = vmatmul.mubr.bf16.gmra.mxu0 %v1324
  %v2561 = vpop.f32.mrf.mxu0
  %v2562 = vadd.f32 %v2279, %v2561
  %v2563 = vpop.f32.mrf.mxu0
  %v2564 = vadd.f32 %v2281, %v2563
  %v2565 = vpop.f32.mrf.mxu0
  %v2566 = vadd.f32 %v2283, %v2565
  %v2567 = vpop.f32.mrf.mxu0
  %v2568 = vadd.f32 %v2285, %v2567
  %2569 = vmatprep.mubr.bf16.mxu0 %v1329
  %2570 = vmatmul.mubr.bf16.gmra.mxu0 %v1328
  %v2571 = vpop.f32.mrf.mxu0
  %v2572 = vadd.f32 %v2289, %v2571
  %v2573 = vpop.f32.mrf.mxu0
  %v2574 = vadd.f32 %v2291, %v2573
  %v2575 = vpop.f32.mrf.mxu0
  %v2576 = vadd.f32 %v2293, %v2575
  %v2577 = vpop.f32.mrf.mxu0
  %v2578 = vadd.f32 %v2295, %v2577
  %2579 = vmatprep.mubr.bf16.mxu0 %v1333
  %2580 = vmatmul.mubr.bf16.gmra.mxu0 %v1332
  %v2581 = vpop.f32.mrf.mxu0
  %v2582 = vadd.f32 %v2299, %v2581
  %v2583 = vpop.f32.mrf.mxu0
  %v2584 = vadd.f32 %v2301, %v2583
  %v2585 = vpop.f32.mrf.mxu0
  %v2586 = vadd.f32 %v2303, %v2585
  %v2587 = vpop.f32.mrf.mxu0
  %v2588 = vadd.f32 %v2305, %v2587
  %2589 = vmatprep.mubr.bf16.mxu0 %v1337
  %2590 = vmatmul.mubr.bf16.gmra.mxu0 %v1336
  %v2591 = vpop.f32.mrf.mxu0
  %v2592 = vadd.f32 %v2309, %v2591
  %v2593 = vpop.f32.mrf.mxu0
  %v2594 = vadd.f32 %v2311, %v2593
  %v2595 = vpop.f32.mrf.mxu0
  %v2596 = vadd.f32 %v2313, %v2595
  %v2597 = vpop.f32.mrf.mxu0
  %v2598 = vadd.f32 %v2315, %v2597
  %2599 = vmatprep.mubr.bf16.mxu0 %v1341
  %2600 = vmatmul.mubr.bf16.gmra.mxu0 %v1340
  %v2601 = vpop.f32.mrf.mxu0
  %v2602 = vadd.f32 %v2319, %v2601
  %v2603 = vpop.f32.mrf.mxu0
  %v2604 = vadd.f32 %v2321, %v2603
  %v2605 = vpop.f32.mrf.mxu0
  %v2606 = vadd.f32 %v2323, %v2605
  %v2607 = vpop.f32.mrf.mxu0
  %v2608 = vadd.f32 %v2325, %v2607
  %2609 = vmatprep.mubr.bf16.mxu0 %v1345
  %2610 = vmatmul.mubr.bf16.gmra.mxu0 %v1344
  %v2611 = vpop.f32.mrf.mxu0
  %v2612 = vadd.f32 %v2329, %v2611
  %v2613 = vpop.f32.mrf.mxu0
  %v2614 = vadd.f32 %v2331, %v2613
  %v2615 = vpop.f32.mrf.mxu0
  %v2616 = vadd.f32 %v2333, %v2615
  %v2617 = vpop.f32.mrf.mxu0
  %v2618 = vadd.f32 %v2335, %v2617
  %2619 = vmatprep.mubr.bf16.mxu0 %v1349
  %2620 = vmatmul.mubr.bf16.gmra.mxu0 %v1348
  %v2621 = vpop.f32.mrf.mxu0
  %v2622 = vadd.f32 %v2339, %v2621
  %v2623 = vpop.f32.mrf.mxu0
  %v2624 = vadd.f32 %v2341, %v2623
  %v2625 = vpop.f32.mrf.mxu0
  %v2626 = vadd.f32 %v2343, %v2625
  %v2627 = vpop.f32.mrf.mxu0
  %v2628 = vadd.f32 %v2345, %v2627
  %2629 = vmatprep.mubr.bf16.mxu0 %v1353
  %2630 = vmatmul.mubr.bf16.gmra.mxu0 %v1352
  %v2631 = vpop.f32.mrf.mxu0
  %v2632 = vadd.f32 %v2349, %v2631
  %v2633 = vpop.f32.mrf.mxu0
  %v2634 = vadd.f32 %v2351, %v2633
  %v2635 = vpop.f32.mrf.mxu0
  %v2636 = vadd.f32 %v2353, %v2635
  %v2637 = vpop.f32.mrf.mxu0
  %v2638 = vadd.f32 %v2355, %v2637
  %2639 = vmatprep.mubr.bf16.mxu0 %v1357
  %2640 = vmatmul.mubr.bf16.gmra.mxu0 %v1356
  %v2641 = vpop.f32.mrf.mxu0
  %v2642 = vadd.f32 %v2359, %v2641
  %v2643 = vpop.f32.mrf.mxu0
  %v2644 = vadd.f32 %v2361, %v2643
  %v2645 = vpop.f32.mrf.mxu0
  %v2646 = vadd.f32 %v2363, %v2645
  %v2647 = vpop.f32.mrf.mxu0
  %v2648 = vadd.f32 %v2365, %v2647
  %2649 = vmatprep.mubr.bf16.mxu0 %v1361
  %2650 = vmatmul.mubr.bf16.gmra.mxu0 %v1360
  %v2651 = vpop.f32.mrf.mxu0
  %v2652 = vadd.f32 %v2369, %v2651
  %v2653 = vpop.f32.mrf.mxu0
  %v2654 = vadd.f32 %v2371, %v2653
  %v2655 = vpop.f32.mrf.mxu0
  %v2656 = vadd.f32 %v2373, %v2655
  %v2657 = vpop.f32.mrf.mxu0
  %v2658 = vadd.f32 %v2375, %v2657
  %2659 = vmatprep.mubr.bf16.mxu0 %v1365
  %2660 = vmatmul.mubr.bf16.gmra.mxu0 %v1364
  %v2661 = vpop.f32.mrf.mxu0
  %v2662 = vadd.f32 %v2379, %v2661
  %v2663 = vpop.f32.mrf.mxu0
  %v2664 = vadd.f32 %v2381, %v2663
  %v2665 = vpop.f32.mrf.mxu0
  %v2666 = vadd.f32 %v2383, %v2665
  %v2667 = vpop.f32.mrf.mxu0
  %v2668 = vadd.f32 %v2385, %v2667
  %2669 = vmatprep.mubr.bf16.mxu0 %v1369
  %2670 = vmatmul.mubr.bf16.gmra.mxu0 %v1368
  %v2671 = vpop.f32.mrf.mxu0
  %v2672 = vadd.f32 %v2389, %v2671
  %v2673 = vpop.f32.mrf.mxu0
  %v2674 = vadd.f32 %v2391, %v2673
  %v2675 = vpop.f32.mrf.mxu0
  %v2676 = vadd.f32 %v2393, %v2675
  %v2677 = vpop.f32.mrf.mxu0
  %v2678 = vadd.f32 %v2395, %v2677
  %2679 = vmatprep.mubr.bf16.mxu0 %v1373
  %2680 = vmatmul.mubr.bf16.gmra.mxu0 %v1372
  %v2681 = vpop.f32.mrf.mxu0
  %v2682 = vadd.f32 %v2399, %v2681
  %v2683 = vpop.f32.mrf.mxu0
  %v2684 = vadd.f32 %v2401, %v2683
  %v2685 = vpop.f32.mrf.mxu0
  %v2686 = vadd.f32 %v2403, %v2685
  %v2687 = vpop.f32.mrf.mxu0
  %v2688 = vadd.f32 %v2405, %v2687
  %2689 = vmatprep.mubr.bf16.mxu0 %v1377
  %2690 = vmatmul.mubr.bf16.gmra.mxu0 %v1376
  %v2691 = vpop.f32.mrf.mxu0
  %v2692 = vadd.f32 %v2409, %v2691
  %v2693 = vpop.f32.mrf.mxu0
  %v2694 = vadd.f32 %v2411, %v2693
  %v2695 = vpop.f32.mrf.mxu0
  %v2696 = vadd.f32 %v2413, %v2695
  %v2697 = vpop.f32.mrf.mxu0
  %v2698 = vadd.f32 %v2415, %v2697
  %2699 = vmatprep.mubr.bf16.mxu0 %v1381
  %2700 = vmatmul.mubr.bf16.gmra.mxu0 %v1380
  %v2701 = vpop.f32.mrf.mxu0
  %v2702 = vadd.f32 %v2419, %v2701
  %v2703 = vpop.f32.mrf.mxu0
  %v2704 = vadd.f32 %v2421, %v2703
  %v2705 = vpop.f32.mrf.mxu0
  %v2706 = vadd.f32 %v2423, %v2705
  %v2707 = vpop.f32.mrf.mxu0
  %v2708 = vadd.f32 %v2425, %v2707
  %2709 = vmatprep.mubr.bf16.mxu0 %v1385
  %2710 = vmatmul.mubr.bf16.gmra.mxu0 %v1384
  %v2711 = vpop.f32.mrf.mxu0
  %v2712 = vadd.f32 %v2429, %v2711
  %v2713 = vpop.f32.mrf.mxu0
  %v2714 = vadd.f32 %v2431, %v2713
  %v2715 = vpop.f32.mrf.mxu0
  %v2716 = vadd.f32 %v2433, %v2715
  %v2717 = vpop.f32.mrf.mxu0
  %v2718 = vadd.f32 %v2435, %v2717
  %2719 = vdwg.mxu0
  %2720 = vmatprep.subr.bf16.mxu0 %v1929
  %2721 = vmatpush1.bf16.msra.mxu0 %v1928
  %2722 = vmatprep.subr.bf16.mxu0 %v1925
  %2723 = vmatpush1.bf16.msra.mxu0 %v1924
  %2724 = vmatprep.subr.bf16.mxu0 %v1921
  %2725 = vmatpush1.bf16.msra.mxu0 %v1920
  %2726 = vmatprep.subr.bf16.mxu0 %v1917
  %2727 = vmatpush1.bf16.msra.mxu0 %v1916
  %2728 = vmatprep.subr.bf16.mxu0 %v1913
  %2729 = vmatpush1.bf16.msra.mxu0 %v1912
  %2730 = vmatprep.subr.bf16.mxu0 %v1909
  %2731 = vmatpush1.bf16.msra.mxu0 %v1908
  %2732 = vmatprep.subr.bf16.mxu0 %v1905
  %2733 = vmatpush1.bf16.msra.mxu0 %v1904
  %2734 = vmatprep.subr.bf16.mxu0 %v1901
  %2735 = vmatpush1.bf16.msra.mxu0 %v1900
  %2736 = vmatprep.subr.bf16.mxu0 %v1961
  %2737 = vmatpush2.bf16.msra.mxu0 %v1960
  %2738 = vmatprep.subr.bf16.mxu0 %v1957
  %2739 = vmatpush2.bf16.msra.mxu0 %v1956
  %2740 = vmatprep.subr.bf16.mxu0 %v1953
  %2741 = vmatpush2.bf16.msra.mxu0 %v1952
  %2742 = vmatprep.subr.bf16.mxu0 %v1949
  %2743 = vmatpush2.bf16.msra.mxu0 %v1948
  %2744 = vmatprep.subr.bf16.mxu0 %v1945
  %2745 = vmatpush2.bf16.msra.mxu0 %v1944
  %2746 = vmatprep.subr.bf16.mxu0 %v1941
  %2747 = vmatpush2.bf16.msra.mxu0 %v1940
  %2748 = vmatprep.subr.bf16.mxu0 %v1937
  %2749 = vmatpush2.bf16.msra.mxu0 %v1936
  %2750 = vmatprep.subr.bf16.mxu0 %v1933
  %2751 = vmatpush2.bf16.msra.mxu0 %v1932
  %2752 = vmatprep.mubr.bf16.mxu0 %v1287
  %2753 = vmatmul.mubr.bf16.gmra.mxu0 %v1286
  %v2754 = vpop.f32.mrf.mxu0
  %v2755 = vadd.f32 0.0, %v2754
  %v2756 = vpop.f32.mrf.mxu0
  %v2757 = vadd.f32 0.0, %v2756
  %v2758 = vpop.f32.mrf.mxu0
  %v2759 = vadd.f32 0.0, %v2758
  %v2760 = vpop.f32.mrf.mxu0
  %v2761 = vadd.f32 0.0, %v2760
  %2762 = vmatprep.mubr.bf16.mxu0 %v1291
  %2763 = vmatmul.mubr.bf16.gmra.mxu0 %v1290
  %v2764 = vpop.f32.mrf.mxu0
  %v2765 = vadd.f32 0.0, %v2764
  %v2766 = vpop.f32.mrf.mxu0
  %v2767 = vadd.f32 0.0, %v2766
  %v2768 = vpop.f32.mrf.mxu0
  %v2769 = vadd.f32 0.0, %v2768
  %v2770 = vpop.f32.mrf.mxu0
  %v2771 = vadd.f32 0.0, %v2770
  %2772 = vmatprep.mubr.bf16.mxu0 %v1295
  %2773 = vmatmul.mubr.bf16.gmra.mxu0 %v1294
  %v2774 = vpop.f32.mrf.mxu0
  %v2775 = vadd.f32 0.0, %v2774
  %v2776 = vpop.f32.mrf.mxu0
  %v2777 = vadd.f32 0.0, %v2776
  %v2778 = vpop.f32.mrf.mxu0
  %v2779 = vadd.f32 0.0, %v2778
  %v2780 = vpop.f32.mrf.mxu0
  %v2781 = vadd.f32 0.0, %v2780
  %2782 = vmatprep.mubr.bf16.mxu0 %v1299
  %2783 = vmatmul.mubr.bf16.gmra.mxu0 %v1298
  %v2784 = vpop.f32.mrf.mxu0
  %v2785 = vadd.f32 0.0, %v2784
  %v2786 = vpop.f32.mrf.mxu0
  %v2787 = vadd.f32 0.0, %v2786
  %v2788 = vpop.f32.mrf.mxu0
  %v2789 = vadd.f32 0.0, %v2788
  %v2790 = vpop.f32.mrf.mxu0
  %v2791 = vadd.f32 0.0, %v2790
  %2792 = vmatprep.mubr.bf16.mxu0 %v1303
  %2793 = vmatmul.mubr.bf16.gmra.mxu0 %v1302
  %v2794 = vpop.f32.mrf.mxu0
  %v2795 = vadd.f32 0.0, %v2794
  %v2796 = vpop.f32.mrf.mxu0
  %v2797 = vadd.f32 0.0, %v2796
  %v2798 = vpop.f32.mrf.mxu0
  %v2799 = vadd.f32 0.0, %v2798
  %v2800 = vpop.f32.mrf.mxu0
  %v2801 = vadd.f32 0.0, %v2800
  %2802 = vmatprep.mubr.bf16.mxu0 %v1307
  %2803 = vmatmul.mubr.bf16.gmra.mxu0 %v1306
  %v2804 = vpop.f32.mrf.mxu0
  %v2805 = vadd.f32 0.0, %v2804
  %v2806 = vpop.f32.mrf.mxu0
  %v2807 = vadd.f32 0.0, %v2806
  %v2808 = vpop.f32.mrf.mxu0
  %v2809 = vadd.f32 0.0, %v2808
  %v2810 = vpop.f32.mrf.mxu0
  %v2811 = vadd.f32 0.0, %v2810
  %2812 = vmatprep.mubr.bf16.mxu0 %v1311
  %2813 = vmatmul.mubr.bf16.gmra.mxu0 %v1310
  %v2814 = vpop.f32.mrf.mxu0
  %v2815 = vadd.f32 0.0, %v2814
  %v2816 = vpop.f32.mrf.mxu0
  %v2817 = vadd.f32 0.0, %v2816
  %v2818 = vpop.f32.mrf.mxu0
  %v2819 = vadd.f32 0.0, %v2818
  %v2820 = vpop.f32.mrf.mxu0
  %v2821 = vadd.f32 0.0, %v2820
  %2822 = vmatprep.mubr.bf16.mxu0 %v1315
  %2823 = vmatmul.mubr.bf16.gmra.mxu0 %v1314
  %v2824 = vpop.f32.mrf.mxu0
  %v2825 = vadd.f32 0.0, %v2824
  %v2826 = vpop.f32.mrf.mxu0
  %v2827 = vadd.f32 0.0, %v2826
  %v2828 = vpop.f32.mrf.mxu0
  %v2829 = vadd.f32 0.0, %v2828
  %v2830 = vpop.f32.mrf.mxu0
  %v2831 = vadd.f32 0.0, %v2830
  %2832 = vmatprep.mubr.bf16.mxu0 %v1319
  %2833 = vmatmul.mubr.bf16.gmra.mxu0 %v1318
  %v2834 = vpop.f32.mrf.mxu0
  %v2835 = vadd.f32 0.0, %v2834
  %v2836 = vpop.f32.mrf.mxu0
  %v2837 = vadd.f32 0.0, %v2836
  %v2838 = vpop.f32.mrf.mxu0
  %v2839 = vadd.f32 0.0, %v2838
  %v2840 = vpop.f32.mrf.mxu0
  %v2841 = vadd.f32 0.0, %v2840
  %2842 = vmatprep.mubr.bf16.mxu0 %v1323
  %2843 = vmatmul.mubr.bf16.gmra.mxu0 %v1322
  %v2844 = vpop.f32.mrf.mxu0
  %v2845 = vadd.f32 0.0, %v2844
  %v2846 = vpop.f32.mrf.mxu0
  %v2847 = vadd.f32 0.0, %v2846
  %v2848 = vpop.f32.mrf.mxu0
  %v2849 = vadd.f32 0.0, %v2848
  %v2850 = vpop.f32.mrf.mxu0
  %v2851 = vadd.f32 0.0, %v2850
  %2852 = vmatprep.mubr.bf16.mxu0 %v1327
  %2853 = vmatmul.mubr.bf16.gmra.mxu0 %v1326
  %v2854 = vpop.f32.mrf.mxu0
  %v2855 = vadd.f32 0.0, %v2854
  %v2856 = vpop.f32.mrf.mxu0
  %v2857 = vadd.f32 0.0, %v2856
  %v2858 = vpop.f32.mrf.mxu0
  %v2859 = vadd.f32 0.0, %v2858
  %v2860 = vpop.f32.mrf.mxu0
  %v2861 = vadd.f32 0.0, %v2860
  %2862 = vmatprep.mubr.bf16.mxu0 %v1331
  %2863 = vmatmul.mubr.bf16.gmra.mxu0 %v1330
  %v2864 = vpop.f32.mrf.mxu0
  %v2865 = vadd.f32 0.0, %v2864
  %v2866 = vpop.f32.mrf.mxu0
  %v2867 = vadd.f32 0.0, %v2866
  %v2868 = vpop.f32.mrf.mxu0
  %v2869 = vadd.f32 0.0, %v2868
  %v2870 = vpop.f32.mrf.mxu0
  %v2871 = vadd.f32 0.0, %v2870
  %2872 = vmatprep.mubr.bf16.mxu0 %v1335
  %2873 = vmatmul.mubr.bf16.gmra.mxu0 %v1334
  %v2874 = vpop.f32.mrf.mxu0
  %v2875 = vadd.f32 0.0, %v2874
  %v2876 = vpop.f32.mrf.mxu0
  %v2877 = vadd.f32 0.0, %v2876
  %v2878 = vpop.f32.mrf.mxu0
  %v2879 = vadd.f32 0.0, %v2878
  %v2880 = vpop.f32.mrf.mxu0
  %v2881 = vadd.f32 0.0, %v2880
  %2882 = vmatprep.mubr.bf16.mxu0 %v1339
  %2883 = vmatmul.mubr.bf16.gmra.mxu0 %v1338
  %v2884 = vpop.f32.mrf.mxu0
  %v2885 = vadd.f32 0.0, %v2884
  %v2886 = vpop.f32.mrf.mxu0
  %v2887 = vadd.f32 0.0, %v2886
  %v2888 = vpop.f32.mrf.mxu0
  %v2889 = vadd.f32 0.0, %v2888
  %v2890 = vpop.f32.mrf.mxu0
  %v2891 = vadd.f32 0.0, %v2890
  %2892 = vmatprep.mubr.bf16.mxu0 %v1343
  %2893 = vmatmul.mubr.bf16.gmra.mxu0 %v1342
  %v2894 = vpop.f32.mrf.mxu0
  %v2895 = vadd.f32 0.0, %v2894
  %v2896 = vpop.f32.mrf.mxu0
  %v2897 = vadd.f32 0.0, %v2896
  %v2898 = vpop.f32.mrf.mxu0
  %v2899 = vadd.f32 0.0, %v2898
  %v2900 = vpop.f32.mrf.mxu0
  %v2901 = vadd.f32 0.0, %v2900
  %2902 = vmatprep.mubr.bf16.mxu0 %v1347
  %2903 = vmatmul.mubr.bf16.gmra.mxu0 %v1346
  %v2904 = vpop.f32.mrf.mxu0
  %v2905 = vadd.f32 0.0, %v2904
  %v2906 = vpop.f32.mrf.mxu0
  %v2907 = vadd.f32 0.0, %v2906
  %v2908 = vpop.f32.mrf.mxu0
  %v2909 = vadd.f32 0.0, %v2908
  %v2910 = vpop.f32.mrf.mxu0
  %v2911 = vadd.f32 0.0, %v2910
  %2912 = vmatprep.mubr.bf16.mxu0 %v1351
  %2913 = vmatmul.mubr.bf16.gmra.mxu0 %v1350
  %v2914 = vpop.f32.mrf.mxu0
  %v2915 = vadd.f32 0.0, %v2914
  %v2916 = vpop.f32.mrf.mxu0
  %v2917 = vadd.f32 0.0, %v2916
  %v2918 = vpop.f32.mrf.mxu0
  %v2919 = vadd.f32 0.0, %v2918
  %v2920 = vpop.f32.mrf.mxu0
  %v2921 = vadd.f32 0.0, %v2920
  %2922 = vmatprep.mubr.bf16.mxu0 %v1355
  %2923 = vmatmul.mubr.bf16.gmra.mxu0 %v1354
  %v2924 = vpop.f32.mrf.mxu0
  %v2925 = vadd.f32 0.0, %v2924
  %v2926 = vpop.f32.mrf.mxu0
  %v2927 = vadd.f32 0.0, %v2926
  %v2928 = vpop.f32.mrf.mxu0
  %v2929 = vadd.f32 0.0, %v2928
  %v2930 = vpop.f32.mrf.mxu0
  %v2931 = vadd.f32 0.0, %v2930
  %2932 = vmatprep.mubr.bf16.mxu0 %v1359
  %2933 = vmatmul.mubr.bf16.gmra.mxu0 %v1358
  %v2934 = vpop.f32.mrf.mxu0
  %v2935 = vadd.f32 0.0, %v2934
  %v2936 = vpop.f32.mrf.mxu0
  %v2937 = vadd.f32 0.0, %v2936
  %v2938 = vpop.f32.mrf.mxu0
  %v2939 = vadd.f32 0.0, %v2938
  %v2940 = vpop.f32.mrf.mxu0
  %v2941 = vadd.f32 0.0, %v2940
  %2942 = vmatprep.mubr.bf16.mxu0 %v1363
  %2943 = vmatmul.mubr.bf16.gmra.mxu0 %v1362
  %v2944 = vpop.f32.mrf.mxu0
  %v2945 = vadd.f32 0.0, %v2944
  %v2946 = vpop.f32.mrf.mxu0
  %v2947 = vadd.f32 0.0, %v2946
  %v2948 = vpop.f32.mrf.mxu0
  %v2949 = vadd.f32 0.0, %v2948
  %v2950 = vpop.f32.mrf.mxu0
  %v2951 = vadd.f32 0.0, %v2950
  %2952 = vmatprep.mubr.bf16.mxu0 %v1367
  %2953 = vmatmul.mubr.bf16.gmra.mxu0 %v1366
  %v2954 = vpop.f32.mrf.mxu0
  %v2955 = vadd.f32 0.0, %v2954
  %v2956 = vpop.f32.mrf.mxu0
  %v2957 = vadd.f32 0.0, %v2956
  %v2958 = vpop.f32.mrf.mxu0
  %v2959 = vadd.f32 0.0, %v2958
  %v2960 = vpop.f32.mrf.mxu0
  %v2961 = vadd.f32 0.0, %v2960
  %2962 = vmatprep.mubr.bf16.mxu0 %v1371
  %2963 = vmatmul.mubr.bf16.gmra.mxu0 %v1370
  %v2964 = vpop.f32.mrf.mxu0
  %v2965 = vadd.f32 0.0, %v2964
  %v2966 = vpop.f32.mrf.mxu0
  %v2967 = vadd.f32 0.0, %v2966
  %v2968 = vpop.f32.mrf.mxu0
  %v2969 = vadd.f32 0.0, %v2968
  %v2970 = vpop.f32.mrf.mxu0
  %v2971 = vadd.f32 0.0, %v2970
  %2972 = vmatprep.mubr.bf16.mxu0 %v1375
  %2973 = vmatmul.mubr.bf16.gmra.mxu0 %v1374
  %v2974 = vpop.f32.mrf.mxu0
  %v2975 = vadd.f32 0.0, %v2974
  %v2976 = vpop.f32.mrf.mxu0
  %v2977 = vadd.f32 0.0, %v2976
  %v2978 = vpop.f32.mrf.mxu0
  %v2979 = vadd.f32 0.0, %v2978
  %v2980 = vpop.f32.mrf.mxu0
  %v2981 = vadd.f32 0.0, %v2980
  %2982 = vmatprep.mubr.bf16.mxu0 %v1379
  %2983 = vmatmul.mubr.bf16.gmra.mxu0 %v1378
  %v2984 = vpop.f32.mrf.mxu0
  %v2985 = vadd.f32 0.0, %v2984
  %v2986 = vpop.f32.mrf.mxu0
  %v2987 = vadd.f32 0.0, %v2986
  %v2988 = vpop.f32.mrf.mxu0
  %v2989 = vadd.f32 0.0, %v2988
  %v2990 = vpop.f32.mrf.mxu0
  %v2991 = vadd.f32 0.0, %v2990
  %2992 = vmatprep.mubr.bf16.mxu0 %v1383
  %2993 = vmatmul.mubr.bf16.gmra.mxu0 %v1382
  %v2994 = vpop.f32.mrf.mxu0
  %v2995 = vadd.f32 0.0, %v2994
  %v2996 = vpop.f32.mrf.mxu0
  %v2997 = vadd.f32 0.0, %v2996
  %v2998 = vpop.f32.mrf.mxu0
  %v2999 = vadd.f32 0.0, %v2998
  %v3000 = vpop.f32.mrf.mxu0
  %v3001 = vadd.f32 0.0, %v3000
  %3002 = vdwg.mxu0
  %3003 = vmatprep.subr.bf16.mxu0 %v1993
  %3004 = vmatpush1.bf16.msra.mxu0 %v1992
  %3005 = vmatprep.subr.bf16.mxu0 %v1989
  %3006 = vmatpush1.bf16.msra.mxu0 %v1988
  %3007 = vmatprep.subr.bf16.mxu0 %v1985
  %3008 = vmatpush1.bf16.msra.mxu0 %v1984
  %3009 = vmatprep.subr.bf16.mxu0 %v1981
  %3010 = vmatpush1.bf16.msra.mxu0 %v1980
  %3011 = vmatprep.subr.bf16.mxu0 %v1977
  %3012 = vmatpush1.bf16.msra.mxu0 %v1976
  %3013 = vmatprep.subr.bf16.mxu0 %v1973
  %3014 = vmatpush1.bf16.msra.mxu0 %v1972
  %3015 = vmatprep.subr.bf16.mxu0 %v1969
  %3016 = vmatpush1.bf16.msra.mxu0 %v1968
  %3017 = vmatprep.subr.bf16.mxu0 %v1965
  %3018 = vmatpush1.bf16.msra.mxu0 %v1964
  %3019 = vmatprep.subr.bf16.mxu0 %v2025
  %3020 = vmatpush2.bf16.msra.mxu0 %v2024
  %3021 = vmatprep.subr.bf16.mxu0 %v2021
  %3022 = vmatpush2.bf16.msra.mxu0 %v2020
  %3023 = vmatprep.subr.bf16.mxu0 %v2017
  %3024 = vmatpush2.bf16.msra.mxu0 %v2016
  %3025 = vmatprep.subr.bf16.mxu0 %v2013
  %3026 = vmatpush2.bf16.msra.mxu0 %v2012
  %3027 = vmatprep.subr.bf16.mxu0 %v2009
  %3028 = vmatpush2.bf16.msra.mxu0 %v2008
  %3029 = vmatprep.subr.bf16.mxu0 %v2005
  %3030 = vmatpush2.bf16.msra.mxu0 %v2004
  %3031 = vmatprep.subr.bf16.mxu0 %v2001
  %3032 = vmatpush2.bf16.msra.mxu0 %v2000
  %3033 = vmatprep.subr.bf16.mxu0 %v1997
  %3034 = vmatpush2.bf16.msra.mxu0 %v1996
  %3035 = vmatprep.mubr.bf16.mxu0 %v1289
  %3036 = vmatmul.mubr.bf16.gmra.mxu0 %v1288
  %v3037 = vpop.f32.mrf.mxu0
  %v3038 = vadd.f32 %v2755, %v3037
  %v3039 = vpop.f32.mrf.mxu0
  %v3040 = vadd.f32 %v2757, %v3039
  %v3041 = vpop.f32.mrf.mxu0
  %v3042 = vadd.f32 %v2759, %v3041
  %v3043 = vpop.f32.mrf.mxu0
  %v3044 = vadd.f32 %v2761, %v3043
  %3045 = vmatprep.mubr.bf16.mxu0 %v1293
  %3046 = vmatmul.mubr.bf16.gmra.mxu0 %v1292
  %v3047 = vpop.f32.mrf.mxu0
  %v3048 = vadd.f32 %v2765, %v3047
  %v3049 = vpop.f32.mrf.mxu0
  %v3050 = vadd.f32 %v2767, %v3049
  %v3051 = vpop.f32.mrf.mxu0
  %v3052 = vadd.f32 %v2769, %v3051
  %v3053 = vpop.f32.mrf.mxu0
  %v3054 = vadd.f32 %v2771, %v3053
  %3055 = vmatprep.mubr.bf16.mxu0 %v1297
  %3056 = vmatmul.mubr.bf16.gmra.mxu0 %v1296
  %v3057 = vpop.f32.mrf.mxu0
  %v3058 = vadd.f32 %v2775, %v3057
  %v3059 = vpop.f32.mrf.mxu0
  %v3060 = vadd.f32 %v2777, %v3059
  %v3061 = vpop.f32.mrf.mxu0
  %v3062 = vadd.f32 %v2779, %v3061
  %v3063 = vpop.f32.mrf.mxu0
  %v3064 = vadd.f32 %v2781, %v3063
  %3065 = vmatprep.mubr.bf16.mxu0 %v1301
  %3066 = vmatmul.mubr.bf16.gmra.mxu0 %v1300
  %v3067 = vpop.f32.mrf.mxu0
  %v3068 = vadd.f32 %v2785, %v3067
  %v3069 = vpop.f32.mrf.mxu0
  %v3070 = vadd.f32 %v2787, %v3069
  %v3071 = vpop.f32.mrf.mxu0
  %v3072 = vadd.f32 %v2789, %v3071
  %v3073 = vpop.f32.mrf.mxu0
  %v3074 = vadd.f32 %v2791, %v3073
  %3075 = vmatprep.mubr.bf16.mxu0 %v1305
  %3076 = vmatmul.mubr.bf16.gmra.mxu0 %v1304
  %v3077 = vpop.f32.mrf.mxu0
  %v3078 = vadd.f32 %v2795, %v3077
  %v3079 = vpop.f32.mrf.mxu0
  %v3080 = vadd.f32 %v2797, %v3079
  %v3081 = vpop.f32.mrf.mxu0
  %v3082 = vadd.f32 %v2799, %v3081
  %v3083 = vpop.f32.mrf.mxu0
  %v3084 = vadd.f32 %v2801, %v3083
  %3085 = vmatprep.mubr.bf16.mxu0 %v1309
  %3086 = vmatmul.mubr.bf16.gmra.mxu0 %v1308
  %v3087 = vpop.f32.mrf.mxu0
  %v3088 = vadd.f32 %v2805, %v3087
  %v3089 = vpop.f32.mrf.mxu0
  %v3090 = vadd.f32 %v2807, %v3089
  %v3091 = vpop.f32.mrf.mxu0
  %v3092 = vadd.f32 %v2809, %v3091
  %v3093 = vpop.f32.mrf.mxu0
  %v3094 = vadd.f32 %v2811, %v3093
  %3095 = vmatprep.mubr.bf16.mxu0 %v1313
  %3096 = vmatmul.mubr.bf16.gmra.mxu0 %v1312
  %v3097 = vpop.f32.mrf.mxu0
  %v3098 = vadd.f32 %v2815, %v3097
  %v3099 = vpop.f32.mrf.mxu0
  %v3100 = vadd.f32 %v2817, %v3099
  %v3101 = vpop.f32.mrf.mxu0
  %v3102 = vadd.f32 %v2819, %v3101
  %v3103 = vpop.f32.mrf.mxu0
  %v3104 = vadd.f32 %v2821, %v3103
  %3105 = vmatprep.mubr.bf16.mxu0 %v1317
  %3106 = vmatmul.mubr.bf16.gmra.mxu0 %v1316
  %v3107 = vpop.f32.mrf.mxu0
  %v3108 = vadd.f32 %v2825, %v3107
  %v3109 = vpop.f32.mrf.mxu0
  %v3110 = vadd.f32 %v2827, %v3109
  %v3111 = vpop.f32.mrf.mxu0
  %v3112 = vadd.f32 %v2829, %v3111
  %v3113 = vpop.f32.mrf.mxu0
  %v3114 = vadd.f32 %v2831, %v3113
  %3115 = vmatprep.mubr.bf16.mxu0 %v1321
  %3116 = vmatmul.mubr.bf16.gmra.mxu0 %v1320
  %v3117 = vpop.f32.mrf.mxu0
  %v3118 = vadd.f32 %v2835, %v3117
  %v3119 = vpop.f32.mrf.mxu0
  %v3120 = vadd.f32 %v2837, %v3119
  %v3121 = vpop.f32.mrf.mxu0
  %v3122 = vadd.f32 %v2839, %v3121
  %v3123 = vpop.f32.mrf.mxu0
  %v3124 = vadd.f32 %v2841, %v3123
  %3125 = vmatprep.mubr.bf16.mxu0 %v1325
  %3126 = vmatmul.mubr.bf16.gmra.mxu0 %v1324
  %v3127 = vpop.f32.mrf.mxu0
  %v3128 = vadd.f32 %v2845, %v3127
  %v3129 = vpop.f32.mrf.mxu0
  %v3130 = vadd.f32 %v2847, %v3129
  %v3131 = vpop.f32.mrf.mxu0
  %v3132 = vadd.f32 %v2849, %v3131
  %v3133 = vpop.f32.mrf.mxu0
  %v3134 = vadd.f32 %v2851, %v3133
  %3135 = vmatprep.mubr.bf16.mxu0 %v1329
  %3136 = vmatmul.mubr.bf16.gmra.mxu0 %v1328
  %v3137 = vpop.f32.mrf.mxu0
  %v3138 = vadd.f32 %v2855, %v3137
  %v3139 = vpop.f32.mrf.mxu0
  %v3140 = vadd.f32 %v2857, %v3139
  %v3141 = vpop.f32.mrf.mxu0
  %v3142 = vadd.f32 %v2859, %v3141
  %v3143 = vpop.f32.mrf.mxu0
  %v3144 = vadd.f32 %v2861, %v3143
  %3145 = vmatprep.mubr.bf16.mxu0 %v1333
  %3146 = vmatmul.mubr.bf16.gmra.mxu0 %v1332
  %v3147 = vpop.f32.mrf.mxu0
  %v3148 = vadd.f32 %v2865, %v3147
  %v3149 = vpop.f32.mrf.mxu0
  %v3150 = vadd.f32 %v2867, %v3149
  %v3151 = vpop.f32.mrf.mxu0
  %v3152 = vadd.f32 %v2869, %v3151
  %v3153 = vpop.f32.mrf.mxu0
  %v3154 = vadd.f32 %v2871, %v3153
  %3155 = vmatprep.mubr.bf16.mxu0 %v1337
  %3156 = vmatmul.mubr.bf16.gmra.mxu0 %v1336
  %v3157 = vpop.f32.mrf.mxu0
  %v3158 = vadd.f32 %v2875, %v3157
  %v3159 = vpop.f32.mrf.mxu0
  %v3160 = vadd.f32 %v2877, %v3159
  %v3161 = vpop.f32.mrf.mxu0
  %v3162 = vadd.f32 %v2879, %v3161
  %v3163 = vpop.f32.mrf.mxu0
  %v3164 = vadd.f32 %v2881, %v3163
  %3165 = vmatprep.mubr.bf16.mxu0 %v1341
  %3166 = vmatmul.mubr.bf16.gmra.mxu0 %v1340
  %v3167 = vpop.f32.mrf.mxu0
  %v3168 = vadd.f32 %v2885, %v3167
  %v3169 = vpop.f32.mrf.mxu0
  %v3170 = vadd.f32 %v2887, %v3169
  %v3171 = vpop.f32.mrf.mxu0
  %v3172 = vadd.f32 %v2889, %v3171
  %v3173 = vpop.f32.mrf.mxu0
  %v3174 = vadd.f32 %v2891, %v3173
  %3175 = vmatprep.mubr.bf16.mxu0 %v1345
  %3176 = vmatmul.mubr.bf16.gmra.mxu0 %v1344
  %v3177 = vpop.f32.mrf.mxu0
  %v3178 = vadd.f32 %v2895, %v3177
  %v3179 = vpop.f32.mrf.mxu0
  %v3180 = vadd.f32 %v2897, %v3179
  %v3181 = vpop.f32.mrf.mxu0
  %v3182 = vadd.f32 %v2899, %v3181
  %v3183 = vpop.f32.mrf.mxu0
  %v3184 = vadd.f32 %v2901, %v3183
  %3185 = vmatprep.mubr.bf16.mxu0 %v1349
  %3186 = vmatmul.mubr.bf16.gmra.mxu0 %v1348
  %v3187 = vpop.f32.mrf.mxu0
  %v3188 = vadd.f32 %v2905, %v3187
  %v3189 = vpop.f32.mrf.mxu0
  %v3190 = vadd.f32 %v2907, %v3189
  %v3191 = vpop.f32.mrf.mxu0
  %v3192 = vadd.f32 %v2909, %v3191
  %v3193 = vpop.f32.mrf.mxu0
  %v3194 = vadd.f32 %v2911, %v3193
  %3195 = vmatprep.mubr.bf16.mxu0 %v1353
  %3196 = vmatmul.mubr.bf16.gmra.mxu0 %v1352
  %v3197 = vpop.f32.mrf.mxu0
  %v3198 = vadd.f32 %v2915, %v3197
  %v3199 = vpop.f32.mrf.mxu0
  %v3200 = vadd.f32 %v2917, %v3199
  %v3201 = vpop.f32.mrf.mxu0
  %v3202 = vadd.f32 %v2919, %v3201
  %v3203 = vpop.f32.mrf.mxu0
  %v3204 = vadd.f32 %v2921, %v3203
  %3205 = vmatprep.mubr.bf16.mxu0 %v1357
  %3206 = vmatmul.mubr.bf16.gmra.mxu0 %v1356
  %v3207 = vpop.f32.mrf.mxu0
  %v3208 = vadd.f32 %v2925, %v3207
  %v3209 = vpop.f32.mrf.mxu0
  %v3210 = vadd.f32 %v2927, %v3209
  %v3211 = vpop.f32.mrf.mxu0
  %v3212 = vadd.f32 %v2929, %v3211
  %v3213 = vpop.f32.mrf.mxu0
  %v3214 = vadd.f32 %v2931, %v3213
  %3215 = vmatprep.mubr.bf16.mxu0 %v1361
  %3216 = vmatmul.mubr.bf16.gmra.mxu0 %v1360
  %v3217 = vpop.f32.mrf.mxu0
  %v3218 = vadd.f32 %v2935, %v3217
  %v3219 = vpop.f32.mrf.mxu0
  %v3220 = vadd.f32 %v2937, %v3219
  %v3221 = vpop.f32.mrf.mxu0
  %v3222 = vadd.f32 %v2939, %v3221
  %v3223 = vpop.f32.mrf.mxu0
  %v3224 = vadd.f32 %v2941, %v3223
  %3225 = vmatprep.mubr.bf16.mxu0 %v1365
  %3226 = vmatmul.mubr.bf16.gmra.mxu0 %v1364
  %v3227 = vpop.f32.mrf.mxu0
  %v3228 = vadd.f32 %v2945, %v3227
  %v3229 = vpop.f32.mrf.mxu0
  %v3230 = vadd.f32 %v2947, %v3229
  %v3231 = vpop.f32.mrf.mxu0
  %v3232 = vadd.f32 %v2949, %v3231
  %v3233 = vpop.f32.mrf.mxu0
  %v3234 = vadd.f32 %v2951, %v3233
  %3235 = vmatprep.mubr.bf16.mxu0 %v1369
  %3236 = vmatmul.mubr.bf16.gmra.mxu0 %v1368
  %v3237 = vpop.f32.mrf.mxu0
  %v3238 = vadd.f32 %v2955, %v3237
  %v3239 = vpop.f32.mrf.mxu0
  %v3240 = vadd.f32 %v2957, %v3239
  %v3241 = vpop.f32.mrf.mxu0
  %v3242 = vadd.f32 %v2959, %v3241
  %v3243 = vpop.f32.mrf.mxu0
  %v3244 = vadd.f32 %v2961, %v3243
  %3245 = vmatprep.mubr.bf16.mxu0 %v1373
  %3246 = vmatmul.mubr.bf16.gmra.mxu0 %v1372
  %v3247 = vpop.f32.mrf.mxu0
  %v3248 = vadd.f32 %v2965, %v3247
  %v3249 = vpop.f32.mrf.mxu0
  %v3250 = vadd.f32 %v2967, %v3249
  %v3251 = vpop.f32.mrf.mxu0
  %v3252 = vadd.f32 %v2969, %v3251
  %v3253 = vpop.f32.mrf.mxu0
  %v3254 = vadd.f32 %v2971, %v3253
  %3255 = vmatprep.mubr.bf16.mxu0 %v1377
  %3256 = vmatmul.mubr.bf16.gmra.mxu0 %v1376
  %v3257 = vpop.f32.mrf.mxu0
  %v3258 = vadd.f32 %v2975, %v3257
  %v3259 = vpop.f32.mrf.mxu0
  %v3260 = vadd.f32 %v2977, %v3259
  %v3261 = vpop.f32.mrf.mxu0
  %v3262 = vadd.f32 %v2979, %v3261
  %v3263 = vpop.f32.mrf.mxu0
  %v3264 = vadd.f32 %v2981, %v3263
  %3265 = vmatprep.mubr.bf16.mxu0 %v1381
  %3266 = vmatmul.mubr.bf16.gmra.mxu0 %v1380
  %v3267 = vpop.f32.mrf.mxu0
  %v3268 = vadd.f32 %v2985, %v3267
  %v3269 = vpop.f32.mrf.mxu0
  %v3270 = vadd.f32 %v2987, %v3269
  %v3271 = vpop.f32.mrf.mxu0
  %v3272 = vadd.f32 %v2989, %v3271
  %v3273 = vpop.f32.mrf.mxu0
  %v3274 = vadd.f32 %v2991, %v3273
  %3275 = vmatprep.mubr.bf16.mxu0 %v1385
  %3276 = vmatmul.mubr.bf16.gmra.mxu0 %v1384
  %v3277 = vpop.f32.mrf.mxu0
  %v3278 = vadd.f32 %v2995, %v3277
  %v3279 = vpop.f32.mrf.mxu0
  %v3280 = vadd.f32 %v2997, %v3279
  %v3281 = vpop.f32.mrf.mxu0
  %v3282 = vadd.f32 %v2999, %v3281
  %v3283 = vpop.f32.mrf.mxu0
  %v3284 = vadd.f32 %v3001, %v3283
  %3285 = vdwg.mxu0
  %v3286 = vmax.f32 %v2472, %v2482
  %v3287 = vmax.f32 %v3286, %v2492
  %v3288 = vmax.f32 %v3287, %v2502
  %v3289 = vmax.f32 %v3288, %v2512
  %v3290 = vmax.f32 %v3289, %v2522
  %v3291 = vmax.f32 %v3290, %v2532
  %v3292 = vmax.f32 %v3291, %v2542
  %v3293 = vmax.f32 %v3292, %v2552
  %v3294 = vmax.f32 %v3293, %v2562
  %v3295 = vmax.f32 %v3294, %v2572
  %v3296 = vmax.f32 %v3295, %v2582
  %v3297 = vmax.f32 %v3296, %v2592
  %v3298 = vmax.f32 %v3297, %v2602
  %v3299 = vmax.f32 %v3298, %v2612
  %v3300 = vmax.f32 %v3299, %v2622
  %v3301 = vmax.f32 %v3300, %v2632
  %v3302 = vmax.f32 %v3301, %v2642
  %v3303 = vmax.f32 %v3302, %v2652
  %v3304 = vmax.f32 %v3303, %v2662
  %v3305 = vmax.f32 %v3304, %v2672
  %v3306 = vmax.f32 %v3305, %v2682
  %v3307 = vmax.f32 %v3306, %v2692
  %v3308 = vmax.f32 %v3307, %v2702
  %v3309 = vmax.f32 %v3308, %v2712
  %v3310 = vmax.f32 %v2474, %v2484
  %v3311 = vmax.f32 %v3310, %v2494
  %v3312 = vmax.f32 %v3311, %v2504
  %v3313 = vmax.f32 %v3312, %v2514
  %v3314 = vmax.f32 %v3313, %v2524
  %v3315 = vmax.f32 %v3314, %v2534
  %v3316 = vmax.f32 %v3315, %v2544
  %v3317 = vmax.f32 %v3316, %v2554
  %v3318 = vmax.f32 %v3317, %v2564
  %v3319 = vmax.f32 %v3318, %v2574
  %v3320 = vmax.f32 %v3319, %v2584
  %v3321 = vmax.f32 %v3320, %v2594
  %v3322 = vmax.f32 %v3321, %v2604
  %v3323 = vmax.f32 %v3322, %v2614
  %v3324 = vmax.f32 %v3323, %v2624
  %v3325 = vmax.f32 %v3324, %v2634
  %v3326 = vmax.f32 %v3325, %v2644
  %v3327 = vmax.f32 %v3326, %v2654
  %v3328 = vmax.f32 %v3327, %v2664
  %v3329 = vmax.f32 %v3328, %v2674
  %v3330 = vmax.f32 %v3329, %v2684
  %v3331 = vmax.f32 %v3330, %v2694
  %v3332 = vmax.f32 %v3331, %v2704
  %v3333 = vmax.f32 %v3332, %v2714
  %v3334 = vmax.f32 %v3038, %v3048
  %v3335 = vmax.f32 %v3334, %v3058
  %v3336 = vmax.f32 %v3335, %v3068
  %v3337 = vmax.f32 %v3336, %v3078
  %v3338 = vmax.f32 %v3337, %v3088
  %v3339 = vmax.f32 %v3338, %v3098
  %v3340 = vmax.f32 %v3339, %v3108
  %v3341 = vmax.f32 %v3340, %v3118
  %v3342 = vmax.f32 %v3341, %v3128
  %v3343 = vmax.f32 %v3342, %v3138
  %v3344 = vmax.f32 %v3343, %v3148
  %v3345 = vmax.f32 %v3344, %v3158
  %v3346 = vmax.f32 %v3345, %v3168
  %v3347 = vmax.f32 %v3346, %v3178
  %v3348 = vmax.f32 %v3347, %v3188
  %v3349 = vmax.f32 %v3348, %v3198
  %v3350 = vmax.f32 %v3349, %v3208
  %v3351 = vmax.f32 %v3350, %v3218
  %v3352 = vmax.f32 %v3351, %v3228
  %v3353 = vmax.f32 %v3352, %v3238
  %v3354 = vmax.f32 %v3353, %v3248
  %v3355 = vmax.f32 %v3354, %v3258
  %v3356 = vmax.f32 %v3355, %v3268
  %v3357 = vmax.f32 %v3356, %v3278
  %v3358 = vmax.f32 %v3040, %v3050
  %v3359 = vmax.f32 %v3358, %v3060
  %v3360 = vmax.f32 %v3359, %v3070
  %v3361 = vmax.f32 %v3360, %v3080
  %v3362 = vmax.f32 %v3361, %v3090
  %v3363 = vmax.f32 %v3362, %v3100
  %v3364 = vmax.f32 %v3363, %v3110
  %v3365 = vmax.f32 %v3364, %v3120
  %v3366 = vmax.f32 %v3365, %v3130
  %v3367 = vmax.f32 %v3366, %v3140
  %v3368 = vmax.f32 %v3367, %v3150
  %v3369 = vmax.f32 %v3368, %v3160
  %v3370 = vmax.f32 %v3369, %v3170
  %v3371 = vmax.f32 %v3370, %v3180
  %v3372 = vmax.f32 %v3371, %v3190
  %v3373 = vmax.f32 %v3372, %v3200
  %v3374 = vmax.f32 %v3373, %v3210
  %v3375 = vmax.f32 %v3374, %v3220
  %v3376 = vmax.f32 %v3375, %v3230
  %v3377 = vmax.f32 %v3376, %v3240
  %v3378 = vmax.f32 %v3377, %v3250
  %v3379 = vmax.f32 %v3378, %v3260
  %v3380 = vmax.f32 %v3379, %v3270
  %v3381 = vmax.f32 %v3380, %v3280
  %v3382 = vmax.f32 %v2476, %v2486
  %v3383 = vmax.f32 %v3382, %v2496
  %v3384 = vmax.f32 %v3383, %v2506
  %v3385 = vmax.f32 %v3384, %v2516
  %v3386 = vmax.f32 %v3385, %v2526
  %v3387 = vmax.f32 %v3386, %v2536
  %v3388 = vmax.f32 %v3387, %v2546
  %v3389 = vmax.f32 %v3388, %v2556
  %v3390 = vmax.f32 %v3389, %v2566
  %v3391 = vmax.f32 %v3390, %v2576
  %v3392 = vmax.f32 %v3391, %v2586
  %v3393 = vmax.f32 %v3392, %v2596
  %v3394 = vmax.f32 %v3393, %v2606
  %v3395 = vmax.f32 %v3394, %v2616
  %v3396 = vmax.f32 %v3395, %v2626
  %v3397 = vmax.f32 %v3396, %v2636
  %v3398 = vmax.f32 %v3397, %v2646
  %v3399 = vmax.f32 %v3398, %v2656
  %v3400 = vmax.f32 %v3399, %v2666
  %v3401 = vmax.f32 %v3400, %v2676
  %v3402 = vmax.f32 %v3401, %v2686
  %v3403 = vmax.f32 %v3402, %v2696
  %v3404 = vmax.f32 %v3403, %v2706
  %v3405 = vmax.f32 %v3404, %v2716
  %v3406 = vmax.f32 %v2478, %v2488
  %v3407 = vmax.f32 %v3406, %v2498
  %v3408 = vmax.f32 %v3407, %v2508
  %v3409 = vmax.f32 %v3408, %v2518
  %v3410 = vmax.f32 %v3409, %v2528
  %v3411 = vmax.f32 %v3410, %v2538
  %v3412 = vmax.f32 %v3411, %v2548
  %v3413 = vmax.f32 %v3412, %v2558
  %v3414 = vmax.f32 %v3413, %v2568
  %v3415 = vmax.f32 %v3414, %v2578
  %v3416 = vmax.f32 %v3415, %v2588
  %v3417 = vmax.f32 %v3416, %v2598
  %v3418 = vmax.f32 %v3417, %v2608
  %v3419 = vmax.f32 %v3418, %v2618
  %v3420 = vmax.f32 %v3419, %v2628
  %v3421 = vmax.f32 %v3420, %v2638
  %v3422 = vmax.f32 %v3421, %v2648
  %v3423 = vmax.f32 %v3422, %v2658
  %v3424 = vmax.f32 %v3423, %v2668
  %v3425 = vmax.f32 %v3424, %v2678
  %v3426 = vmax.f32 %v3425, %v2688
  %v3427 = vmax.f32 %v3426, %v2698
  %v3428 = vmax.f32 %v3427, %v2708
  %v3429 = vmax.f32 %v3428, %v2718
  %v3430 = vmax.f32 %v3042, %v3052
  %v3431 = vmax.f32 %v3430, %v3062
  %v3432 = vmax.f32 %v3431, %v3072
  %v3433 = vmax.f32 %v3432, %v3082
  %v3434 = vmax.f32 %v3433, %v3092
  %v3435 = vmax.f32 %v3434, %v3102
  %v3436 = vmax.f32 %v3435, %v3112
  %v3437 = vmax.f32 %v3436, %v3122
  %v3438 = vmax.f32 %v3437, %v3132
  %v3439 = vmax.f32 %v3438, %v3142
  %v3440 = vmax.f32 %v3439, %v3152
  %v3441 = vmax.f32 %v3440, %v3162
  %v3442 = vmax.f32 %v3441, %v3172
  %v3443 = vmax.f32 %v3442, %v3182
  %v3444 = vmax.f32 %v3443, %v3192
  %v3445 = vmax.f32 %v3444, %v3202
  %v3446 = vmax.f32 %v3445, %v3212
  %v3447 = vmax.f32 %v3446, %v3222
  %v3448 = vmax.f32 %v3447, %v3232
  %v3449 = vmax.f32 %v3448, %v3242
  %v3450 = vmax.f32 %v3449, %v3252
  %v3451 = vmax.f32 %v3450, %v3262
  %v3452 = vmax.f32 %v3451, %v3272
  %v3453 = vmax.f32 %v3452, %v3282
  %v3454 = vmax.f32 %v3044, %v3054
  %v3455 = vmax.f32 %v3454, %v3064
  %v3456 = vmax.f32 %v3455, %v3074
  %v3457 = vmax.f32 %v3456, %v3084
  %v3458 = vmax.f32 %v3457, %v3094
  %v3459 = vmax.f32 %v3458, %v3104
  %v3460 = vmax.f32 %v3459, %v3114
  %v3461 = vmax.f32 %v3460, %v3124
  %v3462 = vmax.f32 %v3461, %v3134
  %v3463 = vmax.f32 %v3462, %v3144
  %v3464 = vmax.f32 %v3463, %v3154
  %v3465 = vmax.f32 %v3464, %v3164
  %v3466 = vmax.f32 %v3465, %v3174
  %v3467 = vmax.f32 %v3466, %v3184
  %v3468 = vmax.f32 %v3467, %v3194
  %v3469 = vmax.f32 %v3468, %v3204
  %v3470 = vmax.f32 %v3469, %v3214
  %v3471 = vmax.f32 %v3470, %v3224
  %v3472 = vmax.f32 %v3471, %v3234
  %v3473 = vmax.f32 %v3472, %v3244
  %v3474 = vmax.f32 %v3473, %v3254
  %v3475 = vmax.f32 %v3474, %v3264
  %v3476 = vmax.f32 %v3475, %v3274
  %v3477 = vmax.f32 %v3476, %v3284
  %v3478 = vld [vmem:[%s3] sm:$0xf]
  %v3480 = vlaneseq
  %v3481 = vshrl.u32 %v3480, 7
  %v3482 = vsub.s32 0, %v3481
  %v3483 = vrot.slane %v3478, %v3482
  %v3484 = vlaneseq
  %v3485 = vshrl.u32 %v3484, 7
  %v3486 = vsub.s32 1, %v3485
  %v3487 = vrot.slane %v3478, %v3486
  %v3488 = vlaneseq
  %v3489 = vshrl.u32 %v3488, 7
  %v3490 = vsub.s32 2, %v3489
  %v3491 = vrot.slane %v3478, %v3490
  %v3492 = vlaneseq
  %v3493 = vshrl.u32 %v3492, 7
  %v3494 = vsub.s32 3, %v3493
  %v3495 = vrot.slane %v3478, %v3494
  %v3500 = vadd.f32 %v3309, %v3483
  %v3501 = vadd.f32 %v3333, %v3487
  %v3502 = vadd.f32 %v3357, %v3491
  %v3503 = vadd.f32 %v3381, %v3495
  %v3504 = vadd.f32 %v3405, %v3483
  %v3505 = vadd.f32 %v3429, %v3487
  %v3506 = vadd.f32 %v3453, %v3491
  %v3507 = vadd.f32 %v3477, %v3495
  %v3508 = vmax.f32 %v3500, 0.0
  %v3509 = vmax.f32 %v3501, 0.0
  %v3510 = vmax.f32 %v3502, 0.0
  %v3511 = vmax.f32 %v3503, 0.0
  %v3512 = vmax.f32 %v3504, 0.0
  %v3513 = vmax.f32 %v3505, 0.0
  %v3514 = vmax.f32 %v3506, 0.0
  %v3515 = vmax.f32 %v3507, 0.0
  %v3516 = vpack.c.bf16 %v3512, %v3508
  %v3517 = vpack.c.bf16 %v3513, %v3509
  %v3518 = vpack.c.bf16 %v3514, %v3510
  %v3519 = vpack.c.bf16 %v3515, %v3511
  %v3520 = vld [vmem:[%s4] sm:$0xff]
  %v3521 = vld [vmem:[%s4 + $0x8] sm:$0xff]
  %v3522 = vld [vmem:[%s4 + $0x10] sm:$0xff]
  %v3523 = vld [vmem:[%s4 + $0x18] sm:$0xff]
  %v3524 = vld [vmem:[%s4 + $0x20] sm:$0xff]
  %v3525 = vld [vmem:[%s4 + $0x28] sm:$0xff]
  %v3526 = vld [vmem:[%s4 + $0x30] sm:$0xff]
  %v3527 = vld [vmem:[%s4 + $0x38] sm:$0xff]
  %v3528 = vld [vmem:[%s4 + $0x40] sm:$0xff]
  %v3529 = vld [vmem:[%s4 + $0x48] sm:$0xff]
  %v3530 = vld [vmem:[%s4 + $0x50] sm:$0xff]
  %v3531 = vld [vmem:[%s4 + $0x58] sm:$0xff]
  %v3532 = vld [vmem:[%s4 + $0x60] sm:$0xff]
  %v3533 = vld [vmem:[%s4 + $0x68] sm:$0xff]
  %v3534 = vld [vmem:[%s4 + $0x70] sm:$0xff]
  %v3535 = vld [vmem:[%s4 + $0x78] sm:$0xff]
  %v3536 = vld [vmem:[%s4 + $0x80] sm:$0xff]
  %v3537 = vld [vmem:[%s4 + $0x88] sm:$0xff]
  %v3538 = vld [vmem:[%s4 + $0x90] sm:$0xff]
  %v3539 = vld [vmem:[%s4 + $0x98] sm:$0xff]
  %v3540 = vld [vmem:[%s4 + $0xa0] sm:$0xff]
  %v3541 = vld [vmem:[%s4 + $0xa8] sm:$0xff]
  %v3542 = vld [vmem:[%s4 + $0xb0] sm:$0xff]
  %v3543 = vld [vmem:[%s4 + $0xb8] sm:$0xff]
  %v3544 = vld [vmem:[%s4 + $0xc0] sm:$0xff]
  %v3545 = vld [vmem:[%s4 + $0xc8] sm:$0xff]
  %v3546 = vld [vmem:[%s4 + $0xd0] sm:$0xff]
  %v3547 = vld [vmem:[%s4 + $0xd8] sm:$0xff]
  %v3548 = vld [vmem:[%s4 + $0xe0] sm:$0xff]
  %v3549 = vld [vmem:[%s4 + $0xe8] sm:$0xff]
  %v3550 = vld [vmem:[%s4 + $0xf0] sm:$0xff]
  %v3551 = vld [vmem:[%s4 + $0xf8] sm:$0xff]
  %v3552 = vld [vmem:[%s4 + $0x100] sm:$0xff]
  %v3553 = vld [vmem:[%s4 + $0x108] sm:$0xff]
  %v3554 = vld [vmem:[%s4 + $0x110] sm:$0xff]
  %v3555 = vld [vmem:[%s4 + $0x118] sm:$0xff]
  %v3556 = vld [vmem:[%s4 + $0x120] sm:$0xff]
  %v3557 = vld [vmem:[%s4 + $0x128] sm:$0xff]
  %v3558 = vld [vmem:[%s4 + $0x130] sm:$0xff]
  %v3559 = vld [vmem:[%s4 + $0x138] sm:$0xff]
  %v3560 = vld [vmem:[%s4 + $0x140] sm:$0xff]
  %v3561 = vld [vmem:[%s4 + $0x148] sm:$0xff]
  %v3562 = vld [vmem:[%s4 + $0x150] sm:$0xff]
  %v3563 = vld [vmem:[%s4 + $0x158] sm:$0xff]
  %v3564 = vld [vmem:[%s4 + $0x160] sm:$0xff]
  %v3565 = vld [vmem:[%s4 + $0x168] sm:$0xff]
  %v3566 = vld [vmem:[%s4 + $0x170] sm:$0xff]
  %v3567 = vld [vmem:[%s4 + $0x178] sm:$0xff]
  %v3568 = vld [vmem:[%s4 + $0x180] sm:$0xff]
  %v3569 = vld [vmem:[%s4 + $0x188] sm:$0xff]
  %v3570 = vld [vmem:[%s4 + $0x190] sm:$0xff]
  %v3571 = vld [vmem:[%s4 + $0x198] sm:$0xff]
  %v3572 = vld [vmem:[%s4 + $0x1a0] sm:$0xff]
  %v3573 = vld [vmem:[%s4 + $0x1a8] sm:$0xff]
  %v3574 = vld [vmem:[%s4 + $0x1b0] sm:$0xff]
  %v3575 = vld [vmem:[%s4 + $0x1b8] sm:$0xff]
  %v3576 = vld [vmem:[%s4 + $0x1c0] sm:$0xff]
  %v3577 = vld [vmem:[%s4 + $0x1c8] sm:$0xff]
  %v3578 = vld [vmem:[%s4 + $0x1d0] sm:$0xff]
  %v3579 = vld [vmem:[%s4 + $0x1d8] sm:$0xff]
  %v3580 = vld [vmem:[%s4 + $0x1e0] sm:$0xff]
  %v3581 = vld [vmem:[%s4 + $0x1e8] sm:$0xff]
  %v3582 = vld [vmem:[%s4 + $0x1f0] sm:$0xff]
  %v3583 = vld [vmem:[%s4 + $0x1f8] sm:$0xff]
  %v3584 = vld [vmem:[%s5] sm:$0x3]
  %v3586 = vlaneseq
  %v3587 = vshrl.u32 %v3586, 7
  %v3588 = vsub.s32 0, %v3587
  %v3589 = vrot.slane %v3584, %v3588
  %v3590 = vlaneseq
  %v3591 = vshrl.u32 %v3590, 7
  %v3592 = vsub.s32 1, %v3591
  %v3593 = vrot.slane %v3584, %v3592
  %v3660 = vunpack.c.l.b16 %v3520
  %v3661 = vunpack.c.h.b16 %v3520
  %v3662 = vunpack.c.l.b16 %v3521
  %v3663 = vunpack.c.h.b16 %v3521
  %v3664 = vunpack.c.l.b16 %v3522
  %v3665 = vunpack.c.h.b16 %v3522
  %v3666 = vunpack.c.l.b16 %v3523
  %v3667 = vunpack.c.h.b16 %v3523
  %v3668 = vunpack.c.l.b16 %v3524
  %v3669 = vunpack.c.h.b16 %v3524
  %v3670 = vunpack.c.l.b16 %v3525
  %v3671 = vunpack.c.h.b16 %v3525
  %v3672 = vunpack.c.l.b16 %v3526
  %v3673 = vunpack.c.h.b16 %v3526
  %v3674 = vunpack.c.l.b16 %v3527
  %v3675 = vunpack.c.h.b16 %v3527
  %v3676 = vunpack.c.l.b16 %v3528
  %v3677 = vunpack.c.h.b16 %v3528
  %v3678 = vunpack.c.l.b16 %v3529
  %v3679 = vunpack.c.h.b16 %v3529
  %v3680 = vunpack.c.l.b16 %v3530
  %v3681 = vunpack.c.h.b16 %v3530
  %v3682 = vunpack.c.l.b16 %v3531
  %v3683 = vunpack.c.h.b16 %v3531
  %v3684 = vunpack.c.l.b16 %v3532
  %v3685 = vunpack.c.h.b16 %v3532
  %v3686 = vunpack.c.l.b16 %v3533
  %v3687 = vunpack.c.h.b16 %v3533
  %v3688 = vunpack.c.l.b16 %v3534
  %v3689 = vunpack.c.h.b16 %v3534
  %v3690 = vunpack.c.l.b16 %v3535
  %v3691 = vunpack.c.h.b16 %v3535
  %v3692 = vunpack.c.l.b16 %v3536
  %v3693 = vunpack.c.h.b16 %v3536
  %v3694 = vunpack.c.l.b16 %v3537
  %v3695 = vunpack.c.h.b16 %v3537
  %v3696 = vunpack.c.l.b16 %v3538
  %v3697 = vunpack.c.h.b16 %v3538
  %v3698 = vunpack.c.l.b16 %v3539
  %v3699 = vunpack.c.h.b16 %v3539
  %v3700 = vunpack.c.l.b16 %v3540
  %v3701 = vunpack.c.h.b16 %v3540
  %v3702 = vunpack.c.l.b16 %v3541
  %v3703 = vunpack.c.h.b16 %v3541
  %v3704 = vunpack.c.l.b16 %v3542
  %v3705 = vunpack.c.h.b16 %v3542
  %v3706 = vunpack.c.l.b16 %v3543
  %v3707 = vunpack.c.h.b16 %v3543
  %v3708 = vunpack.c.l.b16 %v3544
  %v3709 = vunpack.c.h.b16 %v3544
  %v3710 = vunpack.c.l.b16 %v3545
  %v3711 = vunpack.c.h.b16 %v3545
  %v3712 = vunpack.c.l.b16 %v3546
  %v3713 = vunpack.c.h.b16 %v3546
  %v3714 = vunpack.c.l.b16 %v3547
  %v3715 = vunpack.c.h.b16 %v3547
  %v3716 = vunpack.c.l.b16 %v3548
  %v3717 = vunpack.c.h.b16 %v3548
  %v3718 = vunpack.c.l.b16 %v3549
  %v3719 = vunpack.c.h.b16 %v3549
  %v3720 = vunpack.c.l.b16 %v3550
  %v3721 = vunpack.c.h.b16 %v3550
  %v3722 = vunpack.c.l.b16 %v3551
  %v3723 = vunpack.c.h.b16 %v3551
  %v3724 = vunpack.c.l.b16 %v3552
  %v3725 = vunpack.c.h.b16 %v3552
  %v3726 = vunpack.c.l.b16 %v3553
  %v3727 = vunpack.c.h.b16 %v3553
  %v3728 = vunpack.c.l.b16 %v3554
  %v3729 = vunpack.c.h.b16 %v3554
  %v3730 = vunpack.c.l.b16 %v3555
  %v3731 = vunpack.c.h.b16 %v3555
  %v3732 = vunpack.c.l.b16 %v3556
  %v3733 = vunpack.c.h.b16 %v3556
  %v3734 = vunpack.c.l.b16 %v3557
  %v3735 = vunpack.c.h.b16 %v3557
  %v3736 = vunpack.c.l.b16 %v3558
  %v3737 = vunpack.c.h.b16 %v3558
  %v3738 = vunpack.c.l.b16 %v3559
  %v3739 = vunpack.c.h.b16 %v3559
  %v3740 = vunpack.c.l.b16 %v3560
  %v3741 = vunpack.c.h.b16 %v3560
  %v3742 = vunpack.c.l.b16 %v3561
  %v3743 = vunpack.c.h.b16 %v3561
  %v3744 = vunpack.c.l.b16 %v3562
  %v3745 = vunpack.c.h.b16 %v3562
  %v3746 = vunpack.c.l.b16 %v3563
  %v3747 = vunpack.c.h.b16 %v3563
  %v3748 = vunpack.c.l.b16 %v3564
  %v3749 = vunpack.c.h.b16 %v3564
  %v3750 = vunpack.c.l.b16 %v3565
  %v3751 = vunpack.c.h.b16 %v3565
  %v3752 = vunpack.c.l.b16 %v3566
  %v3753 = vunpack.c.h.b16 %v3566
  %v3754 = vunpack.c.l.b16 %v3567
  %v3755 = vunpack.c.h.b16 %v3567
  %v3756 = vunpack.c.l.b16 %v3568
  %v3757 = vunpack.c.h.b16 %v3568
  %v3758 = vunpack.c.l.b16 %v3569
  %v3759 = vunpack.c.h.b16 %v3569
  %v3760 = vunpack.c.l.b16 %v3570
  %v3761 = vunpack.c.h.b16 %v3570
  %v3762 = vunpack.c.l.b16 %v3571
  %v3763 = vunpack.c.h.b16 %v3571
  %v3764 = vunpack.c.l.b16 %v3572
  %v3765 = vunpack.c.h.b16 %v3572
  %v3766 = vunpack.c.l.b16 %v3573
  %v3767 = vunpack.c.h.b16 %v3573
  %v3768 = vunpack.c.l.b16 %v3574
  %v3769 = vunpack.c.h.b16 %v3574
  %v3770 = vunpack.c.l.b16 %v3575
  %v3771 = vunpack.c.h.b16 %v3575
  %v3772 = vunpack.c.l.b16 %v3576
  %v3773 = vunpack.c.h.b16 %v3576
  %v3774 = vunpack.c.l.b16 %v3577
  %v3775 = vunpack.c.h.b16 %v3577
  %v3776 = vunpack.c.l.b16 %v3578
  %v3777 = vunpack.c.h.b16 %v3578
  %v3778 = vunpack.c.l.b16 %v3579
  %v3779 = vunpack.c.h.b16 %v3579
  %v3780 = vunpack.c.l.b16 %v3580
  %v3781 = vunpack.c.h.b16 %v3580
  %v3782 = vunpack.c.l.b16 %v3581
  %v3783 = vunpack.c.h.b16 %v3581
  %v3784 = vunpack.c.l.b16 %v3582
  %v3785 = vunpack.c.h.b16 %v3582
  %v3786 = vunpack.c.l.b16 %v3583
  %v3787 = vunpack.c.h.b16 %v3583
  %v3788 = vpack.c.b16 %v3662, %v3660
  %v3789 = vpack.c.b16 %v3663, %v3661
  %v3790 = vpack.c.b16 %v3666, %v3664
  %v3791 = vpack.c.b16 %v3667, %v3665
  %v3792 = vpack.c.b16 %v3670, %v3668
  %v3793 = vpack.c.b16 %v3671, %v3669
  %v3794 = vpack.c.b16 %v3674, %v3672
  %v3795 = vpack.c.b16 %v3675, %v3673
  %v3796 = vpack.c.b16 %v3678, %v3676
  %v3797 = vpack.c.b16 %v3679, %v3677
  %v3798 = vpack.c.b16 %v3682, %v3680
  %v3799 = vpack.c.b16 %v3683, %v3681
  %v3800 = vpack.c.b16 %v3686, %v3684
  %v3801 = vpack.c.b16 %v3687, %v3685
  %v3802 = vpack.c.b16 %v3690, %v3688
  %v3803 = vpack.c.b16 %v3691, %v3689
  %v3804 = vpack.c.b16 %v3694, %v3692
  %v3805 = vpack.c.b16 %v3695, %v3693
  %v3806 = vpack.c.b16 %v3698, %v3696
  %v3807 = vpack.c.b16 %v3699, %v3697
  %v3808 = vpack.c.b16 %v3702, %v3700
  %v3809 = vpack.c.b16 %v3703, %v3701
  %v3810 = vpack.c.b16 %v3706, %v3704
  %v3811 = vpack.c.b16 %v3707, %v3705
  %v3812 = vpack.c.b16 %v3710, %v3708
  %v3813 = vpack.c.b16 %v3711, %v3709
  %v3814 = vpack.c.b16 %v3714, %v3712
  %v3815 = vpack.c.b16 %v3715, %v3713
  %v3816 = vpack.c.b16 %v3718, %v3716
  %v3817 = vpack.c.b16 %v3719, %v3717
  %v3818 = vpack.c.b16 %v3722, %v3720
  %v3819 = vpack.c.b16 %v3723, %v3721
  %v3820 = vpack.c.b16 %v3726, %v3724
  %v3821 = vpack.c.b16 %v3727, %v3725
  %v3822 = vpack.c.b16 %v3730, %v3728
  %v3823 = vpack.c.b16 %v3731, %v3729
  %v3824 = vpack.c.b16 %v3734, %v3732
  %v3825 = vpack.c.b16 %v3735, %v3733
  %v3826 = vpack.c.b16 %v3738, %v3736
  %v3827 = vpack.c.b16 %v3739, %v3737
  %v3828 = vpack.c.b16 %v3742, %v3740
  %v3829 = vpack.c.b16 %v3743, %v3741
  %v3830 = vpack.c.b16 %v3746, %v3744
  %v3831 = vpack.c.b16 %v3747, %v3745
  %v3832 = vpack.c.b16 %v3750, %v3748
  %v3833 = vpack.c.b16 %v3751, %v3749
  %v3834 = vpack.c.b16 %v3754, %v3752
  %v3835 = vpack.c.b16 %v3755, %v3753
  %v3836 = vpack.c.b16 %v3758, %v3756
  %v3837 = vpack.c.b16 %v3759, %v3757
  %v3838 = vpack.c.b16 %v3762, %v3760
  %v3839 = vpack.c.b16 %v3763, %v3761
  %v3840 = vpack.c.b16 %v3766, %v3764
  %v3841 = vpack.c.b16 %v3767, %v3765
  %v3842 = vpack.c.b16 %v3770, %v3768
  %v3843 = vpack.c.b16 %v3771, %v3769
  %v3844 = vpack.c.b16 %v3774, %v3772
  %v3845 = vpack.c.b16 %v3775, %v3773
  %v3846 = vpack.c.b16 %v3778, %v3776
  %v3847 = vpack.c.b16 %v3779, %v3777
  %v3848 = vpack.c.b16 %v3782, %v3780
  %v3849 = vpack.c.b16 %v3783, %v3781
  %v3850 = vpack.c.b16 %v3786, %v3784
  %v3851 = vpack.c.b16 %v3787, %v3785
  %3916 = vmatprep.subr.bf16.mxu0 %v3803
  %3917 = vmatpush1.bf16.msra.mxu0 %v3802
  %3918 = vmatprep.subr.bf16.mxu0 %v3801
  %3919 = vmatpush1.bf16.msra.mxu0 %v3800
  %3920 = vmatprep.subr.bf16.mxu0 %v3799
  %3921 = vmatpush1.bf16.msra.mxu0 %v3798
  %3922 = vmatprep.subr.bf16.mxu0 %v3797
  %3923 = vmatpush1.bf16.msra.mxu0 %v3796
  %3924 = vmatprep.subr.bf16.mxu0 %v3795
  %3925 = vmatpush1.bf16.msra.mxu0 %v3794
  %3926 = vmatprep.subr.bf16.mxu0 %v3793
  %3927 = vmatpush1.bf16.msra.mxu0 %v3792
  %3928 = vmatprep.subr.bf16.mxu0 %v3791
  %3929 = vmatpush1.bf16.msra.mxu0 %v3790
  %3930 = vmatprep.subr.bf16.mxu0 %v3789
  %3931 = vmatpush1.bf16.msra.mxu0 %v3788
  %3932 = vmatprep.subr.bf16.mxu0 %v3819
  %3933 = vmatpush2.bf16.msra.mxu0 %v3818
  %3934 = vmatprep.subr.bf16.mxu0 %v3817
  %3935 = vmatpush2.bf16.msra.mxu0 %v3816
  %3936 = vmatprep.subr.bf16.mxu0 %v3815
  %3937 = vmatpush2.bf16.msra.mxu0 %v3814
  %3938 = vmatprep.subr.bf16.mxu0 %v3813
  %3939 = vmatpush2.bf16.msra.mxu0 %v3812
  %3940 = vmatprep.subr.bf16.mxu0 %v3811
  %3941 = vmatpush2.bf16.msra.mxu0 %v3810
  %3942 = vmatprep.subr.bf16.mxu0 %v3809
  %3943 = vmatpush2.bf16.msra.mxu0 %v3808
  %3944 = vmatprep.subr.bf16.mxu0 %v3807
  %3945 = vmatpush2.bf16.msra.mxu0 %v3806
  %3946 = vmatprep.subr.bf16.mxu0 %v3805
  %3947 = vmatpush2.bf16.msra.mxu0 %v3804
  %3948 = vmatprep.mubr.bf16.mxu0 %v3517
  %3949 = vmatmul.mubr.bf16.gmra.mxu0 %v3516
  %v3950 = vpop.f32.mrf.mxu0
  %v3951 = vadd.f32 %v3589, %v3950
  %v3952 = vpop.f32.mrf.mxu0
  %v3953 = vadd.f32 %v3593, %v3952
  %v3954 = vpop.f32.mrf.mxu0
  %v3955 = vadd.f32 %v3589, %v3954
  %v3956 = vpop.f32.mrf.mxu0
  %v3957 = vadd.f32 %v3593, %v3956
  %3958 = vdwg.mxu0
  %3959 = vmatprep.subr.bf16.mxu0 %v3835
  %3960 = vmatpush1.bf16.msra.mxu0 %v3834
  %3961 = vmatprep.subr.bf16.mxu0 %v3833
  %3962 = vmatpush1.bf16.msra.mxu0 %v3832
  %3963 = vmatprep.subr.bf16.mxu0 %v3831
  %3964 = vmatpush1.bf16.msra.mxu0 %v3830
  %3965 = vmatprep.subr.bf16.mxu0 %v3829
  %3966 = vmatpush1.bf16.msra.mxu0 %v3828
  %3967 = vmatprep.subr.bf16.mxu0 %v3827
  %3968 = vmatpush1.bf16.msra.mxu0 %v3826
  %3969 = vmatprep.subr.bf16.mxu0 %v3825
  %3970 = vmatpush1.bf16.msra.mxu0 %v3824
  %3971 = vmatprep.subr.bf16.mxu0 %v3823
  %3972 = vmatpush1.bf16.msra.mxu0 %v3822
  %3973 = vmatprep.subr.bf16.mxu0 %v3821
  %3974 = vmatpush1.bf16.msra.mxu0 %v3820
  %3975 = vmatprep.subr.bf16.mxu0 %v3851
  %3976 = vmatpush2.bf16.msra.mxu0 %v3850
  %3977 = vmatprep.subr.bf16.mxu0 %v3849
  %3978 = vmatpush2.bf16.msra.mxu0 %v3848
  %3979 = vmatprep.subr.bf16.mxu0 %v3847
  %3980 = vmatpush2.bf16.msra.mxu0 %v3846
  %3981 = vmatprep.subr.bf16.mxu0 %v3845
  %3982 = vmatpush2.bf16.msra.mxu0 %v3844
  %3983 = vmatprep.subr.bf16.mxu0 %v3843
  %3984 = vmatpush2.bf16.msra.mxu0 %v3842
  %3985 = vmatprep.subr.bf16.mxu0 %v3841
  %3986 = vmatpush2.bf16.msra.mxu0 %v3840
  %3987 = vmatprep.subr.bf16.mxu0 %v3839
  %3988 = vmatpush2.bf16.msra.mxu0 %v3838
  %3989 = vmatprep.subr.bf16.mxu0 %v3837
  %3990 = vmatpush2.bf16.msra.mxu0 %v3836
  %3991 = vmatprep.mubr.bf16.mxu0 %v3519
  %3992 = vmatmul.mubr.bf16.gmra.mxu0 %v3518
  %v3993 = vpop.f32.mrf.mxu0
  %v3994 = vadd.f32 %v3951, %v3993
  %v3995 = vpop.f32.mrf.mxu0
  %v3996 = vadd.f32 %v3953, %v3995
  %v3997 = vpop.f32.mrf.mxu0
  %v3998 = vadd.f32 %v3955, %v3997
  %v3999 = vpop.f32.mrf.mxu0
  %v4000 = vadd.f32 %v3957, %v3999
  %4001 = vdwg.mxu0
  %v4002 = vmax.f32 %v3994, 0.0
  %v4003 = vmax.f32 %v3996, 0.0
  %v4004 = vmax.f32 %v3998, 0.0
  %v4005 = vmax.f32 %v4000, 0.0
  %v4006 = vpack.c.bf16 %v4004, %v4002
  %v4007 = vpack.c.bf16 %v4005, %v4003
  %v4008 = vld [vmem:[%s6] sm:$0xff]
  %v4009 = vld [vmem:[%s6 + $0x8] sm:$0xff]
  %v4010 = vld [vmem:[%s6 + $0x10] sm:$0xff]
  %v4011 = vld [vmem:[%s6 + $0x18] sm:$0xff]
  %v4012 = vld [vmem:[%s6 + $0x20] sm:$0xff]
  %v4013 = vld [vmem:[%s6 + $0x28] sm:$0xff]
  %v4014 = vld [vmem:[%s6 + $0x30] sm:$0xff]
  %v4015 = vld [vmem:[%s6 + $0x38] sm:$0xff]
  %v4016 = vld [vmem:[%s6 + $0x40] sm:$0xff]
  %v4017 = vld [vmem:[%s6 + $0x48] sm:$0xff]
  %v4018 = vld [vmem:[%s6 + $0x50] sm:$0xff]
  %v4019 = vld [vmem:[%s6 + $0x58] sm:$0xff]
  %v4020 = vld [vmem:[%s6 + $0x60] sm:$0xff]
  %v4021 = vld [vmem:[%s6 + $0x68] sm:$0xff]
  %v4022 = vld [vmem:[%s6 + $0x70] sm:$0xff]
  %v4023 = vld [vmem:[%s6 + $0x78] sm:$0xff]
  %v4024 = vld [vmem:[%s6 + $0x80] sm:$0xff]
  %v4025 = vld [vmem:[%s6 + $0x88] sm:$0xff]
  %v4026 = vld [vmem:[%s6 + $0x90] sm:$0xff]
  %v4027 = vld [vmem:[%s6 + $0x98] sm:$0xff]
  %v4028 = vld [vmem:[%s6 + $0xa0] sm:$0xff]
  %v4029 = vld [vmem:[%s6 + $0xa8] sm:$0xff]
  %v4030 = vld [vmem:[%s6 + $0xb0] sm:$0xff]
  %v4031 = vld [vmem:[%s6 + $0xb8] sm:$0xff]
  %v4032 = vld [vmem:[%s6 + $0xc0] sm:$0xff]
  %v4033 = vld [vmem:[%s6 + $0xc8] sm:$0xff]
  %v4034 = vld [vmem:[%s6 + $0xd0] sm:$0xff]
  %v4035 = vld [vmem:[%s6 + $0xd8] sm:$0xff]
  %v4036 = vld [vmem:[%s6 + $0xe0] sm:$0xff]
  %v4037 = vld [vmem:[%s6 + $0xe8] sm:$0xff]
  %v4038 = vld [vmem:[%s6 + $0xf0] sm:$0xff]
  %v4039 = vld [vmem:[%s6 + $0xf8] sm:$0xff]
  %v4040 = vld [vmem:[%s7] sm:$0x3]
  %v4042 = vlaneseq
  %v4043 = vshrl.u32 %v4042, 7
  %v4044 = vsub.s32 0, %v4043
  %v4045 = vrot.slane %v4040, %v4044
  %v4046 = vlaneseq
  %v4047 = vshrl.u32 %v4046, 7
  %v4048 = vsub.s32 1, %v4047
  %v4049 = vrot.slane %v4040, %v4048
  %v4084 = vunpack.c.l.b16 %v4008
  %v4085 = vunpack.c.h.b16 %v4008
  %v4086 = vunpack.c.l.b16 %v4009
  %v4087 = vunpack.c.h.b16 %v4009
  %v4088 = vunpack.c.l.b16 %v4010
  %v4089 = vunpack.c.h.b16 %v4010
  %v4090 = vunpack.c.l.b16 %v4011
  %v4091 = vunpack.c.h.b16 %v4011
  %v4092 = vunpack.c.l.b16 %v4012
  %v4093 = vunpack.c.h.b16 %v4012
  %v4094 = vunpack.c.l.b16 %v4013
  %v4095 = vunpack.c.h.b16 %v4013
  %v4096 = vunpack.c.l.b16 %v4014
  %v4097 = vunpack.c.h.b16 %v4014
  %v4098 = vunpack.c.l.b16 %v4015
  %v4099 = vunpack.c.h.b16 %v4015
  %v4100 = vunpack.c.l.b16 %v4016
  %v4101 = vunpack.c.h.b16 %v4016
  %v4102 = vunpack.c.l.b16 %v4017
  %v4103 = vunpack.c.h.b16 %v4017
  %v4104 = vunpack.c.l.b16 %v4018
  %v4105 = vunpack.c.h.b16 %v4018
  %v4106 = vunpack.c.l.b16 %v4019
  %v4107 = vunpack.c.h.b16 %v4019
  %v4108 = vunpack.c.l.b16 %v4020
  %v4109 = vunpack.c.h.b16 %v4020
  %v4110 = vunpack.c.l.b16 %v4021
  %v4111 = vunpack.c.h.b16 %v4021
  %v4112 = vunpack.c.l.b16 %v4022
  %v4113 = vunpack.c.h.b16 %v4022
  %v4114 = vunpack.c.l.b16 %v4023
  %v4115 = vunpack.c.h.b16 %v4023
  %v4116 = vunpack.c.l.b16 %v4024
  %v4117 = vunpack.c.h.b16 %v4024
  %v4118 = vunpack.c.l.b16 %v4025
  %v4119 = vunpack.c.h.b16 %v4025
  %v4120 = vunpack.c.l.b16 %v4026
  %v4121 = vunpack.c.h.b16 %v4026
  %v4122 = vunpack.c.l.b16 %v4027
  %v4123 = vunpack.c.h.b16 %v4027
  %v4124 = vunpack.c.l.b16 %v4028
  %v4125 = vunpack.c.h.b16 %v4028
  %v4126 = vunpack.c.l.b16 %v4029
  %v4127 = vunpack.c.h.b16 %v4029
  %v4128 = vunpack.c.l.b16 %v4030
  %v4129 = vunpack.c.h.b16 %v4030
  %v4130 = vunpack.c.l.b16 %v4031
  %v4131 = vunpack.c.h.b16 %v4031
  %v4132 = vunpack.c.l.b16 %v4032
  %v4133 = vunpack.c.h.b16 %v4032
  %v4134 = vunpack.c.l.b16 %v4033
  %v4135 = vunpack.c.h.b16 %v4033
  %v4136 = vunpack.c.l.b16 %v4034
  %v4137 = vunpack.c.h.b16 %v4034
  %v4138 = vunpack.c.l.b16 %v4035
  %v4139 = vunpack.c.h.b16 %v4035
  %v4140 = vunpack.c.l.b16 %v4036
  %v4141 = vunpack.c.h.b16 %v4036
  %v4142 = vunpack.c.l.b16 %v4037
  %v4143 = vunpack.c.h.b16 %v4037
  %v4144 = vunpack.c.l.b16 %v4038
  %v4145 = vunpack.c.h.b16 %v4038
  %v4146 = vunpack.c.l.b16 %v4039
  %v4147 = vunpack.c.h.b16 %v4039
  %v4148 = vpack.c.b16 %v4086, %v4084
  %v4149 = vpack.c.b16 %v4087, %v4085
  %v4150 = vpack.c.b16 %v4090, %v4088
  %v4151 = vpack.c.b16 %v4091, %v4089
  %v4152 = vpack.c.b16 %v4094, %v4092
  %v4153 = vpack.c.b16 %v4095, %v4093
  %v4154 = vpack.c.b16 %v4098, %v4096
  %v4155 = vpack.c.b16 %v4099, %v4097
  %v4156 = vpack.c.b16 %v4102, %v4100
  %v4157 = vpack.c.b16 %v4103, %v4101
  %v4158 = vpack.c.b16 %v4106, %v4104
  %v4159 = vpack.c.b16 %v4107, %v4105
  %v4160 = vpack.c.b16 %v4110, %v4108
  %v4161 = vpack.c.b16 %v4111, %v4109
  %v4162 = vpack.c.b16 %v4114, %v4112
  %v4163 = vpack.c.b16 %v4115, %v4113
  %v4164 = vpack.c.b16 %v4118, %v4116
  %v4165 = vpack.c.b16 %v4119, %v4117
  %v4166 = vpack.c.b16 %v4122, %v4120
  %v4167 = vpack.c.b16 %v4123, %v4121
  %v4168 = vpack.c.b16 %v4126, %v4124
  %v4169 = vpack.c.b16 %v4127, %v4125
  %v4170 = vpack.c.b16 %v4130, %v4128
  %v4171 = vpack.c.b16 %v4131, %v4129
  %v4172 = vpack.c.b16 %v4134, %v4132
  %v4173 = vpack.c.b16 %v4135, %v4133
  %v4174 = vpack.c.b16 %v4138, %v4136
  %v4175 = vpack.c.b16 %v4139, %v4137
  %v4176 = vpack.c.b16 %v4142, %v4140
  %v4177 = vpack.c.b16 %v4143, %v4141
  %v4178 = vpack.c.b16 %v4146, %v4144
  %v4179 = vpack.c.b16 %v4147, %v4145
  %4212 = vmatprep.subr.bf16.mxu0 %v4163
  %4213 = vmatpush1.bf16.msra.mxu0 %v4162
  %4214 = vmatprep.subr.bf16.mxu0 %v4161
  %4215 = vmatpush1.bf16.msra.mxu0 %v4160
  %4216 = vmatprep.subr.bf16.mxu0 %v4159
  %4217 = vmatpush1.bf16.msra.mxu0 %v4158
  %4218 = vmatprep.subr.bf16.mxu0 %v4157
  %4219 = vmatpush1.bf16.msra.mxu0 %v4156
  %4220 = vmatprep.subr.bf16.mxu0 %v4155
  %4221 = vmatpush1.bf16.msra.mxu0 %v4154
  %4222 = vmatprep.subr.bf16.mxu0 %v4153
  %4223 = vmatpush1.bf16.msra.mxu0 %v4152
  %4224 = vmatprep.subr.bf16.mxu0 %v4151
  %4225 = vmatpush1.bf16.msra.mxu0 %v4150
  %4226 = vmatprep.subr.bf16.mxu0 %v4149
  %4227 = vmatpush1.bf16.msra.mxu0 %v4148
  %4228 = vmatprep.subr.bf16.mxu0 %v4179
  %4229 = vmatpush2.bf16.msra.mxu0 %v4178
  %4230 = vmatprep.subr.bf16.mxu0 %v4177
  %4231 = vmatpush2.bf16.msra.mxu0 %v4176
  %4232 = vmatprep.subr.bf16.mxu0 %v4175
  %4233 = vmatpush2.bf16.msra.mxu0 %v4174
  %4234 = vmatprep.subr.bf16.mxu0 %v4173
  %4235 = vmatpush2.bf16.msra.mxu0 %v4172
  %4236 = vmatprep.subr.bf16.mxu0 %v4171
  %4237 = vmatpush2.bf16.msra.mxu0 %v4170
  %4238 = vmatprep.subr.bf16.mxu0 %v4169
  %4239 = vmatpush2.bf16.msra.mxu0 %v4168
  %4240 = vmatprep.subr.bf16.mxu0 %v4167
  %4241 = vmatpush2.bf16.msra.mxu0 %v4166
  %4242 = vmatprep.subr.bf16.mxu0 %v4165
  %4243 = vmatpush2.bf16.msra.mxu0 %v4164
  %4244 = vmatprep.mubr.bf16.mxu0 %v4007
  %4245 = vmatmul.mubr.bf16.gmra.mxu0 %v4006
  %v4246 = vpop.f32.mrf.mxu0
  %v4247 = vadd.f32 %v4045, %v4246
  %v4248 = vpop.f32.mrf.mxu0
  %v4249 = vadd.f32 %v4049, %v4248
  %v4250 = vpop.f32.mrf.mxu0
  %v4251 = vadd.f32 %v4045, %v4250
  %v4252 = vpop.f32.mrf.mxu0
  %v4253 = vadd.f32 %v4049, %v4252
  %4254 = vdwg.mxu0
  %v4255 = vmax.f32 %v4247, 0.0
  %v4256 = vmax.f32 %v4249, 0.0
  %v4257 = vmax.f32 %v4251, 0.0
  %v4258 = vmax.f32 %v4253, 0.0
  %v4259 = vpack.c.bf16 %v4257, %v4255
  %v4260 = vpack.c.bf16 %v4258, %v4256
  %v4261 = vld [vmem:[%s8] sm:$0xf]
  %v4262 = vld [vmem:[%s8 + $0x4] sm:$0xf]
  %v4263 = vld [vmem:[%s8 + $0x8] sm:$0xf]
  %v4264 = vld [vmem:[%s8 + $0xc] sm:$0xf]
  %v4265 = vld [vmem:[%s8 + $0x10] sm:$0xf]
  %v4266 = vld [vmem:[%s8 + $0x14] sm:$0xf]
  %v4267 = vld [vmem:[%s8 + $0x18] sm:$0xf]
  %v4268 = vld [vmem:[%s8 + $0x1c] sm:$0xf]
  %v4269 = vld [vmem:[%s8 + $0x20] sm:$0xf]
  %v4270 = vld [vmem:[%s8 + $0x24] sm:$0xf]
  %v4271 = vld [vmem:[%s8 + $0x28] sm:$0xf]
  %v4272 = vld [vmem:[%s8 + $0x2c] sm:$0xf]
  %v4273 = vld [vmem:[%s8 + $0x30] sm:$0xf]
  %v4274 = vld [vmem:[%s8 + $0x34] sm:$0xf]
  %v4275 = vld [vmem:[%s8 + $0x38] sm:$0xf]
  %v4276 = vld [vmem:[%s8 + $0x3c] sm:$0xf]
  %v4277 = vld [vmem:[%s8 + $0x40] sm:$0xf]
  %v4278 = vld [vmem:[%s8 + $0x44] sm:$0xf]
  %v4279 = vld [vmem:[%s8 + $0x48] sm:$0xf]
  %v4280 = vld [vmem:[%s8 + $0x4c] sm:$0xf]
  %v4281 = vld [vmem:[%s8 + $0x50] sm:$0xf]
  %v4282 = vld [vmem:[%s8 + $0x54] sm:$0xf]
  %v4283 = vld [vmem:[%s8 + $0x58] sm:$0xf]
  %v4284 = vld [vmem:[%s8 + $0x5c] sm:$0xf]
  %v4285 = vld [vmem:[%s8 + $0x60] sm:$0xf]
  %v4286 = vld [vmem:[%s8 + $0x64] sm:$0xf]
  %v4287 = vld [vmem:[%s8 + $0x68] sm:$0xf]
  %v4288 = vld [vmem:[%s8 + $0x6c] sm:$0xf]
  %v4289 = vld [vmem:[%s8 + $0x70] sm:$0xf]
  %v4290 = vld [vmem:[%s8 + $0x74] sm:$0xf]
  %v4291 = vld [vmem:[%s8 + $0x78] sm:$0xf]
  %v4292 = vld [vmem:[%s8 + $0x7c] sm:$0xf]
  %v4293 = vld [vmem:[%s9] sm:$0x1]
  %v4295 = vlaneseq
  %v4296 = vshrl.u32 %v4295, 7
  %v4297 = vsub.s32 0, %v4296
  %v4298 = vrot.slane %v4293, %v4297
  %v4332 = vunpack.c.l.b16 %v4261
  %v4333 = vunpack.c.l.b16 %v4262
  %v4334 = vunpack.c.l.b16 %v4263
  %v4335 = vunpack.c.l.b16 %v4264
  %v4336 = vunpack.c.l.b16 %v4265
  %v4337 = vunpack.c.l.b16 %v4266
  %v4338 = vunpack.c.l.b16 %v4267
  %v4339 = vunpack.c.l.b16 %v4268
  %v4340 = vunpack.c.l.b16 %v4269
  %v4341 = vunpack.c.l.b16 %v4270
  %v4342 = vunpack.c.l.b16 %v4271
  %v4343 = vunpack.c.l.b16 %v4272
  %v4344 = vunpack.c.l.b16 %v4273
  %v4345 = vunpack.c.l.b16 %v4274
  %v4346 = vunpack.c.l.b16 %v4275
  %v4347 = vunpack.c.l.b16 %v4276
  %v4348 = vunpack.c.l.b16 %v4277
  %v4349 = vunpack.c.l.b16 %v4278
  %v4350 = vunpack.c.l.b16 %v4279
  %v4351 = vunpack.c.l.b16 %v4280
  %v4352 = vunpack.c.l.b16 %v4281
  %v4353 = vunpack.c.l.b16 %v4282
  %v4354 = vunpack.c.l.b16 %v4283
  %v4355 = vunpack.c.l.b16 %v4284
  %v4356 = vunpack.c.l.b16 %v4285
  %v4357 = vunpack.c.l.b16 %v4286
  %v4358 = vunpack.c.l.b16 %v4287
  %v4359 = vunpack.c.l.b16 %v4288
  %v4360 = vunpack.c.l.b16 %v4289
  %v4361 = vunpack.c.l.b16 %v4290
  %v4362 = vunpack.c.l.b16 %v4291
  %v4363 = vunpack.c.l.b16 %v4292
  %v4364 = vpack.c.b16 %v4333, %v4332
  %v4365 = vpack.c.b16 %v4335, %v4334
  %v4366 = vpack.c.b16 %v4337, %v4336
  %v4367 = vpack.c.b16 %v4339, %v4338
  %v4368 = vpack.c.b16 %v4341, %v4340
  %v4369 = vpack.c.b16 %v4343, %v4342
  %v4370 = vpack.c.b16 %v4345, %v4344
  %v4371 = vpack.c.b16 %v4347, %v4346
  %v4372 = vpack.c.b16 %v4349, %v4348
  %v4373 = vpack.c.b16 %v4351, %v4350
  %v4374 = vpack.c.b16 %v4353, %v4352
  %v4375 = vpack.c.b16 %v4355, %v4354
  %v4376 = vpack.c.b16 %v4357, %v4356
  %v4377 = vpack.c.b16 %v4359, %v4358
  %v4378 = vpack.c.b16 %v4361, %v4360
  %v4379 = vpack.c.b16 %v4363, %v4362
  %4396 = vmatprep.subr.bf16.mxu0 0
  %4397 = vmatpush1.bf16.msra.mxu0 %v4371
  %4398 = vmatprep.subr.bf16.mxu0 0
  %4399 = vmatpush1.bf16.msra.mxu0 %v4370
  %4400 = vmatprep.subr.bf16.mxu0 0
  %4401 = vmatpush1.bf16.msra.mxu0 %v4369
  %4402 = vmatprep.subr.bf16.mxu0 0
  %4403 = vmatpush1.bf16.msra.mxu0 %v4368
  %4404 = vmatprep.subr.bf16.mxu0 0
  %4405 = vmatpush1.bf16.msra.mxu0 %v4367
  %4406 = vmatprep.subr.bf16.mxu0 0
  %4407 = vmatpush1.bf16.msra.mxu0 %v4366
  %4408 = vmatprep.subr.bf16.mxu0 0
  %4409 = vmatpush1.bf16.msra.mxu0 %v4365
  %4410 = vmatprep.subr.bf16.mxu0 0
  %4411 = vmatpush1.bf16.msra.mxu0 %v4364
  %4412 = vmatprep.subr.bf16.mxu0 0
  %4413 = vmatpush2.bf16.msra.mxu0 %v4379
  %4414 = vmatprep.subr.bf16.mxu0 0
  %4415 = vmatpush2.bf16.msra.mxu0 %v4378
  %4416 = vmatprep.subr.bf16.mxu0 0
  %4417 = vmatpush2.bf16.msra.mxu0 %v4377
  %4418 = vmatprep.subr.bf16.mxu0 0
  %4419 = vmatpush2.bf16.msra.mxu0 %v4376
  %4420 = vmatprep.subr.bf16.mxu0 0
  %4421 = vmatpush2.bf16.msra.mxu0 %v4375
  %4422 = vmatprep.subr.bf16.mxu0 0
  %4423 = vmatpush2.bf16.msra.mxu0 %v4374
  %4424 = vmatprep.subr.bf16.mxu0 0
  %4425 = vmatpush2.bf16.msra.mxu0 %v4373
  %4426 = vmatprep.subr.bf16.mxu0 0
  %4427 = vmatpush2.bf16.msra.mxu0 %v4372
  %4428 = vmatprep.mubr.bf16.mxu0 %v4260
  %4429 = vmatmul.mubr.bf16.gmra.mxu0 %v4259
  %v4430 = vpop.f32.mrf.mxu0
  %v4431 = vadd.f32 %v4298, %v4430
  %v4432 = vpop.f32.mrf.mxu0
  %v4433 = vpop.f32.mrf.mxu0
  %v4434 = vadd.f32 %v4298, %v4433
  %v4435 = vpop.f32.mrf.mxu0
  %4436 = vdwg.mxu0
  %v4437 = vlaneseq
  %v4438 = vand.u32 %v4437, 127
  %vm4439 = vcmp.eq.s32.totalorder %v4438, 2
  %v4440 = vxor.u32 %v4431, 2147483648
  %v4441 = vxor.u32 %v4434, 2147483648
  %v4442 = vmul.f32 %v4440, 1.442695
  %v4443 = vpow.pop %v4442
  %v4444 = vmul.f32 %v4441, 1.442695
  %v4445 = vpow.pop %v4444
  %v4446 = vadd.f32 %v4443, 1.0
  %v4447 = vadd.f32 %v4445, 1.0
  %v4448 = vrcp.pop %v4446
  %v4449 = vmul.f32 1.0, %v4448
  %v4450 = vrcp.pop %v4447
  %v4451 = vmul.f32 1.0, %v4450
  %v4452 = vsel %vm4439, %v4449, %v4431
  %v4453 = vsel %vm4439, %v4451, %v4434
  %4454 = vst [vmem:[%s10] sm:$0xff] %v4452
  %4455 = vst [vmem:[%s10 + $0x8] sm:$0xff] %v4453
  // Predicated region
  $region42: #{_fine_adjust_compute.1} parent=0 // pred_check
    _
  $region43: #{_fine_adjust_compute.1} parent=0 // pred_check_branch
    %4457 = sbr.rel (0) target = $region45
  $region44: #{_fine_adjust_compute.1} parent=0 // pred_region
    _
  $region45: #{_fine_adjust_compute.1} parent=0 // pred_fallthru
    _
  // Predicated region
  $region46: #{_fine_adjust_compute.1} parent=0 // pred_check
    _
  $region47: #{_fine_adjust_compute.1} parent=0 // pred_check_branch
    %4459 = sbr.rel (0) target = $region49
  $region48: #{_fine_adjust_compute.1} parent=0 // pred_region
    _
  $region49: #{_fine_adjust_compute.1} parent=0 // pred_fallthru
    _

</llo_original>
